<compile_context>
chip_gen: v6e
topology: v6e:2x2x1
jax: 0.10.0
libtpu: 0.0.40
codegen_flags: <defaults>
</compile_context>

<pallas_src>
import functools

import jax
import jax.numpy as jnp
from jax.experimental import pallas as pl
from jax.experimental.pallas import tpu as pltpu

EPS = 1e-5                      # nn.BatchNorm2d default eps
LANE = 128                      # TPU lane width
VMEM_LIMIT = 32 * 1024 * 1024   # safe scoped-VMEM cap on v5e / v6e / v7x


def _round_up(x, m):
    return (x + m - 1) // m * m


def _choose_tiling(m, tm_cap=2048):
    """Pick (G, TM, M_pad): G*TM divides M_pad, TM multiple of 8, TM as large as possible."""
    g = 2 if m % 2 == 0 else 1
    m_pad = _round_up(m, 8 * g)
    mc = m_pad // g
    tm = 8
    for t in range(8, min(mc, tm_cap) + 1, 8):
        if mc % t == 0:
            tm = t
    return g, tm, m_pad


# ----------------------------- Pallas kernels ------------------------------

def _conv1_stats_kernel(x_ref, w_ref, y_ref, s_ref, ss_ref):
    """y1 = x @ w1 (bf16 MXU, f32 acc); per-core BN1 sum / sum-of-squares."""
    @pl.when(pl.program_id(1) == 0)
    def _():
        s_ref[...] = jnp.zeros_like(s_ref)
        ss_ref[...] = jnp.zeros_like(ss_ref)

    acc = jnp.dot(x_ref[...], w_ref[...], preferred_element_type=jnp.float32)
    y_ref[...] = acc.astype(y_ref.dtype)                 # bf16 HBM intermediate
    s_ref[0:1, :] += jnp.sum(acc, axis=0, keepdims=True)  # stats from f32 acc
    ss_ref[0:1, :] += jnp.sum(acc * acc, axis=0, keepdims=True)


def _bn1_conv2_stats_kernel(y1_ref, sc_ref, sh_ref, w2_ref, y2_ref, s_ref, ss_ref,
                            xpad_ref, *, B, H, W, Wp, C):
    """out1 = relu(bn1(y1)); y2 = conv3x3(out1) via 3 K=3C matmuls; BN2 statistics.

    Padded-image scratch layout (per image, flat index r = row*Wp + col):
      image[h, w] lives at scratch[2 + h, w]; everything else stays zero, so
      x_pad[a, b] == flat[(a + 1) * Wp + (b - 1)] for the whole 3x3 halo.
    """
    j = pl.program_id(1)
    HW = H * W
    HWp = H * Wp
    L = (H + 2) * Wp
    R = (H + 4) * Wp

    @pl.when(j == 0)
    def _():
        s_ref[...] = jnp.zeros_like(s_ref)
        ss_ref[...] = jnp.zeros_like(ss_ref)
        xpad_ref[...] = jnp.zeros_like(xpad_ref)   # zero halo written once per core

    for b in range(B):
        # BN1 applied to the *unpadded* activation (zero halo stays zero).
        v = jnp.maximum(y1_ref[b] * sc_ref[...] + sh_ref[...], 0.0)        # (HW, C) f32
        xpad_ref[2:H + 2, 0:W, :] = v.astype(xpad_ref.dtype).reshape(H, W, C)
        xf = xpad_ref[...].reshape(R, C)                                   # (R, C) bf16

        # lane-concat of the three kw taps: cat[r, kw*C:(kw+1)*C] == xf[Wp - 1 + kw + r]
        cat = jnp.concatenate(
            [xf[Wp - 1 + kw: Wp - 1 + kw + L, :] for kw in range(3)], axis=-1)  # (L, 3C)

        acc = jnp.zeros((HWp, C), jnp.float32)
        for kh in range(3):                    # aligned slices (Wp % 8 == 0), K = 3C
            acc = acc + jnp.dot(cat[kh * Wp: kh * Wp + HWp, :], w2_ref[kh],
                                preferred_element_type=jnp.float32)

        acc = acc.reshape(H, Wp, C)[:, :W, :].reshape(HW, C)   # drop padded columns
        y2_ref[b] = acc.astype(y2_ref.dtype)                   # bf16 HBM intermediate
        s_ref[0:1, :] += jnp.sum(acc, axis=0, keepdims=True)
        ss_ref[0:1, :] += jnp.sum(acc * acc, axis=0, keepdims=True)


def _bn2_conv3_stats_kernel(y2_ref, sc_ref, sh_ref, w3_ref, y3_ref, s_ref, ss_ref,
                            *, steps, tm, m_true, need_mask):
    """out2 = relu(bn2(y2)); y3 = out2 @ w3; per-core BN3 statistics."""
    i = pl.program_id(1)

    @pl.when(i == 0)
    def _():
        s_ref[...] = jnp.zeros_like(s_ref)
        ss_ref[...] = jnp.zeros_like(ss_ref)

    out2 = jnp.maximum(y2_ref[...] * sc_ref[...] + sh_ref[...], 0.0)
    if need_mask:   # only in the rare M-padding fallback; no iota/select otherwise
        g = pl.program_id(0)
        row = jax.lax.broadcasted_iota(jnp.int32, out2.shape, 0) + (g * steps + i) * tm
        out2 = jnp.where(row < m_true, out2, 0.0)

    acc = jnp.dot(out2.astype(jnp.bfloat16), w3_ref[...],
                  preferred_element_type=jnp.float32)
    y3_ref[...] = acc.astype(y3_ref.dtype)                  # bf16 HBM intermediate
    s_ref[0:1, :] += jnp.sum(acc, axis=0, keepdims=True)
    ss_ref[0:1, :] += jnp.sum(acc * acc, axis=0, keepdims=True)


def _bn3_add_relu_kernel(y3_ref, sc_ref, sh_ref, r_ref, o_ref):
    """out = relu(y3 * scale + shift + residual)   (f32 module output)."""
    o_ref[...] = jnp.maximum(
        y3_ref[...] * sc_ref[...] + sh_ref[...] + r_ref[...], 0.0).astype(o_ref.dtype)


# --------------------------- pallas_call wrappers ---------------------------

def _conv1_stats(x, w, G, TM):
    m_pad, K = x.shape
    C = w.shape[1]
    steps = (m_pad // G) // TM
    return pl.pallas_call(
        _conv1_stats_kernel,
        grid=(G, steps),
        in_specs=[pl.BlockSpec((TM, K), lambda g, i: (g * steps + i, 0)),
                  pl.BlockSpec((K, C), lambda g, i: (0, 0))],
        out_specs=(pl.BlockSpec((TM, C), lambda g, i: (g * steps + i, 0)),
                   pl.BlockSpec((8, C), lambda g, i: (g, 0)),
                   pl.BlockSpec((8, C), lambda g, i: (g, 0))),
        out_shape=(jax.ShapeDtypeStruct((m_pad, C), jnp.bfloat16),
                   jax.ShapeDtypeStruct((8 * G, C), jnp.float32),
                   jax.ShapeDtypeStruct((8 * G, C), jnp.float32)),
        compiler_params=pltpu.CompilerParams(
            dimension_semantics=("parallel", "arbitrary"),
            vmem_limit_bytes=VMEM_LIMIT),
    )(x, w)


def _bn1_conv2_stats(y1_img, sc1, sh1, w2cat, G2, B, H, W, Wp):
    N, HW, C = y1_img.shape
    steps = (N // G2) // B
    kernel = functools.partial(_bn1_conv2_stats_kernel, B=B, H=H, W=W, Wp=Wp, C=C)
    return pl.pallas_call(
        kernel,
        grid=(G2, steps),
        in_specs=[pl.BlockSpec((B, HW, C), lambda g, j: (g * steps + j, 0, 0)),
                  pl.BlockSpec((1, C), lambda g, j: (0, 0)),
                  pl.BlockSpec((1, C), lambda g, j: (0, 0)),
                  pl.BlockSpec((3, 3 * C, C), lambda g, j: (0, 0, 0))],
        out_specs=(pl.BlockSpec((B, HW, C), lambda g, j: (g * steps + j, 0, 0)),
                   pl.BlockSpec((8, C), lambda g, j: (g, 0)),
                   pl.BlockSpec((8, C), lambda g, j: (g, 0))),
        out_shape=(jax.ShapeDtypeStruct((N, HW, C), jnp.bfloat16),
                   jax.ShapeDtypeStruct((8 * G2, C), jnp.float32),
                   jax.ShapeDtypeStruct((8 * G2, C), jnp.float32)),
        scratch_shapes=[pltpu.VMEM((H + 4, Wp, C), jnp.bfloat16)],
        compiler_params=pltpu.CompilerParams(
            dimension_semantics=("parallel", "arbitrary"),
            vmem_limit_bytes=VMEM_LIMIT),
    )(y1_img, sc1, sh1, w2cat)


def _bn2_conv3_stats(y2, sc2, sh2, w3, G, TM, m_true, need_mask):
    m_pad, K = y2.shape
    Cout = w3.shape[1]
    steps = (m_pad // G) // TM
    kernel = functools.partial(_bn2_conv3_stats_kernel, steps=steps, tm=TM,
                               m_true=m_true, need_mask=need_mask)
    return pl.pallas_call(
        kernel,
        grid=(G, steps),
        in_specs=[pl.BlockSpec((TM, K), lambda g, i: (g * steps + i, 0)),
                  pl.BlockSpec((1, K), lambda g, i: (0, 0)),
                  pl.BlockSpec((1, K), lambda g, i: (0, 0)),
                  pl.BlockSpec((K, Cout), lambda g, i: (0, 0))],
        out_specs=(pl.BlockSpec((TM, Cout), lambda g, i: (g * steps + i, 0)),
                   pl.BlockSpec((8, Cout), lambda g, i: (g, 0)),
                   pl.BlockSpec((8, Cout), lambda g, i: (g, 0))),
        out_shape=(jax.ShapeDtypeStruct((m_pad, Cout), jnp.bfloat16),
                   jax.ShapeDtypeStruct((8 * G, Cout), jnp.float32),
                   jax.ShapeDtypeStruct((8 * G, Cout), jnp.float32)),
        compiler_params=pltpu.CompilerParams(
            dimension_semantics=("parallel", "arbitrary"),
            vmem_limit_bytes=VMEM_LIMIT),
    )(y2, sc2, sh2, w3)


def _bn3_add_relu(y3, sc3, sh3, res, TM):
    m_pad, C = y3.shape
    return pl.pallas_call(
        _bn3_add_relu_kernel,
        grid=(m_pad // TM,),
        in_specs=[pl.BlockSpec((TM, C), lambda i: (i, 0)),
                  pl.BlockSpec((1, C), lambda i: (0, 0)),
                  pl.BlockSpec((1, C), lambda i: (0, 0)),
                  pl.BlockSpec((TM, C), lambda i: (i, 0))],
        out_specs=pl.BlockSpec((TM, C), lambda i: (i, 0)),
        out_shape=jax.ShapeDtypeStruct((m_pad, C), jnp.float32),
        compiler_params=pltpu.CompilerParams(
            dimension_semantics=("parallel",), vmem_limit_bytes=VMEM_LIMIT),
    )(y3, sc3, sh3, res)


def _fold_bn(s, ss, gamma, beta, count):
    """Fold per-core batch statistics into a per-channel (scale, shift) pair (f32).

    NOTE: one-pass E[y^2]-E[y]^2 variance; fine at these scales (see review), a
    shifted/Welford formulation would be safer for a general BN-stats kernel.
    Rows 1..7 of each per-core stats block are zero, so a plain sum folds the partials.
    """
    s = jnp.sum(s, axis=0, keepdims=True)
    ss = jnp.sum(ss, axis=0, keepdims=True)
    mean = s / count
    var = jnp.maximum(ss / count - mean * mean, 0.0)
    scale = gamma * jax.lax.rsqrt(var + EPS)
    shift = beta - mean * scale
    return scale, shift


# --------------------------------- wrapper ----------------------------------

def bottleneck_forward(x_nchw, params):
    """Bottleneck.forward (stride=1, groups=1, dilation=1, downsample=None)."""
    N, Cin, H, W = x_nchw.shape
    width = params["w1"].shape[1]
    Cout = params["w3"].shape[1]
    assert Cout == Cin, "downsample=None requires inplanes == planes*expansion"

    Cin_p = _round_up(Cin, LANE)
    Cw_p = _round_up(width, LANE)
    Cout_p = _round_up(Cout, LANE)
    HW = H * W
    M = N * HW

    G, TM, M_pad = _choose_tiling(M)                 # big TM, G parallel slices

    # conv2: B images per grid step + G2-way core split
    G2 = 2 if N % 2 == 0 else 1
    Nc = N // G2
    b_cap = max(1, min(8, (4 << 20) // max(HW * Cw_p * 2, 1)))
    B = 1
    for cand in range(1, min(Nc, b_cap) + 1):
        if Nc % cand == 0:
            B = cand
    Wp = _round_up(W + 2, 8)                         # sublane-aligned padded row width

    # ---- layout: NCHW -> NHWC -> (M, C) bf16, channels zero-padded to lane-dense 128
    # TODO(synk): fold the NCHW<->NHWC transpose into the first/last kernels' index_maps.
    x_flat = jnp.transpose(x_nchw, (0, 2, 3, 1)).reshape(M, Cin)
    x_flat = jnp.pad(x_flat, ((0, M_pad - M), (0, Cin_p - Cin))).astype(jnp.bfloat16)

    w1 = jnp.pad(params["w1"], ((0, Cin_p - Cin), (0, Cw_p - width))).astype(jnp.bfloat16)
    w2p = jnp.pad(params["w2"], ((0, 0), (0, 0),
                                 (0, Cw_p - width), (0, Cw_p - width))).astype(jnp.bfloat16)
    w2cat = w2p.reshape(3, 3 * Cw_p, Cw_p)           # kh-major, kw lane-concat order
    w3 = jnp.pad(params["w3"], ((0, Cw_p - width), (0, Cout_p - Cout))).astype(jnp.bfloat16)

    g1 = jnp.pad(params["g1"], (0, Cw_p - width)).reshape(1, Cw_p)
    b1 = jnp.pad(params["b1"], (0, Cw_p - width)).reshape(1, Cw_p)
    g2 = jnp.pad(params["g2"], (0, Cw_p - width)).reshape(1, Cw_p)
    b2 = jnp.pad(params["b2"], (0, Cw_p - width)).reshape(1, Cw_p)
    g3 = jnp.pad(params["g3"], (0, Cout_p - Cout)).reshape(1, Cout_p)
    b3 = jnp.pad(params["b3"], (0, Cout_p - Cout)).reshape(1, Cout_p)

    # ---- conv1 (1x1) + bn1 batch statistics
    y1, s1, ss1 = _conv1_stats(x_flat, w1, G, TM)
    sc1, sh1 = _fold_bn(s1, ss1, g1, b1, M)

    # ---- bn1+relu fused with conv2 (3x3, pad=1) + bn2 statistics (no out1 round trip)
    y1_img = (y1 if M_pad == M else y1[:M]).reshape(N, HW, Cw_p)
    y2_img, s2, ss2 = _bn1_conv2_stats(y1_img, sc1, sh1, w2cat, G2, B, H, W, Wp)
    sc2, sh2 = _fold_bn(s2, ss2, g2, b2, M)

    # ---- bn2+relu fused with conv3 (1x1) + bn3 statistics
    y2 = y2_img.reshape(M, Cw_p)
    if M_pad != M:                                   # rare fallback only
        y2 = jnp.pad(y2, ((0, M_pad - M), (0, 0)))
    y3, s3, ss3 = _bn2_conv3_stats(y2, sc2, sh2, w3, G, TM, M, M_pad != M)
    sc3, sh3 = _fold_bn(s3, ss3, g3, b3, M)

    # ---- bn3 + identity residual + relu
    out = _bn3_add_relu(y3, sc3, sh3, x_flat, TM)    # (M_pad, Cout_p) f32

    y = out[:M, :Cout].reshape(N, H, W, Cout)
    return jnp.transpose(y, (0, 3, 1, 2))            # NHWC -> NCHW


# -------------------------- params + pure-JAX reference ----------------------

def init_params(key, inplanes, planes, base_width=64, groups=1):
    width = int(planes * (base_width / 64.0)) * groups
    out_ch = planes * 4                              # expansion = 4
    assert out_ch == inplanes, "downsample=None requires inplanes == planes*4"
    k1, k2, k3 = jax.random.split(key, 3)
    w1 = jax.random.normal(k1, (inplanes, width), jnp.float32) / jnp.sqrt(float(inplanes))
    w2 = jax.random.normal(k2, (3, 3, width, width), jnp.float32) / jnp.sqrt(float(9 * width))
    w3 = jax.random.normal(k3, (width, out_ch), jnp.float32) / jnp.sqrt(float(width))
    return dict(
        w1=w1, w2=w2, w3=w3,
        g1=jnp.ones((width,), jnp.float32), b1=jnp.zeros((width,), jnp.float32),
        g2=jnp.ones((width,), jnp.float32), b2=jnp.zeros((width,), jnp.float32),
        g3=jnp.ones((out_ch,), jnp.float32), b3=jnp.zeros((out_ch,), jnp.float32),
    )


def reference_forward(x_nchw, params):
    """Pure-JAX f32 reference (training-mode BN) for a numerical sanity check."""
    N, Cin, H, W = x_nchw.shape
    width = params["w1"].shape[1]
    x = jnp.transpose(x_nchw, (0, 2, 3, 1))
    M = N * H * W
    x_flat = x.reshape(M, Cin)

    def bn(y, g, b):
        mean = jnp.mean(y, axis=0, keepdims=True)
        var = jnp.mean((y - mean) ** 2, axis=0, keepdims=True)
        return (y - mean) * jax.lax.rsqrt(var + EPS) * g + b

    out1 = jnp.maximum(bn(x_flat @ params["w1"], params["g1"], params["b1"]), 0.0)
    o1 = out1.reshape(N, H, W, width)
    xp = jnp.pad(o1, ((0, 0), (1, 1), (1, 1), (0, 0)))
    patches = jnp.concatenate(
        [xp[:, kh:kh + H, kw:kw + W, :] for kh in range(3) for kw in range(3)],
        axis=-1).reshape(M, 9 * width)
    out2 = jnp.maximum(bn(patches @ params["w2"].reshape(9 * width, width),
                          params["g2"], params["b2"]), 0.0)
    out3 = jnp.maximum(bn(out2 @ params["w3"], params["g3"], params["b3"]) + x_flat, 0.0)
    return jnp.transpose(out3.reshape(N, H, W, Cin), (0, 3, 1, 2))


if __name__ == "__main__":
    key = jax.random.PRNGKey(0)
    kp, kx = jax.random.split(key)

    planes = 16
    inplanes = planes * 4          # 64, so the identity residual is shape-compatible
    N, H, W = 2, 8, 8

    params = init_params(kp, inplanes, planes)
    x = jax.random.normal(kx, (N, inplanes, H, W), jnp.float32)   # NCHW input

    fwd = jax.jit(bottleneck_forward)
    y = fwd(x, params)
    jax.block_until_ready(y)

    assert y.shape == (N, inplanes, H, W)
    assert bool(jnp.all(jnp.isfinite(y)))
    assert bool(jnp.all(y >= 0.0))   # final ReLU

    # bf16 activation storage -> compare with a mixed abs/rel tolerance.
    y_ref = reference_forward(x, params)
    err = float(jnp.max(jnp.abs(y - y_ref) / (1.0 + jnp.abs(y_ref))))
    assert err < 1e-1, f"mismatch vs reference: max normalized err {err}"

    print("KERNEL_OK")
</pallas_src>

<mosaic_0001>
module attributes {stable_mosaic.version = 11 : i64} {
  func.func @_conv1_stats_kernel(%arg0: i32, %arg1: i32, %arg2: memref<64x128xbf16, #tpu.memory_space<vmem>>, %arg3: memref<128x128xbf16, #tpu.memory_space<vmem>>, %arg4: memref<64x128xbf16, #tpu.memory_space<vmem>>, %arg5: memref<8x128xf32, #tpu.memory_space<vmem>>, %arg6: memref<8x128xf32, #tpu.memory_space<vmem>>) attributes {dimension_semantics = [#tpu.dimension_semantics<parallel>, #tpu.dimension_semantics<arbitrary>], iteration_bounds = array<i64: 2, 1>, scalar_prefetch = 0 : i64, scratch_operands = 0 : i64, tpu.core_type = #tpu.core_type<tc>, window_params = [{transform_indices = @transform_0, window_bounds = array<i64: 64, 128>}, {pipeline_mode = #tpu.pipeline_mode<synchronous>, transform_indices = @transform_1, window_bounds = array<i64: 128, 128>}, {transform_indices = @transform_2, window_bounds = array<i64: 64, 128>}, {transform_indices = @transform_3, window_bounds = array<i64: 8, 128>}, {transform_indices = @transform_4, window_bounds = array<i64: 8, 128>}]} {
    %c0_i32 = arith.constant 0 : i32
    %0 = arith.cmpi eq, %arg1, %c0_i32 : i32
    %1 = arith.extui %0 : i1 to i32
    %c0_i32_0 = arith.constant 0 : i32
    %2 = arith.cmpi ne, %1, %c0_i32_0 : i32
    scf.if %2 {
      %cst_16 = arith.constant 0.000000e+00 : f32
      %19 = vector.broadcast %cst_16 : f32 to vector<8x128xf32>
      %c0_17 = arith.constant 0 : index
      %c0_18 = arith.constant 0 : index
      %20 = vector.load %arg5[%c0_17, %c0_18] : memref<8x128xf32, #tpu.memory_space<vmem>>, vector<8x128xf32>
      tpu.vector_store %arg5[%c0_17, %c0_18], %19 {strides = array<i32>} : memref<8x128xf32, #tpu.memory_space<vmem>>, vector<8x128xf32>,
      %cst_19 = arith.constant 0.000000e+00 : f32
      %21 = vector.broadcast %cst_19 : f32 to vector<8x128xf32>
      %c0_20 = arith.constant 0 : index
      %c0_21 = arith.constant 0 : index
      %22 = vector.load %arg6[%c0_20, %c0_21] : memref<8x128xf32, #tpu.memory_space<vmem>>, vector<8x128xf32>
      tpu.vector_store %arg6[%c0_20, %c0_21], %21 {strides = array<i32>} : memref<8x128xf32, #tpu.memory_space<vmem>>, vector<8x128xf32>,
    } else {
    }
    %c0 = arith.constant 0 : index
    %c0_1 = arith.constant 0 : index
    %3 = vector.load %arg2[%c0, %c0_1] : memref<64x128xbf16, #tpu.memory_space<vmem>>, vector<64x128xbf16>
    %c0_2 = arith.constant 0 : index
    %c0_3 = arith.constant 0 : index
    %4 = vector.load %arg3[%c0_2, %c0_3] : memref<128x128xbf16, #tpu.memory_space<vmem>>, vector<128x128xbf16>
    %cst = arith.constant dense<0.000000e+00> : vector<64x128xf32>
    %5 = tpu.matmul %3, %4, %cst {dimension_numbers = #tpu.dot_dimension_numbers<[1], [0], [0], [1], [0, 0, 1, 1], [], []>} : vector<64x128xbf16>, vector<128x128xbf16>, vector<64x128xf32> -> vector<64x128xf32>
    %6 = arith.truncf %5 : vector<64x128xf32> to vector<64x128xbf16>
    %c0_4 = arith.constant 0 : index
    %c0_5 = arith.constant 0 : index
    %7 = vector.load %arg4[%c0_4, %c0_5] : memref<64x128xbf16, #tpu.memory_space<vmem>>, vector<64x128xbf16>
    tpu.vector_store %arg4[%c0_4, %c0_5], %6 {strides = array<i32>} : memref<64x128xbf16, #tpu.memory_space<vmem>>, vector<64x128xbf16>,
    %c0_6 = arith.constant 0 : index
    %c0_7 = arith.constant 0 : index
    %8 = vector.load %arg5[%c0_6, %c0_7] : memref<8x128xf32, #tpu.memory_space<vmem>>, vector<1x128xf32>
    %cst_8 = arith.constant dense<0.000000e+00> : vector<128xf32>
    %9 = vector.multi_reduction <add>, %5, %cst_8 [0] : vector<64x128xf32> to vector<128xf32>
    %10 = vector.shape_cast %9 : vector<128xf32> to vector<1x128xf32>
    %11 = arith.addf %8, %10 : vector<1x128xf32>
    %c0_9 = arith.constant 0 : index
    %c0_10 = arith.constant 0 : index
    %12 = vector.load %arg5[%c0_9, %c0_10] : memref<8x128xf32, #tpu.memory_space<vmem>>, vector<1x128xf32>
    tpu.vector_store %arg5[%c0_9, %c0_10], %11 {strides = array<i32>} : memref<8x128xf32, #tpu.memory_space<vmem>>, vector<1x128xf32>,
    %c0_11 = arith.constant 0 : index
    %c0_12 = arith.constant 0 : index
    %13 = vector.load %arg6[%c0_11, %c0_12] : memref<8x128xf32, #tpu.memory_space<vmem>>, vector<1x128xf32>
    %14 = arith.mulf %5, %5 : vector<64x128xf32>
    %cst_13 = arith.constant dense<0.000000e+00> : vector<128xf32>
    %15 = vector.multi_reduction <add>, %14, %cst_13 [0] : vector<64x128xf32> to vector<128xf32>
    %16 = vector.shape_cast %15 : vector<128xf32> to vector<1x128xf32>
    %17 = arith.addf %13, %16 : vector<1x128xf32>
    %c0_14 = arith.constant 0 : index
    %c0_15 = arith.constant 0 : index
    %18 = vector.load %arg6[%c0_14, %c0_15] : memref<8x128xf32, #tpu.memory_space<vmem>>, vector<1x128xf32>
    tpu.vector_store %arg6[%c0_14, %c0_15], %17 {strides = array<i32>} : memref<8x128xf32, #tpu.memory_space<vmem>>, vector<1x128xf32>,
    return
  }
  func.func @transform_0(%arg0: i32, %arg1: i32) -> (i32, i32) {
    %c1_i32 = arith.constant 1 : i32
    %0 = arith.muli %arg0, %c1_i32 : i32
    %1 = arith.addi %0, %arg1 : i32
    %c0_i32 = arith.constant 0 : i32
    %c0_i32_0 = arith.constant 0 : i32
    return %1, %c0_i32 : i32, i32
  }
  func.func @transform_1(%arg0: i32, %arg1: i32) -> (i32, i32) {
    %c0_i32 = arith.constant 0 : i32
    %c0_i32_0 = arith.constant 0 : i32
    %c0_i32_1 = arith.constant 0 : i32
    return %c0_i32, %c0_i32_0 : i32, i32
  }
  func.func @transform_2(%arg0: i32, %arg1: i32) -> (i32, i32) {
    %c1_i32 = arith.constant 1 : i32
    %0 = arith.muli %arg0, %c1_i32 : i32
    %1 = arith.addi %0, %arg1 : i32
    %c0_i32 = arith.constant 0 : i32
    %c0_i32_0 = arith.constant 0 : i32
    return %1, %c0_i32 : i32, i32
  }
  func.func @transform_3(%arg0: i32, %arg1: i32) -> (i32, i32) {
    %c0_i32 = arith.constant 0 : i32
    %c0_i32_0 = arith.constant 0 : i32
    return %arg0, %c0_i32 : i32, i32
  }
  func.func @transform_4(%arg0: i32, %arg1: i32) -> (i32, i32) {
    %c0_i32 = arith.constant 0 : i32
    %c0_i32_0 = arith.constant 0 : i32
    return %arg0, %c0_i32 : i32, i32
  }
}

module attributes {stable_mosaic.version = 11 : i64} {
  func.func @_bn1_conv2_stats_kernel(%arg0: i32, %arg1: i32, %arg2: memref<1x64x128xbf16, #tpu.memory_space<vmem>>, %arg3: memref<1x128xf32, #tpu.memory_space<vmem>>, %arg4: memref<1x128xf32, #tpu.memory_space<vmem>>, %arg5: memref<3x384x128xbf16, #tpu.memory_space<vmem>>, %arg6: memref<1x64x128xbf16, #tpu.memory_space<vmem>>, %arg7: memref<8x128xf32, #tpu.memory_space<vmem>>, %arg8: memref<8x128xf32, #tpu.memory_space<vmem>>, %arg9: memref<12x16x128xbf16, #tpu.memory_space<vmem>>) attributes {dimension_semantics = [#tpu.dimension_semantics<parallel>, #tpu.dimension_semantics<arbitrary>], iteration_bounds = array<i64: 2, 1>, scalar_prefetch = 0 : i64, scratch_operands = 1 : i64, tpu.core_type = #tpu.core_type<tc>, window_params = [{transform_indices = @transform_0, window_bounds = array<i64: 1, 64, 128>}, {pipeline_mode = #tpu.pipeline_mode<synchronous>, transform_indices = @transform_1, window_bounds = array<i64: 1, 128>}, {pipeline_mode = #tpu.pipeline_mode<synchronous>, transform_indices = @transform_2, window_bounds = array<i64: 1, 128>}, {pipeline_mode = #tpu.pipeline_mode<synchronous>, transform_indices = @transform_3, window_bounds = array<i64: 3, 384, 128>}, {transform_indices = @transform_4, window_bounds = array<i64: 1, 64, 128>}, {transform_indices = @transform_5, window_bounds = array<i64: 8, 128>}, {transform_indices = @transform_6, window_bounds = array<i64: 8, 128>}]} {
    %c0_i32 = arith.constant 0 : i32
    %0 = arith.cmpi eq, %arg1, %c0_i32 : i32
    %1 = arith.extui %0 : i1 to i32
    %c0_i32_0 = arith.constant 0 : i32
    %2 = arith.cmpi ne, %1, %c0_i32_0 : i32
    scf.if %2 {
      %cst_37 = arith.constant 0.000000e+00 : f32
      %57 = vector.broadcast %cst_37 : f32 to vector<8x128xf32>
      %c0_38 = arith.constant 0 : index
      %c0_39 = arith.constant 0 : index
      %58 = vector.load %arg7[%c0_38, %c0_39] : memref<8x128xf32, #tpu.memory_space<vmem>>, vector<8x128xf32>
      tpu.vector_store %arg7[%c0_38, %c0_39], %57 {strides = array<i32>} : memref<8x128xf32, #tpu.memory_space<vmem>>, vector<8x128xf32>,
      %cst_40 = arith.constant 0.000000e+00 : f32
      %59 = vector.broadcast %cst_40 : f32 to vector<8x128xf32>
      %c0_41 = arith.constant 0 : index
      %c0_42 = arith.constant 0 : index
      %60 = vector.load %arg8[%c0_41, %c0_42] : memref<8x128xf32, #tpu.memory_space<vmem>>, vector<8x128xf32>
      tpu.vector_store %arg8[%c0_41, %c0_42], %59 {strides = array<i32>} : memref<8x128xf32, #tpu.memory_space<vmem>>, vector<8x128xf32>,
      %cst_43 = arith.constant 0.000000e+00 : bf16
      %61 = vector.broadcast %cst_43 : bf16 to vector<12x16x128xbf16>
      %c0_44 = arith.constant 0 : index
      %c0_45 = arith.constant 0 : index
      %c0_46 = arith.constant 0 : index
      %62 = vector.load %arg9[%c0_44, %c0_45, %c0_46] : memref<12x16x128xbf16, #tpu.memory_space<vmem>>, vector<12x16x128xbf16>
      tpu.vector_store %arg9[%c0_44, %c0_45, %c0_46], %61 {strides = array<i32>} : memref<12x16x128xbf16, #tpu.memory_space<vmem>>, vector<12x16x128xbf16>,
    } else {
    }
    %c0 = arith.constant 0 : index
    %c0_1 = arith.constant 0 : index
    %c0_2 = arith.constant 0 : index
    %3 = vector.load %arg2[%c0, %c0_1, %c0_2] : memref<1x64x128xbf16, #tpu.memory_space<vmem>>, vector<1x64x128xbf16>
    %4 = vector.shape_cast %3 : vector<1x64x128xbf16> to vector<64x128xbf16>
    %c0_3 = arith.constant 0 : index
    %c0_4 = arith.constant 0 : index
    %5 = vector.load %arg3[%c0_3, %c0_4] : memref<1x128xf32, #tpu.memory_space<vmem>>, vector<1x128xf32>
    %6 = arith.extf %4 : vector<64x128xbf16> to vector<64x128xf32>
    %7 = vector.broadcast %5 : vector<1x128xf32> to vector<64x128xf32>
    %8 = arith.mulf %6, %7 : vector<64x128xf32>
    %c0_5 = arith.constant 0 : index
    %c0_6 = arith.constant 0 : index
    %9 = vector.load %arg4[%c0_5, %c0_6] : memref<1x128xf32, #tpu.memory_space<vmem>>, vector<1x128xf32>
    %10 = vector.broadcast %9 : vector<1x128xf32> to vector<64x128xf32>
    %11 = arith.addf %8, %10 : vector<64x128xf32>
    %cst = arith.constant 0.000000e+00 : f32
    %12 = vector.broadcast %cst : f32 to vector<64x128xf32>
    %13 = arith.maximumf %11, %12 : vector<64x128xf32>
    %14 = arith.truncf %13 : vector<64x128xf32> to vector<64x128xbf16>
    %15 = vector.shape_cast %14 : vector<64x128xbf16> to vector<8x8x128xbf16>
    %c2 = arith.constant 2 : index
    %c0_7 = arith.constant 0 : index
    %c0_8 = arith.constant 0 : index
    %16 = vector.load %arg9[%c2, %c0_7, %c0_8] : memref<12x16x128xbf16, #tpu.memory_space<vmem>>, vector<8x8x128xbf16>
    tpu.vector_store %arg9[%c2, %c0_7, %c0_8], %15 {strides = array<i32>} : memref<12x16x128xbf16, #tpu.memory_space<vmem>>, vector<8x8x128xbf16>,
    %c0_9 = arith.constant 0 : index
    %c0_10 = arith.constant 0 : index
    %c0_11 = arith.constant 0 : index
    %17 = vector.load %arg9[%c0_9, %c0_10, %c0_11] : memref<12x16x128xbf16, #tpu.memory_space<vmem>>, vector<12x16x128xbf16>
    %18 = vector.shape_cast %17 : vector<12x16x128xbf16> to vector<192x128xbf16>
    %19 = vector.extract_strided_slice %18 {offsets = [15, 0], sizes = [160, 128], strides = [1, 1]} : vector<192x128xbf16> to vector<160x128xbf16>
    %20 = vector.extract_strided_slice %18 {offsets = [16, 0], sizes = [160, 128], strides = [1, 1]} : vector<192x128xbf16> to vector<160x128xbf16>
    %21 = vector.extract_strided_slice %18 {offsets = [17, 0], sizes = [160, 128], strides = [1, 1]} : vector<192x128xbf16> to vector<160x128xbf16>
    %22 = tpu.concatenate %19, %20, %21 in 1 : vector<160x128xbf16>, vector<160x128xbf16>, vector<160x128xbf16> -> vector<160x384xbf16>
    %cst_12 = arith.constant 0.000000e+00 : f32
    %23 = vector.broadcast %cst_12 : f32 to vector<128x128xf32>
    %24 = vector.extract_strided_slice %22 {offsets = [0, 0], sizes = [128, 384], strides = [1, 1]} : vector<160x384xbf16> to vector<128x384xbf16>
    %c0_13 = arith.constant 0 : index
    %c0_14 = arith.constant 0 : index
    %c0_15 = arith.constant 0 : index
    %25 = vector.load %arg5[%c0_13, %c0_14, %c0_15] : memref<3x384x128xbf16, #tpu.memory_space<vmem>>, vector<1x384x128xbf16>
    %26 = vector.shape_cast %25 : vector<1x384x128xbf16> to vector<384x128xbf16>
    %cst_16 = arith.constant dense<0.000000e+00> : vector<128x128xf32>
    %27 = tpu.matmul %24, %26, %cst_16 {dimension_numbers = #tpu.dot_dimension_numbers<[1], [0], [0], [1], [0, 0, 1, 1], [], []>} : vector<128x384xbf16>, vector<384x128xbf16>, vector<128x128xf32> -> vector<128x128xf32>
    %28 = arith.addf %23, %27 : vector<128x128xf32>
    %29 = vector.extract_strided_slice %22 {offsets = [16, 0], sizes = [128, 384], strides = [1, 1]} : vector<160x384xbf16> to vector<128x384xbf16>
    %c1 = arith.constant 1 : index
    %c0_17 = arith.constant 0 : index
    %c0_18 = arith.constant 0 : index
    %30 = vector.load %arg5[%c1, %c0_17, %c0_18] : memref<3x384x128xbf16, #tpu.memory_space<vmem>>, vector<1x384x128xbf16>
    %31 = vector.shape_cast %30 : vector<1x384x128xbf16> to vector<384x128xbf16>
    %cst_19 = arith.constant dense<0.000000e+00> : vector<128x128xf32>
    %32 = tpu.matmul %29, %31, %cst_19 {dimension_numbers = #tpu.dot_dimension_numbers<[1], [0], [0], [1], [0, 0, 1, 1], [], []>} : vector<128x384xbf16>, vector<384x128xbf16>, vector<128x128xf32> -> vector<128x128xf32>
    %33 = arith.addf %28, %32 : vector<128x128xf32>
    %34 = vector.extract_strided_slice %22 {offsets = [32, 0], sizes = [128, 384], strides = [1, 1]} : vector<160x384xbf16> to vector<128x384xbf16>
    %c2_20 = arith.constant 2 : index
    %c0_21 = arith.constant 0 : index
    %c0_22 = arith.constant 0 : index
    %35 = vector.load %arg5[%c2_20, %c0_21, %c0_22] : memref<3x384x128xbf16, #tpu.memory_space<vmem>>, vector<1x384x128xbf16>
    %36 = vector.shape_cast %35 : vector<1x384x128xbf16> to vector<384x128xbf16>
    %cst_23 = arith.constant dense<0.000000e+00> : vector<128x128xf32>
    %37 = tpu.matmul %34, %36, %cst_23 {dimension_numbers = #tpu.dot_dimension_numbers<[1], [0], [0], [1], [0, 0, 1, 1], [], []>} : vector<128x384xbf16>, vector<384x128xbf16>, vector<128x128xf32> -> vector<128x128xf32>
    %38 = arith.addf %33, %37 : vector<128x128xf32>
    %39 = vector.shape_cast %38 : vector<128x128xf32> to vector<8x16x128xf32>
    %40 = vector.extract_strided_slice %39 {offsets = [0, 0, 0], sizes = [8, 8, 128], strides = [1, 1, 1]} : vector<8x16x128xf32> to vector<8x8x128xf32>
    %41 = vector.shape_cast %40 : vector<8x8x128xf32> to vector<64x128xf32>
    %42 = arith.truncf %41 : vector<64x128xf32> to vector<64x128xbf16>
    %c0_24 = arith.constant 0 : index
    %c0_25 = arith.constant 0 : index
    %c0_26 = arith.constant 0 : index
    %43 = vector.load %arg6[%c0_24, %c0_25, %c0_26] : memref<1x64x128xbf16, #tpu.memory_space<vmem>>, vector<1x64x128xbf16>
    %44 = vector.shape_cast %43 : vector<1x64x128xbf16> to vector<64x128xbf16>
    %45 = vector.shape_cast %42 : vector<64x128xbf16> to vector<1x64x128xbf16>
    tpu.vector_store %arg6[%c0_24, %c0_25, %c0_26], %45 {strides = array<i32>} : memref<1x64x128xbf16, #tpu.memory_space<vmem>>, vector<1x64x128xbf16>,
    %c0_27 = arith.constant 0 : index
    %c0_28 = arith.constant 0 : index
    %46 = vector.load %arg7[%c0_27, %c0_28] : memref<8x128xf32, #tpu.memory_space<vmem>>, vector<1x128xf32>
    %cst_29 = arith.constant dense<0.000000e+00> : vector<128xf32>
    %47 = vector.multi_reduction <add>, %41, %cst_29 [0] : vector<64x128xf32> to vector<128xf32>
    %48 = vector.shape_cast %47 : vector<128xf32> to vector<1x128xf32>
    %49 = arith.addf %46, %48 : vector<1x128xf32>
    %c0_30 = arith.constant 0 : index
    %c0_31 = arith.constant 0 : index
    %50 = vector.load %arg7[%c0_30, %c0_31] : memref<8x128xf32, #tpu.memory_space<vmem>>, vector<1x128xf32>
    tpu.vector_store %arg7[%c0_30, %c0_31], %49 {strides = array<i32>} : memref<8x128xf32, #tpu.memory_space<vmem>>, vector<1x128xf32>,
    %c0_32 = arith.constant 0 : index
    %c0_33 = arith.constant 0 : index
    %51 = vector.load %arg8[%c0_32, %c0_33] : memref<8x128xf32, #tpu.memory_space<vmem>>, vector<1x128xf32>
    %52 = arith.mulf %41, %41 : vector<64x128xf32>
    %cst_34 = arith.constant dense<0.000000e+00> : vector<128xf32>
    %53 = vector.multi_reduction <add>, %52, %cst_34 [0] : vector<64x128xf32> to vector<128xf32>
    %54 = vector.shape_cast %53 : vector<128xf32> to vector<1x128xf32>
    %55 = arith.addf %51, %54 : vector<1x128xf32>
    %c0_35 = arith.constant 0 : index
    %c0_36 = arith.constant 0 : index
    %56 = vector.load %arg8[%c0_35, %c0_36] : memref<8x128xf32, #tpu.memory_space<vmem>>, vector<1x128xf32>
    tpu.vector_store %arg8[%c0_35, %c0_36], %55 {strides = array<i32>} : memref<8x128xf32, #tpu.memory_space<vmem>>, vector<1x128xf32>,
    return
  }
  func.func @transform_0(%arg0: i32, %arg1: i32) -> (i32, i32, i32) {
    %c1_i32 = arith.constant 1 : i32
    %0 = arith.muli %arg0, %c1_i32 : i32
    %1 = arith.addi %0, %arg1 : i32
    %c0_i32 = arith.constant 0 : i32
    %c0_i32_0 = arith.constant 0 : i32
    %c0_i32_1 = arith.constant 0 : i32
    return %1, %c0_i32, %c0_i32_0 : i32, i32, i32
  }
  func.func @transform_1(%arg0: i32, %arg1: i32) -> (i32, i32) {
    %c0_i32 = arith.constant 0 : i32
    %c0_i32_0 = arith.constant 0 : i32
    %c0_i32_1 = arith.constant 0 : i32
    return %c0_i32, %c0_i32_0 : i32, i32
  }
  func.func @transform_2(%arg0: i32, %arg1: i32) -> (i32, i32) {
    %c0_i32 = arith.constant 0 : i32
    %c0_i32_0 = arith.constant 0 : i32
    %c0_i32_1 = arith.constant 0 : i32
    return %c0_i32, %c0_i32_0 : i32, i32
  }
  func.func @transform_3(%arg0: i32, %arg1: i32) -> (i32, i32, i32) {
    %c0_i32 = arith.constant 0 : i32
    %c0_i32_0 = arith.constant 0 : i32
    %c0_i32_1 = arith.constant 0 : i32
    %c0_i32_2 = arith.constant 0 : i32
    return %c0_i32, %c0_i32_0, %c0_i32_1 : i32, i32, i32
  }
  func.func @transform_4(%arg0: i32, %arg1: i32) -> (i32, i32, i32) {
    %c1_i32 = arith.constant 1 : i32
    %0 = arith.muli %arg0, %c1_i32 : i32
    %1 = arith.addi %0, %arg1 : i32
    %c0_i32 = arith.constant 0 : i32
    %c0_i32_0 = arith.constant 0 : i32
    %c0_i32_1 = arith.constant 0 : i32
    return %1, %c0_i32, %c0_i32_0 : i32, i32, i32
  }
  func.func @transform_5(%arg0: i32, %arg1: i32) -> (i32, i32) {
    %c0_i32 = arith.constant 0 : i32
    %c0_i32_0 = arith.constant 0 : i32
    return %arg0, %c0_i32 : i32, i32
  }
  func.func @transform_6(%arg0: i32, %arg1: i32) -> (i32, i32) {
    %c0_i32 = arith.constant 0 : i32
    %c0_i32_0 = arith.constant 0 : i32
    return %arg0, %c0_i32 : i32, i32
  }
}

module attributes {stable_mosaic.version = 11 : i64} {
  func.func @_bn2_conv3_stats_kernel(%arg0: i32, %arg1: i32, %arg2: memref<64x128xbf16, #tpu.memory_space<vmem>>, %arg3: memref<1x128xf32, #tpu.memory_space<vmem>>, %arg4: memref<1x128xf32, #tpu.memory_space<vmem>>, %arg5: memref<128x128xbf16, #tpu.memory_space<vmem>>, %arg6: memref<64x128xbf16, #tpu.memory_space<vmem>>, %arg7: memref<8x128xf32, #tpu.memory_space<vmem>>, %arg8: memref<8x128xf32, #tpu.memory_space<vmem>>) attributes {dimension_semantics = [#tpu.dimension_semantics<parallel>, #tpu.dimension_semantics<arbitrary>], iteration_bounds = array<i64: 2, 1>, scalar_prefetch = 0 : i64, scratch_operands = 0 : i64, tpu.core_type = #tpu.core_type<tc>, window_params = [{transform_indices = @transform_0, window_bounds = array<i64: 64, 128>}, {pipeline_mode = #tpu.pipeline_mode<synchronous>, transform_indices = @transform_1, window_bounds = array<i64: 1, 128>}, {pipeline_mode = #tpu.pipeline_mode<synchronous>, transform_indices = @transform_2, window_bounds = array<i64: 1, 128>}, {pipeline_mode = #tpu.pipeline_mode<synchronous>, transform_indices = @transform_3, window_bounds = array<i64: 128, 128>}, {transform_indices = @transform_4, window_bounds = array<i64: 64, 128>}, {transform_indices = @transform_5, window_bounds = array<i64: 8, 128>}, {transform_indices = @transform_6, window_bounds = array<i64: 8, 128>}]} {
    %c0_i32 = arith.constant 0 : i32
    %0 = arith.cmpi eq, %arg1, %c0_i32 : i32
    %1 = arith.extui %0 : i1 to i32
    %c0_i32_0 = arith.constant 0 : i32
    %2 = arith.cmpi ne, %1, %c0_i32_0 : i32
    scf.if %2 {
      %cst_21 = arith.constant 0.000000e+00 : f32
      %29 = vector.broadcast %cst_21 : f32 to vector<8x128xf32>
      %c0_22 = arith.constant 0 : index
      %c0_23 = arith.constant 0 : index
      %30 = vector.load %arg7[%c0_22, %c0_23] : memref<8x128xf32, #tpu.memory_space<vmem>>, vector<8x128xf32>
      tpu.vector_store %arg7[%c0_22, %c0_23], %29 {strides = array<i32>} : memref<8x128xf32, #tpu.memory_space<vmem>>, vector<8x128xf32>,
      %cst_24 = arith.constant 0.000000e+00 : f32
      %31 = vector.broadcast %cst_24 : f32 to vector<8x128xf32>
      %c0_25 = arith.constant 0 : index
      %c0_26 = arith.constant 0 : index
      %32 = vector.load %arg8[%c0_25, %c0_26] : memref<8x128xf32, #tpu.memory_space<vmem>>, vector<8x128xf32>
      tpu.vector_store %arg8[%c0_25, %c0_26], %31 {strides = array<i32>} : memref<8x128xf32, #tpu.memory_space<vmem>>, vector<8x128xf32>,
    } else {
    }
    %c0 = arith.constant 0 : index
    %c0_1 = arith.constant 0 : index
    %3 = vector.load %arg2[%c0, %c0_1] : memref<64x128xbf16, #tpu.memory_space<vmem>>, vector<64x128xbf16>
    %c0_2 = arith.constant 0 : index
    %c0_3 = arith.constant 0 : index
    %4 = vector.load %arg3[%c0_2, %c0_3] : memref<1x128xf32, #tpu.memory_space<vmem>>, vector<1x128xf32>
    %5 = arith.extf %3 : vector<64x128xbf16> to vector<64x128xf32>
    %6 = vector.broadcast %4 : vector<1x128xf32> to vector<64x128xf32>
    %7 = arith.mulf %5, %6 : vector<64x128xf32>
    %c0_4 = arith.constant 0 : index
    %c0_5 = arith.constant 0 : index
    %8 = vector.load %arg4[%c0_4, %c0_5] : memref<1x128xf32, #tpu.memory_space<vmem>>, vector<1x128xf32>
    %9 = vector.broadcast %8 : vector<1x128xf32> to vector<64x128xf32>
    %10 = arith.addf %7, %9 : vector<64x128xf32>
    %cst = arith.constant 0.000000e+00 : f32
    %11 = vector.broadcast %cst : f32 to vector<64x128xf32>
    %12 = arith.maximumf %10, %11 : vector<64x128xf32>
    %13 = arith.truncf %12 : vector<64x128xf32> to vector<64x128xbf16>
    %c0_6 = arith.constant 0 : index
    %c0_7 = arith.constant 0 : index
    %14 = vector.load %arg5[%c0_6, %c0_7] : memref<128x128xbf16, #tpu.memory_space<vmem>>, vector<128x128xbf16>
    %cst_8 = arith.constant dense<0.000000e+00> : vector<64x128xf32>
    %15 = tpu.matmul %13, %14, %cst_8 {dimension_numbers = #tpu.dot_dimension_numbers<[1], [0], [0], [1], [0, 0, 1, 1], [], []>} : vector<64x128xbf16>, vector<128x128xbf16>, vector<64x128xf32> -> vector<64x128xf32>
    %16 = arith.truncf %15 : vector<64x128xf32> to vector<64x128xbf16>
    %c0_9 = arith.constant 0 : index
    %c0_10 = arith.constant 0 : index
    %17 = vector.load %arg6[%c0_9, %c0_10] : memref<64x128xbf16, #tpu.memory_space<vmem>>, vector<64x128xbf16>
    tpu.vector_store %arg6[%c0_9, %c0_10], %16 {strides = array<i32>} : memref<64x128xbf16, #tpu.memory_space<vmem>>, vector<64x128xbf16>,
    %c0_11 = arith.constant 0 : index
    %c0_12 = arith.constant 0 : index
    %18 = vector.load %arg7[%c0_11, %c0_12] : memref<8x128xf32, #tpu.memory_space<vmem>>, vector<1x128xf32>
    %cst_13 = arith.constant dense<0.000000e+00> : vector<128xf32>
    %19 = vector.multi_reduction <add>, %15, %cst_13 [0] : vector<64x128xf32> to vector<128xf32>
    %20 = vector.shape_cast %19 : vector<128xf32> to vector<1x128xf32>
    %21 = arith.addf %18, %20 : vector<1x128xf32>
    %c0_14 = arith.constant 0 : index
    %c0_15 = arith.constant 0 : index
    %22 = vector.load %arg7[%c0_14, %c0_15] : memref<8x128xf32, #tpu.memory_space<vmem>>, vector<1x128xf32>
    tpu.vector_store %arg7[%c0_14, %c0_15], %21 {strides = array<i32>} : memref<8x128xf32, #tpu.memory_space<vmem>>, vector<1x128xf32>,
    %c0_16 = arith.constant 0 : index
    %c0_17 = arith.constant 0 : index
    %23 = vector.load %arg8[%c0_16, %c0_17] : memref<8x128xf32, #tpu.memory_space<vmem>>, vector<1x128xf32>
    %24 = arith.mulf %15, %15 : vector<64x128xf32>
    %cst_18 = arith.constant dense<0.000000e+00> : vector<128xf32>
    %25 = vector.multi_reduction <add>, %24, %cst_18 [0] : vector<64x128xf32> to vector<128xf32>
    %26 = vector.shape_cast %25 : vector<128xf32> to vector<1x128xf32>
    %27 = arith.addf %23, %26 : vector<1x128xf32>
    %c0_19 = arith.constant 0 : index
    %c0_20 = arith.constant 0 : index
    %28 = vector.load %arg8[%c0_19, %c0_20] : memref<8x128xf32, #tpu.memory_space<vmem>>, vector<1x128xf32>
    tpu.vector_store %arg8[%c0_19, %c0_20], %27 {strides = array<i32>} : memref<8x128xf32, #tpu.memory_space<vmem>>, vector<1x128xf32>,
    return
  }
  func.func @transform_0(%arg0: i32, %arg1: i32) -> (i32, i32) {
    %c1_i32 = arith.constant 1 : i32
    %0 = arith.muli %arg0, %c1_i32 : i32
    %1 = arith.addi %0, %arg1 : i32
    %c0_i32 = arith.constant 0 : i32
    %c0_i32_0 = arith.constant 0 : i32
    return %1, %c0_i32 : i32, i32
  }
  func.func @transform_1(%arg0: i32, %arg1: i32) -> (i32, i32) {
    %c0_i32 = arith.constant 0 : i32
    %c0_i32_0 = arith.constant 0 : i32
    %c0_i32_1 = arith.constant 0 : i32
    return %c0_i32, %c0_i32_0 : i32, i32
  }
  func.func @transform_2(%arg0: i32, %arg1: i32) -> (i32, i32) {
    %c0_i32 = arith.constant 0 : i32
    %c0_i32_0 = arith.constant 0 : i32
    %c0_i32_1 = arith.constant 0 : i32
    return %c0_i32, %c0_i32_0 : i32, i32
  }
  func.func @transform_3(%arg0: i32, %arg1: i32) -> (i32, i32) {
    %c0_i32 = arith.constant 0 : i32
    %c0_i32_0 = arith.constant 0 : i32
    %c0_i32_1 = arith.constant 0 : i32
    return %c0_i32, %c0_i32_0 : i32, i32
  }
  func.func @transform_4(%arg0: i32, %arg1: i32) -> (i32, i32) {
    %c1_i32 = arith.constant 1 : i32
    %0 = arith.muli %arg0, %c1_i32 : i32
    %1 = arith.addi %0, %arg1 : i32
    %c0_i32 = arith.constant 0 : i32
    %c0_i32_0 = arith.constant 0 : i32
    return %1, %c0_i32 : i32, i32
  }
  func.func @transform_5(%arg0: i32, %arg1: i32) -> (i32, i32) {
    %c0_i32 = arith.constant 0 : i32
    %c0_i32_0 = arith.constant 0 : i32
    return %arg0, %c0_i32 : i32, i32
  }
  func.func @transform_6(%arg0: i32, %arg1: i32) -> (i32, i32) {
    %c0_i32 = arith.constant 0 : i32
    %c0_i32_0 = arith.constant 0 : i32
    return %arg0, %c0_i32 : i32, i32
  }
}

module attributes {stable_mosaic.version = 11 : i64} {
  func.func @_bn3_add_relu_kernel(%arg0: i32, %arg1: memref<64x128xbf16, #tpu.memory_space<vmem>>, %arg2: memref<1x128xf32, #tpu.memory_space<vmem>>, %arg3: memref<1x128xf32, #tpu.memory_space<vmem>>, %arg4: memref<64x128xbf16, #tpu.memory_space<vmem>>, %arg5: memref<64x128xf32, #tpu.memory_space<vmem>>) attributes {dimension_semantics = [#tpu.dimension_semantics<parallel>], iteration_bounds = array<i64: 2>, scalar_prefetch = 0 : i64, scratch_operands = 0 : i64, tpu.core_type = #tpu.core_type<tc>, window_params = [{transform_indices = @transform_0, window_bounds = array<i64: 64, 128>}, {pipeline_mode = #tpu.pipeline_mode<synchronous>, transform_indices = @transform_1, window_bounds = array<i64: 1, 128>}, {pipeline_mode = #tpu.pipeline_mode<synchronous>, transform_indices = @transform_2, window_bounds = array<i64: 1, 128>}, {transform_indices = @transform_3, window_bounds = array<i64: 64, 128>}, {transform_indices = @transform_4, window_bounds = array<i64: 64, 128>}]} {
    %c0 = arith.constant 0 : index
    %c0_0 = arith.constant 0 : index
    %0 = vector.load %arg1[%c0, %c0_0] : memref<64x128xbf16, #tpu.memory_space<vmem>>, vector<64x128xbf16>
    %c0_1 = arith.constant 0 : index
    %c0_2 = arith.constant 0 : index
    %1 = vector.load %arg2[%c0_1, %c0_2] : memref<1x128xf32, #tpu.memory_space<vmem>>, vector<1x128xf32>
    %2 = arith.extf %0 : vector<64x128xbf16> to vector<64x128xf32>
    %3 = vector.broadcast %1 : vector<1x128xf32> to vector<64x128xf32>
    %4 = arith.mulf %2, %3 : vector<64x128xf32>
    %c0_3 = arith.constant 0 : index
    %c0_4 = arith.constant 0 : index
    %5 = vector.load %arg3[%c0_3, %c0_4] : memref<1x128xf32, #tpu.memory_space<vmem>>, vector<1x128xf32>
    %6 = vector.broadcast %5 : vector<1x128xf32> to vector<64x128xf32>
    %7 = arith.addf %4, %6 : vector<64x128xf32>
    %c0_5 = arith.constant 0 : index
    %c0_6 = arith.constant 0 : index
    %8 = vector.load %arg4[%c0_5, %c0_6] : memref<64x128xbf16, #tpu.memory_space<vmem>>, vector<64x128xbf16>
    %9 = arith.extf %8 : vector<64x128xbf16> to vector<64x128xf32>
    %10 = arith.addf %7, %9 : vector<64x128xf32>
    %cst = arith.constant 0.000000e+00 : f32
    %11 = vector.broadcast %cst : f32 to vector<64x128xf32>
    %12 = arith.maximumf %10, %11 : vector<64x128xf32>
    %c0_7 = arith.constant 0 : index
    %c0_8 = arith.constant 0 : index
    %13 = vector.load %arg5[%c0_7, %c0_8] : memref<64x128xf32, #tpu.memory_space<vmem>>, vector<64x128xf32>
    tpu.vector_store %arg5[%c0_7, %c0_8], %12 {strides = array<i32>} : memref<64x128xf32, #tpu.memory_space<vmem>>, vector<64x128xf32>,
    return
  }
  func.func @transform_0(%arg0: i32) -> (i32, i32) {
    %c0_i32 = arith.constant 0 : i32
    %c0_i32_0 = arith.constant 0 : i32
    return %arg0, %c0_i32 : i32, i32
  }
  func.func @transform_1(%arg0: i32) -> (i32, i32) {
    %c0_i32 = arith.constant 0 : i32
    %c0_i32_0 = arith.constant 0 : i32
    %c0_i32_1 = arith.constant 0 : i32
    return %c0_i32, %c0_i32_0 : i32, i32
  }
  func.func @transform_2(%arg0: i32) -> (i32, i32) {
    %c0_i32 = arith.constant 0 : i32
    %c0_i32_0 = arith.constant 0 : i32
    %c0_i32_1 = arith.constant 0 : i32
    return %c0_i32, %c0_i32_0 : i32, i32
  }
  func.func @transform_3(%arg0: i32) -> (i32, i32) {
    %c0_i32 = arith.constant 0 : i32
    %c0_i32_0 = arith.constant 0 : i32
    return %arg0, %c0_i32 : i32, i32
  }
  func.func @transform_4(%arg0: i32) -> (i32, i32) {
    %c0_i32 = arith.constant 0 : i32
    %c0_i32_0 = arith.constant 0 : i32
    return %arg0, %c0_i32 : i32, i32
  }
}

</mosaic_0001>

<llo_original>
// kernel: bottleneck_forward.7
$region0: #{bottleneck_forward.7}
  #allocation0 [shape = 'u32[]', space=smem, size = 0x4, offset = 0x4, fixed_abs, tag = 'smem constant byte address 0x4 - core index']
  #allocation1 [shape = 'u32[144,128]{1,0:T(1,128)}', space=vmem, size = 0x12000, scoped, tag = 'internal scratch']
  %s0 = inlined_call_operand.vmem [shape: bf16[128,128], index: 0, kind: input, shape index: {}]
  %s1 = inlined_call_operand.vmem [shape: f32[1,128], index: 1, kind: input, shape index: {}]
  %s2 = inlined_call_operand.vmem [shape: f32[1,128], index: 2, kind: input, shape index: {}]
  %s3 = inlined_call_operand.vmem [shape: bf16[128,128], index: 3, kind: input, shape index: {}]
  %s4 = inlined_call_operand.hbm [shape: f32[128,128], index: 4, kind: output, shape index: {}]
  %s5 = sld [smem:[#allocation0]]
  $region49: #{bottleneck_forward.7} parent=0
    _
  %s7 = ssub.s32 1, %s5
  %s8 = scalar_select 0, %s7, %s5
  $region1: #{bottleneck_forward.7} parent=0
    #allocation2 [shape = 'u8[65536]{0}', space=vmem, size = 0x10000, scoped, tag = 'output window, operand 0']
    #allocation3 [shape = 's32[2]{0}', space=sflag, size = 0x8, scoped, tag = 'scoped memory for bottleneck_forward.7']
    %9 = vsyncpa [#allocation3], 0
    %s10 = scalar_lea.sflag [#allocation3], 1
    %11 = vsyncpa %s10, 0
    loop: start=0, step=1, limit=4
    $region2: #{bottleneck_forward.7} parent=1 // loop_pre_header
      _
    $region3: #{bottleneck_forward.7} parent=1 // loop_header
      %s13 = sphi 0, %s17
      %p14 = scmp.ge.s32.totalorder %s13, 4
      %s23 = sphi 0, %s25
      %s26 = sphi 0, %s23
      %s27 = sphi 0, %s26
      %s43 = sphi 0, %s27
      %s47 = sphi 0, %s47
      %s49 = sphi 0, %s47
      %s50 = sphi 0, %s49
      %s64 = sphi 0, %s50
      %s68 = sphi 0, %s68
      %s70 = sphi 0, %s68
      %s71 = sphi 0, %s70
      %s85 = sphi 0, %s71
      %s91 = sphi 0, %s93
      %s94 = sphi 0, %s91
      %s95 = sphi 0, %s94
      %s111 = sphi 0, %s95
      %s117 = sphi 0, %s119
      %s120 = sphi 0, %s117
      %s121 = sphi 0, %s120
      %s137 = sphi 0, %s121
    $region4: #{bottleneck_forward.7} parent=1 // loop_header_branch
      %16 = sbr.rel (%p14) target = $region8
    $region5: #{bottleneck_forward.7} parent=1 // loop_body
      %s18 = ssub.s32 %s13, 1
      %s19 = ssub.s32 %s13, 2
      %s20 = sadd.s32 %s13, 1
      %s21 = ssub.s32 %s13, %s20
      %p22 = scmp.eq.s32.totalorder %s21, 0
      %s24 = sadd.s32 %s23, 1
      %s25 = scalar_select %p22, %s23, %s24
      %p28 = pneg %p22
      %p29 = scmp.eq.s32.totalorder %s13, 1
      %p30 = por %p28, %p29
      %p31 = scmp.ne.s32.totalorder %s23, %s26
      %p32 = scmp.eq.s32.totalorder %s13, 0
      %p33 = por %p31, %p32
      %p34 = scmp.ne.s32.totalorder %s23, %s26
      %p35 = scmp.eq.s32.totalorder %s18, 1
      %p36 = por %p34, %p35
      %p37 = scmp.ne.s32.totalorder %s26, %s27
      %p38 = scmp.eq.s32.totalorder %s18, 0
      %p39 = por %p37, %p38
      %p40 = scmp.ne.s32.totalorder %s26, %s27
      %p41 = scmp.eq.s32.totalorder %s19, 1
      %p42 = por %p40, %p41
      %p44 = scmp.ne.s32.totalorder %s27, %s43
      %p45 = scmp.eq.s32.totalorder %s19, 0
      %p46 = por %p44, %p45
      %s48 = sadd.s32 %s47, 1
      %p51 = scmp.eq.s32.totalorder %s13, 1
      %p52 = scmp.ne.s32.totalorder %s47, %s49
      %p53 = scmp.eq.s32.totalorder %s13, 0
      %p54 = por %p52, %p53
      %p55 = scmp.ne.s32.totalorder %s47, %s49
      %p56 = scmp.eq.s32.totalorder %s18, 1
      %p57 = por %p55, %p56
      %p58 = scmp.ne.s32.totalorder %s49, %s50
      %p59 = scmp.eq.s32.totalorder %s18, 0
      %p60 = por %p58, %p59
      %p61 = scmp.ne.s32.totalorder %s49, %s50
      %p62 = scmp.eq.s32.totalorder %s19, 1
      %p63 = por %p61, %p62
      %p65 = scmp.ne.s32.totalorder %s50, %s64
      %p66 = scmp.eq.s32.totalorder %s19, 0
      %p67 = por %p65, %p66
      %s69 = sadd.s32 %s68, 1
      %p72 = scmp.eq.s32.totalorder %s13, 1
      %p73 = scmp.ne.s32.totalorder %s68, %s70
      %p74 = scmp.eq.s32.totalorder %s13, 0
      %p75 = por %p73, %p74
      %p76 = scmp.ne.s32.totalorder %s68, %s70
      %p77 = scmp.eq.s32.totalorder %s18, 1
      %p78 = por %p76, %p77
      %p79 = scmp.ne.s32.totalorder %s70, %s71
      %p80 = scmp.eq.s32.totalorder %s18, 0
      %p81 = por %p79, %p80
      %p82 = scmp.ne.s32.totalorder %s70, %s71
      %p83 = scmp.eq.s32.totalorder %s19, 1
      %p84 = por %p82, %p83
      %p86 = scmp.ne.s32.totalorder %s71, %s85
      %p87 = scmp.eq.s32.totalorder %s19, 0
      %p88 = por %p86, %p87
      %s89 = ssub.s32 %s13, %s20
      %p90 = scmp.eq.s32.totalorder %s89, 0
      %s92 = sadd.s32 %s91, 1
      %s93 = scalar_select %p90, %s91, %s92
      %p96 = pneg %p90
      %p97 = scmp.eq.s32.totalorder %s13, 1
      %p98 = por %p96, %p97
      %p99 = scmp.ne.s32.totalorder %s91, %s94
      %p100 = scmp.eq.s32.totalorder %s13, 0
      %p101 = por %p99, %p100
      %p102 = scmp.ne.s32.totalorder %s91, %s94
      %p103 = scmp.eq.s32.totalorder %s18, 1
      %p104 = por %p102, %p103
      %p105 = scmp.ne.s32.totalorder %s94, %s95
      %p106 = scmp.eq.s32.totalorder %s18, 0
      %p107 = por %p105, %p106
      %p108 = scmp.ne.s32.totalorder %s94, %s95
      %p109 = scmp.eq.s32.totalorder %s19, 1
      %p110 = por %p108, %p109
      %p112 = scmp.ne.s32.totalorder %s95, %s111
      %p113 = scmp.eq.s32.totalorder %s19, 0
      %p114 = por %p112, %p113
      %s115 = ssub.s32 %s13, %s20
      %p116 = scmp.eq.s32.totalorder %s115, 0
      %s118 = sadd.s32 %s117, 1
      %s119 = scalar_select %p116, %s117, %s118
      %p122 = pneg %p116
      %p123 = scmp.eq.s32.totalorder %s13, 1
      %p124 = por %p122, %p123
      %p125 = scmp.ne.s32.totalorder %s117, %s120
      %p126 = scmp.eq.s32.totalorder %s13, 0
      %p127 = por %p125, %p126
      %p128 = scmp.ne.s32.totalorder %s117, %s120
      %p129 = scmp.eq.s32.totalorder %s18, 1
      %p130 = por %p128, %p129
      %p131 = scmp.ne.s32.totalorder %s120, %s121
      %p132 = scmp.eq.s32.totalorder %s18, 0
      %p133 = por %p131, %p132
      %p134 = scmp.ne.s32.totalorder %s120, %s121
      %p135 = scmp.eq.s32.totalorder %s19, 1
      %p136 = por %p134, %p135
      %p138 = scmp.ne.s32.totalorder %s121, %s137
      %p139 = scmp.eq.s32.totalorder %s19, 0
      %p140 = por %p138, %p139
      %p141 = scmp.le.s32.totalorder 1, %s13
      %p142 = scmp.lt.s32.totalorder %s13, 3
      %p143 = pnand %p141, %p142
      %p144 = pneg %p143
      // Predicated region
      $region9: #{bottleneck_forward.7} parent=5 // pred_check
        _
      $region10: #{bottleneck_forward.7} parent=5 // pred_check_branch
        %146 = sbr.rel (%p143) target = $region12
      $region11: #{bottleneck_forward.7} parent=5 // pred_region
        %s147 = ssub.s32 %s13, 1
        // Predicated region
        $region13: #{bottleneck_forward.7} parent=11 // pred_check
          %p148 = pneg %p60
        $region14: #{bottleneck_forward.7} parent=11 // pred_check_branch
          %150 = sbr.rel (%p148) target = $region16
        $region15: #{bottleneck_forward.7} parent=11 // pred_region
          _
        $region16: #{bottleneck_forward.7} parent=11 // pred_fallthru
          _
        // Predicated region
        $region17: #{bottleneck_forward.7} parent=11 // pred_check
          %p151 = pneg %p81
        $region18: #{bottleneck_forward.7} parent=11 // pred_check_branch
          %153 = sbr.rel (%p151) target = $region20
        $region19: #{bottleneck_forward.7} parent=11 // pred_region
          _
        $region20: #{bottleneck_forward.7} parent=11 // pred_fallthru
          _
      $region12: #{bottleneck_forward.7} parent=5 // pred_fallthru
        _
      %p154 = scmp.lt.s32.totalorder %s13, 2
      // Predicated region
      $region21: #{bottleneck_forward.7} parent=5 // pred_check
        %p155 = pneg %p154
      $region22: #{bottleneck_forward.7} parent=5 // pred_check_branch
        %157 = sbr.rel (%p155) target = $region24
      $region23: #{bottleneck_forward.7} parent=5 // pred_region
        // Predicated region
        $region25: #{bottleneck_forward.7} parent=23 // pred_check
          %p158 = pneg %p33
        $region26: #{bottleneck_forward.7} parent=23 // pred_check_branch
          %160 = sbr.rel (%p158) target = $region28
        $region27: #{bottleneck_forward.7} parent=23 // pred_region
          %s161 = smul.u32 8, %s13
          %p162 = scmp.lt.s32.totalorder %s161, 15
          %s163 = scalar_select %p162, %s161, 15
          %s164 = smul.addr %s163, 4
          %s165 = scalar_lea.vmem %s0, %s164
          %s166 = smul.u32 8, %s13
        $region28: #{bottleneck_forward.7} parent=23 // pred_fallthru
          _
        // Predicated region
        $region29: #{bottleneck_forward.7} parent=23 // pred_check
          %p167 = pneg %p101
        $region30: #{bottleneck_forward.7} parent=23 // pred_check_branch
          %169 = sbr.rel (%p167) target = $region32
        $region31: #{bottleneck_forward.7} parent=23 // pred_region
          %s170 = smul.u32 8, %s13
          %p171 = scmp.lt.s32.totalorder %s170, 15
          %s172 = scalar_select %p171, %s170, 15
          %s173 = smul.addr %s172, 4
          %s174 = scalar_lea.vmem %s3, %s173
          %s175 = smul.u32 8, %s13
        $region32: #{bottleneck_forward.7} parent=23 // pred_fallthru
          _
      $region24: #{bottleneck_forward.7} parent=5 // pred_fallthru
        _
      %p176 = scmp.le.s32.totalorder 1, %s13
      %p177 = scmp.lt.s32.totalorder %s13, 3
      %p178 = pnand %p176, %p177
      %p179 = pneg %p178
      // Predicated region
      $region33: #{bottleneck_forward.7} parent=5 // pred_check
        _
      $region34: #{bottleneck_forward.7} parent=5 // pred_check_branch
        %181 = sbr.rel (%p178) target = $region36
      $region35: #{bottleneck_forward.7} parent=5 // pred_region
        %s182 = ssub.s32 %s13, 1
        %s183 = smul.u32 8, %s18
        %p184 = scmp.lt.s32.totalorder %s183, 15
        %s185 = scalar_select %p184, %s183, 15
        %s186 = smul.addr %s185, 4
        %s187 = scalar_lea.vmem %s0, %s186
        %p188 = pneg %p39
        %p189 = pneg %p36
        %p190 = pneg %p60
        %p191 = pneg %p57
        %p192 = pneg %p81
        %p193 = pneg %p78
        %s194 = smul.u32 8, %s18
        %p195 = scmp.lt.s32.totalorder %s194, 15
        %s196 = scalar_select %p195, %s194, 15
        %s197 = smul.addr %s196, 4
        %s198 = scalar_lea.vmem %s3, %s197
        %p199 = pneg %p107
        %p200 = pneg %p104
        %p201 = pneg %p133
        %p202 = pneg %p130
        %s203 = sand.u32 %s120, 1
        %s204 = scalar_lea.sflag [#allocation3], %s203
        %s205 = sand.u32 %s120, 1
        %s206 = smul.addr %s205, 64
        %s207 = scalar_lea.vmem [#allocation2], %s206
        %s208 = smul.u32 8, %s18
        %p209 = scmp.lt.s32.totalorder %s208, 15
        %s210 = scalar_select %p209, %s208, 15
        %s211 = smul.addr %s210, 4
        %s212 = scalar_lea.vmem %s0, %s211
        %s213 = smul.u32 8, %s18
        %s214 = smul.u32 8, %s18
        %p215 = scmp.lt.s32.totalorder %s214, 15
        %s216 = scalar_select %p215, %s214, 15
        %s217 = smul.addr %s216, 4
        %s218 = scalar_lea.vmem %s3, %s217
        %s219 = smul.u32 8, %s18
        %s220 = smul.u32 8, %s18
        %v221 = vld [vmem:[%s212] sm:$0xf]
        %v222 = vld [vmem:[%s212 + $0x4] sm:$0xf]
        %v223 = vld [vmem:[%s212 + $0x8] sm:$0xf]
        %v224 = vld [vmem:[%s212 + $0xc] sm:$0xf]
        %v225 = vld [vmem:[%s212 + $0x10] sm:$0xf]
        %v226 = vld [vmem:[%s212 + $0x14] sm:$0xf]
        %v227 = vld [vmem:[%s212 + $0x18] sm:$0xf]
        %v228 = vld [vmem:[%s212 + $0x1c] sm:$0xf]
        %v229 = vld [vmem:[%s1] sm:$0x1]
        %v230 = vunpack.c.l.bf16 %v221
        %v231 = vunpack.c.l.bf16 %v222
        %v232 = vunpack.c.l.bf16 %v223
        %v233 = vunpack.c.l.bf16 %v224
        %v234 = vunpack.c.l.bf16 %v225
        %v235 = vunpack.c.l.bf16 %v226
        %v236 = vunpack.c.l.bf16 %v227
        %v237 = vunpack.c.l.bf16 %v228
        %v239 = vlaneseq
        %v240 = vshrl.u32 %v239, 7
        %v241 = vsub.s32 0, %v240
        %v242 = vrot.slane %v229, %v241
        %v244 = vmul.f32 %v230, %v242
        %v245 = vmul.f32 %v231, %v242
        %v246 = vmul.f32 %v232, %v242
        %v247 = vmul.f32 %v233, %v242
        %v248 = vmul.f32 %v234, %v242
        %v249 = vmul.f32 %v235, %v242
        %v250 = vmul.f32 %v236, %v242
        %v251 = vmul.f32 %v237, %v242
        %v252 = vld [vmem:[%s2] sm:$0x1]
        %v254 = vlaneseq
        %v255 = vshrl.u32 %v254, 7
        %v256 = vsub.s32 0, %v255
        %v257 = vrot.slane %v252, %v256
        %v259 = vadd.f32 %v244, %v257
        %v260 = vadd.f32 %v245, %v257
        %v261 = vadd.f32 %v246, %v257
        %v262 = vadd.f32 %v247, %v257
        %v263 = vadd.f32 %v248, %v257
        %v264 = vadd.f32 %v249, %v257
        %v265 = vadd.f32 %v250, %v257
        %v266 = vadd.f32 %v251, %v257
        %v267 = vld [vmem:[%s218] sm:$0xf]
        %v268 = vld [vmem:[%s218 + $0x4] sm:$0xf]
        %v269 = vld [vmem:[%s218 + $0x8] sm:$0xf]
        %v270 = vld [vmem:[%s218 + $0xc] sm:$0xf]
        %v271 = vld [vmem:[%s218 + $0x10] sm:$0xf]
        %v272 = vld [vmem:[%s218 + $0x14] sm:$0xf]
        %v273 = vld [vmem:[%s218 + $0x18] sm:$0xf]
        %v274 = vld [vmem:[%s218 + $0x1c] sm:$0xf]
        %v275 = vunpack.c.l.bf16 %v267
        %v276 = vunpack.c.l.bf16 %v268
        %v277 = vunpack.c.l.bf16 %v269
        %v278 = vunpack.c.l.bf16 %v270
        %v279 = vunpack.c.l.bf16 %v271
        %v280 = vunpack.c.l.bf16 %v272
        %v281 = vunpack.c.l.bf16 %v273
        %v282 = vunpack.c.l.bf16 %v274
        %v283 = vadd.f32 %v259, %v275
        %v284 = vadd.f32 %v260, %v276
        %v285 = vadd.f32 %v261, %v277
        %v286 = vadd.f32 %v262, %v278
        %v287 = vadd.f32 %v263, %v279
        %v288 = vadd.f32 %v264, %v280
        %v289 = vadd.f32 %v265, %v281
        %v290 = vadd.f32 %v266, %v282
        %v291 = vmax.f32 %v283, 0.0
        %v292 = vmax.f32 %v284, 0.0
        %v293 = vmax.f32 %v285, 0.0
        %v294 = vmax.f32 %v286, 0.0
        %v295 = vmax.f32 %v287, 0.0
        %v296 = vmax.f32 %v288, 0.0
        %v297 = vmax.f32 %v289, 0.0
        %v298 = vmax.f32 %v290, 0.0
        %299 = vst [vmem:[%s207] sm:$0xff] %v291
        %300 = vst [vmem:[%s207 + $0x8] sm:$0xff] %v292
        %301 = vst [vmem:[%s207 + $0x10] sm:$0xff] %v293
        %302 = vst [vmem:[%s207 + $0x18] sm:$0xff] %v294
        %303 = vst [vmem:[%s207 + $0x20] sm:$0xff] %v295
        %304 = vst [vmem:[%s207 + $0x28] sm:$0xff] %v296
        %305 = vst [vmem:[%s207 + $0x30] sm:$0xff] %v297
        %306 = vst [vmem:[%s207 + $0x38] sm:$0xff] %v298
        %s307 = sand.u32 %s120, 1
        %s308 = scalar_lea.sflag [#allocation3], %s307
        %s309 = sand.u32 %s120, 1
        %s310 = smul.addr %s309, 64
        %s311 = scalar_lea.vmem [#allocation2], %s310
        // Predicated region
        $region37: #{bottleneck_forward.7} parent=35 // pred_check
          %p312 = pneg %p130
        $region38: #{bottleneck_forward.7} parent=35 // pred_check_branch
          %314 = sbr.rel (%p312) target = $region40
        $region39: #{bottleneck_forward.7} parent=35 // pred_region
          %s315 = smul.u32 8, %s18
          %s317 = ssub.s32 1024, 1024
          %318 = vsyncadd %s308, %s317
          %s319 = smul.addr %s315, 128
          %s320 = scalar_lea.hbm %s4, %s319
          %s321 = sshll.u32 %s311, 4
          %s322 = int_to_ptr.vmem [resolvable:$true] %s321
          %327 = dma.vmem_to_hbm [thread:$0]  %s322, 1024, %s320, %s308, 128, 128, 8
        $region40: #{bottleneck_forward.7} parent=35 // pred_fallthru
          _
      $region36: #{bottleneck_forward.7} parent=5 // pred_fallthru
        _
      %p328 = scmp.le.s32.totalorder 2, %s13
      // Predicated region
      $region41: #{bottleneck_forward.7} parent=5 // pred_check
        %p329 = pneg %p328
      $region42: #{bottleneck_forward.7} parent=5 // pred_check_branch
        %331 = sbr.rel (%p329) target = $region44
      $region43: #{bottleneck_forward.7} parent=5 // pred_region
        %s332 = ssub.s32 %s13, 2
        // Predicated region
        $region45: #{bottleneck_forward.7} parent=43 // pred_check
          %p333 = pneg %p136
        $region46: #{bottleneck_forward.7} parent=43 // pred_check_branch
          %335 = sbr.rel (%p333) target = $region48
        $region47: #{bottleneck_forward.7} parent=43 // pred_region
          %s336 = sand.u32 %s121, 1
          %s337 = scalar_lea.sflag [#allocation3], %s336
          %s338 = sand.u32 %s121, 1
          %s339 = smul.addr %s338, 64
          %s340 = scalar_lea.vmem [#allocation2], %s339
          %341 = dma.done %s337, 1024
        $region48: #{bottleneck_forward.7} parent=43 // pred_fallthru
          _
      $region44: #{bottleneck_forward.7} parent=5 // pred_fallthru
        _
    $region6: #{bottleneck_forward.7} parent=1 // loop_footer
      %s17 = sadd.s32 1, %s13
    $region7: #{bottleneck_forward.7} parent=1 // loop_footer_branch
      %12 = sbr.rel target = $region3
    $region8: #{bottleneck_forward.7} parent=1 // loop_exit
      _
    %342 = vsyncpa [#allocation3], 1
    %s343 = scalar_lea.sflag [#allocation3], 1
    %344 = vsyncpa %s343, 1

// kernel: bottleneck_forward.4
$region0: #{bottleneck_forward.4}
  #allocation0 [shape = 'u32[]', space=smem, size = 0x4, offset = 0x4, fixed_abs, tag = 'smem constant byte address 0x4 - core index']
  #allocation1 [shape = 'u32[144,128]{1,0:T(1,128)}', space=vmem, size = 0x12000, scoped, tag = 'internal scratch']
  %s0 = inlined_call_operand.vmem [shape: bf16[128,128], index: 0, kind: input, shape index: {}]
  %s1 = inlined_call_operand.vmem [shape: bf16[128,128], index: 1, kind: input, shape index: {}]
  %s2 = inlined_call_operand.vmem [shape: bf16[128,128], index: 2, kind: output, shape index: {0}]
  %s3 = inlined_call_operand.vmem [shape: f32[16,128], index: 3, kind: output, shape index: {1}]
  %s4 = inlined_call_operand.vmem [shape: f32[16,128], index: 4, kind: output, shape index: {2}]
  %5 = xla_tuple %s2, %s3, %s4
  %s6 = sld [smem:[#allocation0]]
  $region61: #{bottleneck_forward.4} parent=0
    _
  %s8 = ssub.s32 1, %s6
  %s9 = scalar_select 0, %s8, %s6
  loop: start=0, step=1, limit=4
  $region2: #{bottleneck_forward.4} parent=0 // loop_pre_header
    _
  $region3: #{bottleneck_forward.4} parent=0 // loop_header
    %s11 = sphi 0, %s15
    %p12 = scmp.ge.s32.totalorder %s11, 4
    %s18 = sphi 0, %s30
    %s19 = sphi 0, %s26
    %s20 = sphi 0, %s18
    %s21 = sphi 0, %s19
    %s22 = sphi 0, %s20
    %s23 = sphi 0, %s21
    %s35 = sphi 0, %s37
    %s38 = sphi 0, %s35
    %s39 = sphi 0, %s38
    %s55 = sphi 0, %s39
    %s59 = sphi 0, %s59
    %s61 = sphi 0, %s59
    %s62 = sphi 0, %s61
    %s76 = sphi 0, %s62
    %s84 = sphi 0, %s86
    %s87 = sphi 0, %s84
    %s88 = sphi 0, %s87
    %s104 = sphi 0, %s88
    %s110 = sphi 0, %s112
    %s113 = sphi 0, %s110
    %s114 = sphi 0, %s113
    %s130 = sphi 0, %s114
    %s136 = sphi 0, %s138
    %s139 = sphi 0, %s136
    %s140 = sphi 0, %s139
    %s156 = sphi 0, %s140
  $region4: #{bottleneck_forward.4} parent=0 // loop_header_branch
    %14 = sbr.rel (%p12) target = $region8
  $region5: #{bottleneck_forward.4} parent=0 // loop_body
    %s16 = ssub.s32 %s11, 1
    %s17 = ssub.s32 %s11, 2
    %s24 = sadd.s32 1, %s19
    %p25 = scmp.ge.s32.totalorder %s24, 1
    %s26 = scalar_select %p25, 0, %s24
    %s27 = sadd.s32 1, %s18
    %s28 = scalar_select %p25, %s27, %s18
    %p29 = scmp.ge.s32.totalorder %s28, 2
    %s30 = scalar_select %p29, 0, %s28
    %s31 = sadd.s32 %s18, %s19
    %s32 = sadd.s32 %s30, %s26
    %s33 = ssub.s32 %s31, %s32
    %p34 = scmp.eq.s32.totalorder %s33, 0
    %s36 = sadd.s32 %s35, 1
    %s37 = scalar_select %p34, %s35, %s36
    %p40 = pneg %p34
    %p41 = scmp.eq.s32.totalorder %s11, 1
    %p42 = por %p40, %p41
    %p43 = scmp.ne.s32.totalorder %s35, %s38
    %p44 = scmp.eq.s32.totalorder %s11, 0
    %p45 = por %p43, %p44
    %p46 = scmp.ne.s32.totalorder %s35, %s38
    %p47 = scmp.eq.s32.totalorder %s16, 1
    %p48 = por %p46, %p47
    %p49 = scmp.ne.s32.totalorder %s38, %s39
    %p50 = scmp.eq.s32.totalorder %s16, 0
    %p51 = por %p49, %p50
    %p52 = scmp.ne.s32.totalorder %s38, %s39
    %p53 = scmp.eq.s32.totalorder %s17, 1
    %p54 = por %p52, %p53
    %p56 = scmp.ne.s32.totalorder %s39, %s55
    %p57 = scmp.eq.s32.totalorder %s17, 0
    %p58 = por %p56, %p57
    %s60 = sadd.s32 %s59, 1
    %p63 = scmp.eq.s32.totalorder %s11, 1
    %p64 = scmp.ne.s32.totalorder %s59, %s61
    %p65 = scmp.eq.s32.totalorder %s11, 0
    %p66 = por %p64, %p65
    %p67 = scmp.ne.s32.totalorder %s59, %s61
    %p68 = scmp.eq.s32.totalorder %s16, 1
    %p69 = por %p67, %p68
    %p70 = scmp.ne.s32.totalorder %s61, %s62
    %p71 = scmp.eq.s32.totalorder %s16, 0
    %p72 = por %p70, %p71
    %p73 = scmp.ne.s32.totalorder %s61, %s62
    %p74 = scmp.eq.s32.totalorder %s17, 1
    %p75 = por %p73, %p74
    %p77 = scmp.ne.s32.totalorder %s62, %s76
    %p78 = scmp.eq.s32.totalorder %s17, 0
    %p79 = por %p77, %p78
    %s80 = sadd.s32 %s18, %s19
    %s81 = sadd.s32 %s30, %s26
    %s82 = ssub.s32 %s80, %s81
    %p83 = scmp.eq.s32.totalorder %s82, 0
    %s85 = sadd.s32 %s84, 1
    %s86 = scalar_select %p83, %s84, %s85
    %p89 = pneg %p83
    %p90 = scmp.eq.s32.totalorder %s11, 1
    %p91 = por %p89, %p90
    %p92 = scmp.ne.s32.totalorder %s84, %s87
    %p93 = scmp.eq.s32.totalorder %s11, 0
    %p94 = por %p92, %p93
    %p95 = scmp.ne.s32.totalorder %s84, %s87
    %p96 = scmp.eq.s32.totalorder %s16, 1
    %p97 = por %p95, %p96
    %p98 = scmp.ne.s32.totalorder %s87, %s88
    %p99 = scmp.eq.s32.totalorder %s16, 0
    %p100 = por %p98, %p99
    %p101 = scmp.ne.s32.totalorder %s87, %s88
    %p102 = scmp.eq.s32.totalorder %s17, 1
    %p103 = por %p101, %p102
    %p105 = scmp.ne.s32.totalorder %s88, %s104
    %p106 = scmp.eq.s32.totalorder %s17, 0
    %p107 = por %p105, %p106
    %s108 = ssub.s32 %s18, %s30
    %p109 = scmp.eq.s32.totalorder %s108, 0
    %s111 = sadd.s32 %s110, 1
    %s112 = scalar_select %p109, %s110, %s111
    %p115 = pneg %p109
    %p116 = scmp.eq.s32.totalorder %s11, 1
    %p117 = por %p115, %p116
    %p118 = scmp.ne.s32.totalorder %s110, %s113
    %p119 = scmp.eq.s32.totalorder %s11, 0
    %p120 = por %p118, %p119
    %p121 = scmp.ne.s32.totalorder %s110, %s113
    %p122 = scmp.eq.s32.totalorder %s16, 1
    %p123 = por %p121, %p122
    %p124 = scmp.ne.s32.totalorder %s113, %s114
    %p125 = scmp.eq.s32.totalorder %s16, 0
    %p126 = por %p124, %p125
    %p127 = scmp.ne.s32.totalorder %s113, %s114
    %p128 = scmp.eq.s32.totalorder %s17, 1
    %p129 = por %p127, %p128
    %p131 = scmp.ne.s32.totalorder %s114, %s130
    %p132 = scmp.eq.s32.totalorder %s17, 0
    %p133 = por %p131, %p132
    %s134 = ssub.s32 %s18, %s30
    %p135 = scmp.eq.s32.totalorder %s134, 0
    %s137 = sadd.s32 %s136, 1
    %s138 = scalar_select %p135, %s136, %s137
    %p141 = pneg %p135
    %p142 = scmp.eq.s32.totalorder %s11, 1
    %p143 = por %p141, %p142
    %p144 = scmp.ne.s32.totalorder %s136, %s139
    %p145 = scmp.eq.s32.totalorder %s11, 0
    %p146 = por %p144, %p145
    %p147 = scmp.ne.s32.totalorder %s136, %s139
    %p148 = scmp.eq.s32.totalorder %s16, 1
    %p149 = por %p147, %p148
    %p150 = scmp.ne.s32.totalorder %s139, %s140
    %p151 = scmp.eq.s32.totalorder %s16, 0
    %p152 = por %p150, %p151
    %p153 = scmp.ne.s32.totalorder %s139, %s140
    %p154 = scmp.eq.s32.totalorder %s17, 1
    %p155 = por %p153, %p154
    %p157 = scmp.ne.s32.totalorder %s140, %s156
    %p158 = scmp.eq.s32.totalorder %s17, 0
    %p159 = por %p157, %p158
    %p160 = scmp.le.s32.totalorder 1, %s11
    %p161 = scmp.lt.s32.totalorder %s11, 3
    %p162 = pnand %p160, %p161
    %p163 = pneg %p162
    // Predicated region
    $region9: #{bottleneck_forward.4} parent=5 // pred_check
      _
    $region10: #{bottleneck_forward.4} parent=5 // pred_check_branch
      %165 = sbr.rel (%p162) target = $region12
    $region11: #{bottleneck_forward.4} parent=5 // pred_region
      %s166 = ssub.s32 %s11, 1
      // Predicated region
      $region13: #{bottleneck_forward.4} parent=11 // pred_check
        %p167 = pneg %p72
      $region14: #{bottleneck_forward.4} parent=11 // pred_check_branch
        %169 = sbr.rel (%p167) target = $region16
      $region15: #{bottleneck_forward.4} parent=11 // pred_region
        _
      $region16: #{bottleneck_forward.4} parent=11 // pred_fallthru
        _
    $region12: #{bottleneck_forward.4} parent=5 // pred_fallthru
      _
    %p170 = scmp.lt.s32.totalorder %s11, 2
    // Predicated region
    $region17: #{bottleneck_forward.4} parent=5 // pred_check
      %p171 = pneg %p170
    $region18: #{bottleneck_forward.4} parent=5 // pred_check_branch
      %173 = sbr.rel (%p171) target = $region20
    $region19: #{bottleneck_forward.4} parent=5 // pred_region
      // Predicated region
      $region21: #{bottleneck_forward.4} parent=19 // pred_check
        %p174 = pneg %p45
      $region22: #{bottleneck_forward.4} parent=19 // pred_check_branch
        %176 = sbr.rel (%p174) target = $region24
      $region23: #{bottleneck_forward.4} parent=19 // pred_region
        %s177 = sadd.s32 %s18, %s19
        %s178 = smul.u32 8, %s177
        %p179 = scmp.lt.s32.totalorder %s178, 15
        %s180 = scalar_select %p179, %s178, 15
        %s181 = smul.addr %s180, 4
        %s182 = scalar_lea.vmem %s0, %s181
        %s183 = sadd.s32 %s18, %s19
        %s184 = smul.u32 8, %s183
      $region24: #{bottleneck_forward.4} parent=19 // pred_fallthru
        _
    $region20: #{bottleneck_forward.4} parent=5 // pred_fallthru
      _
    %p185 = scmp.le.s32.totalorder 1, %s11
    %p186 = scmp.lt.s32.totalorder %s11, 3
    %p187 = pnand %p185, %p186
    %p188 = pneg %p187
    // Predicated region
    $region25: #{bottleneck_forward.4} parent=5 // pred_check
      _
    $region26: #{bottleneck_forward.4} parent=5 // pred_check_branch
      %190 = sbr.rel (%p187) target = $region28
    $region27: #{bottleneck_forward.4} parent=5 // pred_region
      %s191 = ssub.s32 %s11, 1
      %s192 = sadd.s32 %s20, %s21
      %s193 = smul.u32 8, %s192
      %p194 = scmp.lt.s32.totalorder %s193, 15
      %s195 = scalar_select %p194, %s193, 15
      %s196 = smul.addr %s195, 4
      %s197 = scalar_lea.vmem %s0, %s196
      %p198 = pneg %p51
      %p199 = pneg %p48
      %p200 = pneg %p72
      %p201 = pneg %p69
      %p202 = pneg %p100
      %p203 = pneg %p97
      %s204 = sadd.s32 %s20, %s21
      %s205 = smul.u32 8, %s204
      %p206 = scmp.lt.s32.totalorder %s205, 15
      %s207 = scalar_select %p206, %s205, 15
      %s208 = smul.addr %s207, 4
      %s209 = scalar_lea.vmem %s2, %s208
      %p210 = pneg %p126
      %p211 = pneg %p123
      %p212 = scmp.lt.s32.totalorder %s20, 1
      %s213 = scalar_select %p212, %s20, 1
      %s214 = smul.addr %s213, 8
      %s215 = scalar_lea.vmem %s3, %s214
      %p216 = pneg %p152
      %p217 = pneg %p149
      %p218 = scmp.lt.s32.totalorder %s20, 1
      %s219 = scalar_select %p218, %s20, 1
      %s220 = smul.addr %s219, 8
      %s221 = scalar_lea.vmem %s4, %s220
      %s222 = sadd.s32 %s20, %s21
      %s223 = smul.u32 8, %s222
      %p224 = scmp.lt.s32.totalorder %s223, 15
      %s225 = scalar_select %p224, %s223, 15
      %s226 = smul.addr %s225, 4
      %s227 = scalar_lea.vmem %s0, %s226
      %s228 = sadd.s32 %s20, %s21
      %s229 = smul.u32 8, %s228
      %s230 = sadd.s32 %s20, %s21
      %s231 = smul.u32 8, %s230
      %p232 = scmp.lt.s32.totalorder %s231, 15
      %s233 = scalar_select %p232, %s231, 15
      %s234 = smul.addr %s233, 4
      %s235 = scalar_lea.vmem %s2, %s234
      %s236 = sadd.s32 %s20, %s21
      %s237 = smul.u32 8, %s236
      %p238 = scmp.lt.s32.totalorder %s20, 1
      %s239 = scalar_select %p238, %s20, 1
      %s240 = smul.addr %s239, 8
      %s241 = scalar_lea.vmem %s3, %s240
      %p242 = scmp.lt.s32.totalorder %s20, 1
      %s243 = scalar_select %p242, %s20, 1
      %s244 = smul.addr %s243, 8
      %s245 = scalar_lea.vmem %s4, %s244
      %p247 = scmp.eq.s32.totalorder %s21, 0
      // Predicated region
      $region29: #{bottleneck_forward.4} parent=27 // pred_check
        %p248 = pneg %p247
      $region30: #{bottleneck_forward.4} parent=27 // pred_check_branch
        %250 = sbr.rel (%p248) target = $region32
      $region31: #{bottleneck_forward.4} parent=27 // pred_region
        %251 = vst [vmem:[%s241] sm:$0xff] 0.0
        %252 = vst [vmem:[%s245] sm:$0xff] 0.0
      $region32: #{bottleneck_forward.4} parent=27 // pred_fallthru
        _
      %v253 = vld [vmem:[%s227] sm:$0xf]
      %v254 = vld [vmem:[%s227 + $0x4] sm:$0xf]
      %v255 = vld [vmem:[%s227 + $0x8] sm:$0xf]
      %v256 = vld [vmem:[%s227 + $0xc] sm:$0xf]
      %v257 = vld [vmem:[%s227 + $0x10] sm:$0xf]
      %v258 = vld [vmem:[%s227 + $0x14] sm:$0xf]
      %v259 = vld [vmem:[%s227 + $0x18] sm:$0xf]
      %v260 = vld [vmem:[%s227 + $0x1c] sm:$0xf]
      %v261 = vld [vmem:[%s1] sm:$0xf]
      %v262 = vld [vmem:[%s1 + $0x4] sm:$0xf]
      %v263 = vld [vmem:[%s1 + $0x8] sm:$0xf]
      %v264 = vld [vmem:[%s1 + $0xc] sm:$0xf]
      %v265 = vld [vmem:[%s1 + $0x10] sm:$0xf]
      %v266 = vld [vmem:[%s1 + $0x14] sm:$0xf]
      %v267 = vld [vmem:[%s1 + $0x18] sm:$0xf]
      %v268 = vld [vmem:[%s1 + $0x1c] sm:$0xf]
      %v269 = vld [vmem:[%s1 + $0x20] sm:$0xf]
      %v270 = vld [vmem:[%s1 + $0x24] sm:$0xf]
      %v271 = vld [vmem:[%s1 + $0x28] sm:$0xf]
      %v272 = vld [vmem:[%s1 + $0x2c] sm:$0xf]
      %v273 = vld [vmem:[%s1 + $0x30] sm:$0xf]
      %v274 = vld [vmem:[%s1 + $0x34] sm:$0xf]
      %v275 = vld [vmem:[%s1 + $0x38] sm:$0xf]
      %v276 = vld [vmem:[%s1 + $0x3c] sm:$0xf]
      %v285 = vunpack.c.l.b16 %v253
      %v286 = vunpack.c.l.b16 %v254
      %v287 = vunpack.c.l.b16 %v255
      %v288 = vunpack.c.l.b16 %v256
      %v289 = vunpack.c.l.b16 %v257
      %v290 = vunpack.c.l.b16 %v258
      %v291 = vunpack.c.l.b16 %v259
      %v292 = vunpack.c.l.b16 %v260
      %v293 = vpack.c.b16 %v286, %v285
      %v294 = vpack.c.b16 %v288, %v287
      %v295 = vpack.c.b16 %v290, %v289
      %v296 = vpack.c.b16 %v292, %v291
      %v317 = vunpack.c.l.b16 %v261
      %v318 = vunpack.c.l.b16 %v262
      %v319 = vunpack.c.l.b16 %v263
      %v320 = vunpack.c.l.b16 %v264
      %v321 = vunpack.c.l.b16 %v265
      %v322 = vunpack.c.l.b16 %v266
      %v323 = vunpack.c.l.b16 %v267
      %v324 = vunpack.c.l.b16 %v268
      %v325 = vunpack.c.l.b16 %v269
      %v326 = vunpack.c.l.b16 %v270
      %v327 = vunpack.c.l.b16 %v271
      %v328 = vunpack.c.l.b16 %v272
      %v329 = vunpack.c.l.b16 %v273
      %v330 = vunpack.c.l.b16 %v274
      %v331 = vunpack.c.l.b16 %v275
      %v332 = vunpack.c.l.b16 %v276
      %v333 = vpack.c.b16 %v318, %v317
      %v334 = vpack.c.b16 %v320, %v319
      %v335 = vpack.c.b16 %v322, %v321
      %v336 = vpack.c.b16 %v324, %v323
      %v337 = vpack.c.b16 %v326, %v325
      %v338 = vpack.c.b16 %v328, %v327
      %v339 = vpack.c.b16 %v330, %v329
      %v340 = vpack.c.b16 %v332, %v331
      %349 = vmatprep.subr.bf16.mxu0 0
      %350 = vmatpush1.bf16.msra.mxu0 %v340
      %351 = vmatprep.subr.bf16.mxu0 0
      %352 = vmatpush1.bf16.msra.mxu0 %v339
      %353 = vmatprep.subr.bf16.mxu0 0
      %354 = vmatpush1.bf16.msra.mxu0 %v338
      %355 = vmatprep.subr.bf16.mxu0 0
      %356 = vmatpush1.bf16.msra.mxu0 %v337
      %357 = vmatprep.subr.bf16.mxu0 0
      %358 = vmatpush1.bf16.msra.mxu0 %v336
      %359 = vmatprep.subr.bf16.mxu0 0
      %360 = vmatpush1.bf16.msra.mxu0 %v335
      %361 = vmatprep.subr.bf16.mxu0 0
      %362 = vmatpush1.bf16.msra.mxu0 %v334
      %363 = vmatprep.subr.bf16.mxu0 0
      %364 = vmatpush1.bf16.msra.mxu0 %v333
      %365 = vmatprep.subr.bf16.mxu0 0
      %366 = vmatpush2.bf16.msra.mxu0 0
      %367 = vmatprep.subr.bf16.mxu0 0
      %368 = vmatpush2.bf16.msra.mxu0 0
      %369 = vmatprep.subr.bf16.mxu0 0
      %370 = vmatpush2.bf16.msra.mxu0 0
      %371 = vmatprep.subr.bf16.mxu0 0
      %372 = vmatpush2.bf16.msra.mxu0 0
      %373 = vmatprep.subr.bf16.mxu0 0
      %374 = vmatpush2.bf16.msra.mxu0 0
      %375 = vmatprep.subr.bf16.mxu0 0
      %376 = vmatpush2.bf16.msra.mxu0 0
      %377 = vmatprep.subr.bf16.mxu0 0
      %378 = vmatpush2.bf16.msra.mxu0 0
      %379 = vmatprep.subr.bf16.mxu0 0
      %380 = vmatpush2.bf16.msra.mxu0 0
      %381 = vmatprep.mubr.bf16.mxu0 0
      %382 = vmatmul.mubr.bf16.gmra.mxu0 %v293
      %v383 = vpop.f32.mrf.mxu0
      %v384 = vadd.f32 0.0, %v383
      %v385 = vpop.f32.mrf.mxu0
      %v386 = vpop.f32.mrf.mxu0
      %v387 = vadd.f32 0.0, %v386
      %v388 = vpop.f32.mrf.mxu0
      %389 = vmatprep.mubr.bf16.mxu0 0
      %390 = vmatmul.mubr.bf16.gmra.mxu0 %v294
      %v391 = vpop.f32.mrf.mxu0
      %v392 = vadd.f32 0.0, %v391
      %v393 = vpop.f32.mrf.mxu0
      %v394 = vpop.f32.mrf.mxu0
      %v395 = vadd.f32 0.0, %v394
      %v396 = vpop.f32.mrf.mxu0
      %397 = vmatprep.mubr.bf16.mxu0 0
      %398 = vmatmul.mubr.bf16.gmra.mxu0 %v295
      %v399 = vpop.f32.mrf.mxu0
      %v400 = vadd.f32 0.0, %v399
      %v401 = vpop.f32.mrf.mxu0
      %v402 = vpop.f32.mrf.mxu0
      %v403 = vadd.f32 0.0, %v402
      %v404 = vpop.f32.mrf.mxu0
      %405 = vmatprep.mubr.bf16.mxu0 0
      %406 = vmatmul.mubr.bf16.gmra.mxu0 %v296
      %v407 = vpop.f32.mrf.mxu0
      %v408 = vadd.f32 0.0, %v407
      %v409 = vpop.f32.mrf.mxu0
      %v410 = vpop.f32.mrf.mxu0
      %v411 = vadd.f32 0.0, %v410
      %v412 = vpop.f32.mrf.mxu0
      %413 = vdwg.mxu0
      %v414 = vpack.c.bf16 %v387, %v384
      %v415 = vpack.c.bf16 %v395, %v392
      %v416 = vpack.c.bf16 %v403, %v400
      %v417 = vpack.c.bf16 %v411, %v408
      %v422 = vunpack.c.l.b16 %v414
      %v423 = vunpack.c.h.b16 %v414
      %v424 = vunpack.c.l.b16 %v415
      %v425 = vunpack.c.h.b16 %v415
      %v426 = vunpack.c.l.b16 %v416
      %v427 = vunpack.c.h.b16 %v416
      %v428 = vunpack.c.l.b16 %v417
      %v429 = vunpack.c.h.b16 %v417
      %v430 = vpack.c.b16 %v422, %v422
      %v431 = vpack.c.b16 %v423, %v423
      %v432 = vpack.c.b16 %v424, %v424
      %v433 = vpack.c.b16 %v425, %v425
      %v434 = vpack.c.b16 %v426, %v426
      %v435 = vpack.c.b16 %v427, %v427
      %v436 = vpack.c.b16 %v428, %v428
      %v437 = vpack.c.b16 %v429, %v429
      %446 = vst [vmem:[%s235] sm:$0xf] %v430
      %447 = vst [vmem:[%s235 + $0x4] sm:$0xf] %v431
      %448 = vst [vmem:[%s235 + $0x8] sm:$0xf] %v432
      %449 = vst [vmem:[%s235 + $0xc] sm:$0xf] %v433
      %450 = vst [vmem:[%s235 + $0x10] sm:$0xf] %v434
      %451 = vst [vmem:[%s235 + $0x14] sm:$0xf] %v435
      %452 = vst [vmem:[%s235 + $0x18] sm:$0xf] %v436
      %453 = vst [vmem:[%s235 + $0x1c] sm:$0xf] %v437
      %v454 = vld [vmem:[%s241] sm:$0x1]
      %v455 = vadd.f32 %v384, %v387
      %v456 = vadd.f32 %v455, %v392
      %v457 = vadd.f32 %v456, %v395
      %v458 = vadd.f32 %v457, %v400
      %v459 = vadd.f32 %v458, %v403
      %v460 = vadd.f32 %v459, %v408
      %v461 = vadd.f32 %v460, %v411
      %v462 = vrot.slane %v461, 4
      %v463 = vadd.f32 %v461, %v462
      %v464 = vrot.slane %v463, 2
      %v465 = vadd.f32 %v463, %v464
      %v466 = vrot.slane %v465, 1
      %v467 = vadd.f32 %v465, %v466
      %v468 = vadd.f32 %v454, %v467
      %469 = vst [vmem:[%s241] sm:$0x1] %v468
      %v470 = vld [vmem:[%s245] sm:$0x1]
      %v471 = vmul.f32 %v384, %v384
      %v472 = vmul.f32 %v387, %v387
      %v473 = vmul.f32 %v392, %v392
      %v474 = vmul.f32 %v395, %v395
      %v475 = vmul.f32 %v400, %v400
      %v476 = vmul.f32 %v403, %v403
      %v477 = vmul.f32 %v408, %v408
      %v478 = vmul.f32 %v411, %v411
      %v479 = vadd.f32 %v471, %v472
      %v480 = vadd.f32 %v479, %v473
      %v481 = vadd.f32 %v480, %v474
      %v482 = vadd.f32 %v481, %v475
      %v483 = vadd.f32 %v482, %v476
      %v484 = vadd.f32 %v483, %v477
      %v485 = vadd.f32 %v484, %v478
      %v486 = vrot.slane %v485, 4
      %v487 = vadd.f32 %v485, %v486
      %v488 = vrot.slane %v487, 2
      %v489 = vadd.f32 %v487, %v488
      %v490 = vrot.slane %v489, 1
      %v491 = vadd.f32 %v489, %v490
      %v492 = vadd.f32 %v470, %v491
      %493 = vst [vmem:[%s245] sm:$0x1] %v492
      %s494 = sadd.s32 %s20, %s21
      %s495 = smul.u32 8, %s494
      %p496 = scmp.lt.s32.totalorder %s495, 15
      %s497 = scalar_select %p496, %s495, 15
      %s498 = smul.addr %s497, 4
      %s499 = scalar_lea.vmem %s2, %s498
      %p500 = scmp.lt.s32.totalorder %s20, 1
      %s501 = scalar_select %p500, %s20, 1
      %s502 = smul.addr %s501, 8
      %s503 = scalar_lea.vmem %s3, %s502
      %p504 = scmp.lt.s32.totalorder %s20, 1
      %s505 = scalar_select %p504, %s20, 1
      %s506 = smul.addr %s505, 8
      %s507 = scalar_lea.vmem %s4, %s506
      // Predicated region
      $region33: #{bottleneck_forward.4} parent=27 // pred_check
        %p508 = pneg %p97
      $region34: #{bottleneck_forward.4} parent=27 // pred_check_branch
        %510 = sbr.rel (%p508) target = $region36
      $region35: #{bottleneck_forward.4} parent=27 // pred_region
        %s511 = sadd.s32 %s20, %s21
        %s512 = smul.u32 8, %s511
      $region36: #{bottleneck_forward.4} parent=27 // pred_fallthru
        _
      // Predicated region
      $region37: #{bottleneck_forward.4} parent=27 // pred_check
        %p513 = pneg %p123
      $region38: #{bottleneck_forward.4} parent=27 // pred_check_branch
        %515 = sbr.rel (%p513) target = $region40
      $region39: #{bottleneck_forward.4} parent=27 // pred_region
        _
      $region40: #{bottleneck_forward.4} parent=27 // pred_fallthru
        _
      // Predicated region
      $region41: #{bottleneck_forward.4} parent=27 // pred_check
        %p516 = pneg %p149
      $region42: #{bottleneck_forward.4} parent=27 // pred_check_branch
        %518 = sbr.rel (%p516) target = $region44
      $region43: #{bottleneck_forward.4} parent=27 // pred_region
        _
      $region44: #{bottleneck_forward.4} parent=27 // pred_fallthru
        _
    $region28: #{bottleneck_forward.4} parent=5 // pred_fallthru
      _
    %p519 = scmp.le.s32.totalorder 2, %s11
    // Predicated region
    $region45: #{bottleneck_forward.4} parent=5 // pred_check
      %p520 = pneg %p519
    $region46: #{bottleneck_forward.4} parent=5 // pred_check_branch
      %522 = sbr.rel (%p520) target = $region48
    $region47: #{bottleneck_forward.4} parent=5 // pred_region
      %s523 = ssub.s32 %s11, 2
      // Predicated region
      $region49: #{bottleneck_forward.4} parent=47 // pred_check
        %p524 = pneg %p103
      $region50: #{bottleneck_forward.4} parent=47 // pred_check_branch
        %526 = sbr.rel (%p524) target = $region52
      $region51: #{bottleneck_forward.4} parent=47 // pred_region
        %s527 = sadd.s32 %s22, %s23
        %s528 = smul.u32 8, %s527
        %p529 = scmp.lt.s32.totalorder %s528, 15
        %s530 = scalar_select %p529, %s528, 15
        %s531 = smul.addr %s530, 4
        %s532 = scalar_lea.vmem %s2, %s531
      $region52: #{bottleneck_forward.4} parent=47 // pred_fallthru
        _
      // Predicated region
      $region53: #{bottleneck_forward.4} parent=47 // pred_check
        %p533 = pneg %p129
      $region54: #{bottleneck_forward.4} parent=47 // pred_check_branch
        %535 = sbr.rel (%p533) target = $region56
      $region55: #{bottleneck_forward.4} parent=47 // pred_region
        %p536 = scmp.lt.s32.totalorder %s22, 1
        %s537 = scalar_select %p536, %s22, 1
        %s538 = smul.addr %s537, 8
        %s539 = scalar_lea.vmem %s3, %s538
      $region56: #{bottleneck_forward.4} parent=47 // pred_fallthru
        _
      // Predicated region
      $region57: #{bottleneck_forward.4} parent=47 // pred_check
        %p540 = pneg %p155
      $region58: #{bottleneck_forward.4} parent=47 // pred_check_branch
        %542 = sbr.rel (%p540) target = $region60
      $region59: #{bottleneck_forward.4} parent=47 // pred_region
        %p543 = scmp.lt.s32.totalorder %s22, 1
        %s544 = scalar_select %p543, %s22, 1
        %s545 = smul.addr %s544, 8
        %s546 = scalar_lea.vmem %s4, %s545
      $region60: #{bottleneck_forward.4} parent=47 // pred_fallthru
        _
    $region48: #{bottleneck_forward.4} parent=5 // pred_fallthru
      _
  $region6: #{bottleneck_forward.4} parent=0 // loop_footer
    %s15 = sadd.s32 1, %s11
  $region7: #{bottleneck_forward.4} parent=0 // loop_footer_branch
    %10 = sbr.rel target = $region3
  $region8: #{bottleneck_forward.4} parent=0 // loop_exit
    _

// kernel: bottleneck_forward.6
$region0: #{bottleneck_forward.6}
  #allocation0 [shape = 'u32[]', space=smem, size = 0x4, offset = 0x4, fixed_abs, tag = 'smem constant byte address 0x4 - core index']
  #allocation1 [shape = 'u32[144,128]{1,0:T(1,128)}', space=vmem, size = 0x12000, scoped, tag = 'internal scratch']
  %s0 = inlined_call_operand.vmem [shape: bf16[128,128], index: 0, kind: input, shape index: {}]
  %s1 = inlined_call_operand.vmem [shape: f32[1,128], index: 1, kind: input, shape index: {}]
  %s2 = inlined_call_operand.vmem [shape: f32[1,128], index: 2, kind: input, shape index: {}]
  %s3 = inlined_call_operand.vmem [shape: bf16[128,128], index: 3, kind: input, shape index: {}]
  %s4 = inlined_call_operand.vmem [shape: bf16[128,128], index: 4, kind: output, shape index: {0}]
  %s5 = inlined_call_operand.vmem [shape: f32[16,128], index: 5, kind: output, shape index: {1}]
  %s6 = inlined_call_operand.vmem [shape: f32[16,128], index: 6, kind: output, shape index: {2}]
  %7 = xla_tuple %s4, %s5, %s6
  %s8 = sld [smem:[#allocation0]]
  $region69: #{bottleneck_forward.6} parent=0
    _
  %s10 = ssub.s32 1, %s8
  %s11 = scalar_select 0, %s10, %s8
  loop: start=0, step=1, limit=4
  $region2: #{bottleneck_forward.6} parent=0 // loop_pre_header
    _
  $region3: #{bottleneck_forward.6} parent=0 // loop_header
    %s13 = sphi 0, %s17
    %p14 = scmp.ge.s32.totalorder %s13, 4
    %s20 = sphi 0, %s32
    %s21 = sphi 0, %s28
    %s22 = sphi 0, %s20
    %s23 = sphi 0, %s21
    %s24 = sphi 0, %s22
    %s25 = sphi 0, %s23
    %s37 = sphi 0, %s39
    %s40 = sphi 0, %s37
    %s41 = sphi 0, %s40
    %s57 = sphi 0, %s41
    %s61 = sphi 0, %s61
    %s63 = sphi 0, %s61
    %s64 = sphi 0, %s63
    %s78 = sphi 0, %s64
    %s82 = sphi 0, %s82
    %s84 = sphi 0, %s82
    %s85 = sphi 0, %s84
    %s99 = sphi 0, %s85
    %s103 = sphi 0, %s103
    %s105 = sphi 0, %s103
    %s106 = sphi 0, %s105
    %s120 = sphi 0, %s106
    %s128 = sphi 0, %s130
    %s131 = sphi 0, %s128
    %s132 = sphi 0, %s131
    %s148 = sphi 0, %s132
    %s154 = sphi 0, %s156
    %s157 = sphi 0, %s154
    %s158 = sphi 0, %s157
    %s174 = sphi 0, %s158
    %s180 = sphi 0, %s182
    %s183 = sphi 0, %s180
    %s184 = sphi 0, %s183
    %s200 = sphi 0, %s184
  $region4: #{bottleneck_forward.6} parent=0 // loop_header_branch
    %16 = sbr.rel (%p14) target = $region8
  $region5: #{bottleneck_forward.6} parent=0 // loop_body
    %s18 = ssub.s32 %s13, 1
    %s19 = ssub.s32 %s13, 2
    %s26 = sadd.s32 1, %s21
    %p27 = scmp.ge.s32.totalorder %s26, 1
    %s28 = scalar_select %p27, 0, %s26
    %s29 = sadd.s32 1, %s20
    %s30 = scalar_select %p27, %s29, %s20
    %p31 = scmp.ge.s32.totalorder %s30, 2
    %s32 = scalar_select %p31, 0, %s30
    %s33 = sadd.s32 %s20, %s21
    %s34 = sadd.s32 %s32, %s28
    %s35 = ssub.s32 %s33, %s34
    %p36 = scmp.eq.s32.totalorder %s35, 0
    %s38 = sadd.s32 %s37, 1
    %s39 = scalar_select %p36, %s37, %s38
    %p42 = pneg %p36
    %p43 = scmp.eq.s32.totalorder %s13, 1
    %p44 = por %p42, %p43
    %p45 = scmp.ne.s32.totalorder %s37, %s40
    %p46 = scmp.eq.s32.totalorder %s13, 0
    %p47 = por %p45, %p46
    %p48 = scmp.ne.s32.totalorder %s37, %s40
    %p49 = scmp.eq.s32.totalorder %s18, 1
    %p50 = por %p48, %p49
    %p51 = scmp.ne.s32.totalorder %s40, %s41
    %p52 = scmp.eq.s32.totalorder %s18, 0
    %p53 = por %p51, %p52
    %p54 = scmp.ne.s32.totalorder %s40, %s41
    %p55 = scmp.eq.s32.totalorder %s19, 1
    %p56 = por %p54, %p55
    %p58 = scmp.ne.s32.totalorder %s41, %s57
    %p59 = scmp.eq.s32.totalorder %s19, 0
    %p60 = por %p58, %p59
    %s62 = sadd.s32 %s61, 1
    %p65 = scmp.eq.s32.totalorder %s13, 1
    %p66 = scmp.ne.s32.totalorder %s61, %s63
    %p67 = scmp.eq.s32.totalorder %s13, 0
    %p68 = por %p66, %p67
    %p69 = scmp.ne.s32.totalorder %s61, %s63
    %p70 = scmp.eq.s32.totalorder %s18, 1
    %p71 = por %p69, %p70
    %p72 = scmp.ne.s32.totalorder %s63, %s64
    %p73 = scmp.eq.s32.totalorder %s18, 0
    %p74 = por %p72, %p73
    %p75 = scmp.ne.s32.totalorder %s63, %s64
    %p76 = scmp.eq.s32.totalorder %s19, 1
    %p77 = por %p75, %p76
    %p79 = scmp.ne.s32.totalorder %s64, %s78
    %p80 = scmp.eq.s32.totalorder %s19, 0
    %p81 = por %p79, %p80
    %s83 = sadd.s32 %s82, 1
    %p86 = scmp.eq.s32.totalorder %s13, 1
    %p87 = scmp.ne.s32.totalorder %s82, %s84
    %p88 = scmp.eq.s32.totalorder %s13, 0
    %p89 = por %p87, %p88
    %p90 = scmp.ne.s32.totalorder %s82, %s84
    %p91 = scmp.eq.s32.totalorder %s18, 1
    %p92 = por %p90, %p91
    %p93 = scmp.ne.s32.totalorder %s84, %s85
    %p94 = scmp.eq.s32.totalorder %s18, 0
    %p95 = por %p93, %p94
    %p96 = scmp.ne.s32.totalorder %s84, %s85
    %p97 = scmp.eq.s32.totalorder %s19, 1
    %p98 = por %p96, %p97
    %p100 = scmp.ne.s32.totalorder %s85, %s99
    %p101 = scmp.eq.s32.totalorder %s19, 0
    %p102 = por %p100, %p101
    %s104 = sadd.s32 %s103, 1
    %p107 = scmp.eq.s32.totalorder %s13, 1
    %p108 = scmp.ne.s32.totalorder %s103, %s105
    %p109 = scmp.eq.s32.totalorder %s13, 0
    %p110 = por %p108, %p109
    %p111 = scmp.ne.s32.totalorder %s103, %s105
    %p112 = scmp.eq.s32.totalorder %s18, 1
    %p113 = por %p111, %p112
    %p114 = scmp.ne.s32.totalorder %s105, %s106
    %p115 = scmp.eq.s32.totalorder %s18, 0
    %p116 = por %p114, %p115
    %p117 = scmp.ne.s32.totalorder %s105, %s106
    %p118 = scmp.eq.s32.totalorder %s19, 1
    %p119 = por %p117, %p118
    %p121 = scmp.ne.s32.totalorder %s106, %s120
    %p122 = scmp.eq.s32.totalorder %s19, 0
    %p123 = por %p121, %p122
    %s124 = sadd.s32 %s20, %s21
    %s125 = sadd.s32 %s32, %s28
    %s126 = ssub.s32 %s124, %s125
    %p127 = scmp.eq.s32.totalorder %s126, 0
    %s129 = sadd.s32 %s128, 1
    %s130 = scalar_select %p127, %s128, %s129
    %p133 = pneg %p127
    %p134 = scmp.eq.s32.totalorder %s13, 1
    %p135 = por %p133, %p134
    %p136 = scmp.ne.s32.totalorder %s128, %s131
    %p137 = scmp.eq.s32.totalorder %s13, 0
    %p138 = por %p136, %p137
    %p139 = scmp.ne.s32.totalorder %s128, %s131
    %p140 = scmp.eq.s32.totalorder %s18, 1
    %p141 = por %p139, %p140
    %p142 = scmp.ne.s32.totalorder %s131, %s132
    %p143 = scmp.eq.s32.totalorder %s18, 0
    %p144 = por %p142, %p143
    %p145 = scmp.ne.s32.totalorder %s131, %s132
    %p146 = scmp.eq.s32.totalorder %s19, 1
    %p147 = por %p145, %p146
    %p149 = scmp.ne.s32.totalorder %s132, %s148
    %p150 = scmp.eq.s32.totalorder %s19, 0
    %p151 = por %p149, %p150
    %s152 = ssub.s32 %s20, %s32
    %p153 = scmp.eq.s32.totalorder %s152, 0
    %s155 = sadd.s32 %s154, 1
    %s156 = scalar_select %p153, %s154, %s155
    %p159 = pneg %p153
    %p160 = scmp.eq.s32.totalorder %s13, 1
    %p161 = por %p159, %p160
    %p162 = scmp.ne.s32.totalorder %s154, %s157
    %p163 = scmp.eq.s32.totalorder %s13, 0
    %p164 = por %p162, %p163
    %p165 = scmp.ne.s32.totalorder %s154, %s157
    %p166 = scmp.eq.s32.totalorder %s18, 1
    %p167 = por %p165, %p166
    %p168 = scmp.ne.s32.totalorder %s157, %s158
    %p169 = scmp.eq.s32.totalorder %s18, 0
    %p170 = por %p168, %p169
    %p171 = scmp.ne.s32.totalorder %s157, %s158
    %p172 = scmp.eq.s32.totalorder %s19, 1
    %p173 = por %p171, %p172
    %p175 = scmp.ne.s32.totalorder %s158, %s174
    %p176 = scmp.eq.s32.totalorder %s19, 0
    %p177 = por %p175, %p176
    %s178 = ssub.s32 %s20, %s32
    %p179 = scmp.eq.s32.totalorder %s178, 0
    %s181 = sadd.s32 %s180, 1
    %s182 = scalar_select %p179, %s180, %s181
    %p185 = pneg %p179
    %p186 = scmp.eq.s32.totalorder %s13, 1
    %p187 = por %p185, %p186
    %p188 = scmp.ne.s32.totalorder %s180, %s183
    %p189 = scmp.eq.s32.totalorder %s13, 0
    %p190 = por %p188, %p189
    %p191 = scmp.ne.s32.totalorder %s180, %s183
    %p192 = scmp.eq.s32.totalorder %s18, 1
    %p193 = por %p191, %p192
    %p194 = scmp.ne.s32.totalorder %s183, %s184
    %p195 = scmp.eq.s32.totalorder %s18, 0
    %p196 = por %p194, %p195
    %p197 = scmp.ne.s32.totalorder %s183, %s184
    %p198 = scmp.eq.s32.totalorder %s19, 1
    %p199 = por %p197, %p198
    %p201 = scmp.ne.s32.totalorder %s184, %s200
    %p202 = scmp.eq.s32.totalorder %s19, 0
    %p203 = por %p201, %p202
    %p204 = scmp.le.s32.totalorder 1, %s13
    %p205 = scmp.lt.s32.totalorder %s13, 3
    %p206 = pnand %p204, %p205
    %p207 = pneg %p206
    // Predicated region
    $region9: #{bottleneck_forward.6} parent=5 // pred_check
      _
    $region10: #{bottleneck_forward.6} parent=5 // pred_check_branch
      %209 = sbr.rel (%p206) target = $region12
    $region11: #{bottleneck_forward.6} parent=5 // pred_region
      %s210 = ssub.s32 %s13, 1
      // Predicated region
      $region13: #{bottleneck_forward.6} parent=11 // pred_check
        %p211 = pneg %p74
      $region14: #{bottleneck_forward.6} parent=11 // pred_check_branch
        %213 = sbr.rel (%p211) target = $region16
      $region15: #{bottleneck_forward.6} parent=11 // pred_region
        _
      $region16: #{bottleneck_forward.6} parent=11 // pred_fallthru
        _
      // Predicated region
      $region17: #{bottleneck_forward.6} parent=11 // pred_check
        %p214 = pneg %p95
      $region18: #{bottleneck_forward.6} parent=11 // pred_check_branch
        %216 = sbr.rel (%p214) target = $region20
      $region19: #{bottleneck_forward.6} parent=11 // pred_region
        _
      $region20: #{bottleneck_forward.6} parent=11 // pred_fallthru
        _
      // Predicated region
      $region21: #{bottleneck_forward.6} parent=11 // pred_check
        %p217 = pneg %p116
      $region22: #{bottleneck_forward.6} parent=11 // pred_check_branch
        %219 = sbr.rel (%p217) target = $region24
      $region23: #{bottleneck_forward.6} parent=11 // pred_region
        _
      $region24: #{bottleneck_forward.6} parent=11 // pred_fallthru
        _
    $region12: #{bottleneck_forward.6} parent=5 // pred_fallthru
      _
    %p220 = scmp.lt.s32.totalorder %s13, 2
    // Predicated region
    $region25: #{bottleneck_forward.6} parent=5 // pred_check
      %p221 = pneg %p220
    $region26: #{bottleneck_forward.6} parent=5 // pred_check_branch
      %223 = sbr.rel (%p221) target = $region28
    $region27: #{bottleneck_forward.6} parent=5 // pred_region
      // Predicated region
      $region29: #{bottleneck_forward.6} parent=27 // pred_check
        %p224 = pneg %p47
      $region30: #{bottleneck_forward.6} parent=27 // pred_check_branch
        %226 = sbr.rel (%p224) target = $region32
      $region31: #{bottleneck_forward.6} parent=27 // pred_region
        %s227 = sadd.s32 %s20, %s21
        %s228 = smul.u32 8, %s227
        %p229 = scmp.lt.s32.totalorder %s228, 15
        %s230 = scalar_select %p229, %s228, 15
        %s231 = smul.addr %s230, 4
        %s232 = scalar_lea.vmem %s0, %s231
        %s233 = sadd.s32 %s20, %s21
        %s234 = smul.u32 8, %s233
      $region32: #{bottleneck_forward.6} parent=27 // pred_fallthru
        _
    $region28: #{bottleneck_forward.6} parent=5 // pred_fallthru
      _
    %p235 = scmp.le.s32.totalorder 1, %s13
    %p236 = scmp.lt.s32.totalorder %s13, 3
    %p237 = pnand %p235, %p236
    %p238 = pneg %p237
    // Predicated region
    $region33: #{bottleneck_forward.6} parent=5 // pred_check
      _
    $region34: #{bottleneck_forward.6} parent=5 // pred_check_branch
      %240 = sbr.rel (%p237) target = $region36
    $region35: #{bottleneck_forward.6} parent=5 // pred_region
      %s241 = ssub.s32 %s13, 1
      %s242 = sadd.s32 %s22, %s23
      %s243 = smul.u32 8, %s242
      %p244 = scmp.lt.s32.totalorder %s243, 15
      %s245 = scalar_select %p244, %s243, 15
      %s246 = smul.addr %s245, 4
      %s247 = scalar_lea.vmem %s0, %s246
      %p248 = pneg %p53
      %p249 = pneg %p50
      %p250 = pneg %p74
      %p251 = pneg %p71
      %p252 = pneg %p95
      %p253 = pneg %p92
      %p254 = pneg %p116
      %p255 = pneg %p113
      %p256 = pneg %p144
      %p257 = pneg %p141
      %s258 = sadd.s32 %s22, %s23
      %s259 = smul.u32 8, %s258
      %p260 = scmp.lt.s32.totalorder %s259, 15
      %s261 = scalar_select %p260, %s259, 15
      %s262 = smul.addr %s261, 4
      %s263 = scalar_lea.vmem %s4, %s262
      %p264 = pneg %p170
      %p265 = pneg %p167
      %p266 = scmp.lt.s32.totalorder %s22, 1
      %s267 = scalar_select %p266, %s22, 1
      %s268 = smul.addr %s267, 8
      %s269 = scalar_lea.vmem %s5, %s268
      %p270 = pneg %p196
      %p271 = pneg %p193
      %p272 = scmp.lt.s32.totalorder %s22, 1
      %s273 = scalar_select %p272, %s22, 1
      %s274 = smul.addr %s273, 8
      %s275 = scalar_lea.vmem %s6, %s274
      %s276 = sadd.s32 %s22, %s23
      %s277 = smul.u32 8, %s276
      %p278 = scmp.lt.s32.totalorder %s277, 15
      %s279 = scalar_select %p278, %s277, 15
      %s280 = smul.addr %s279, 4
      %s281 = scalar_lea.vmem %s0, %s280
      %s282 = sadd.s32 %s22, %s23
      %s283 = smul.u32 8, %s282
      %s284 = sadd.s32 %s22, %s23
      %s285 = smul.u32 8, %s284
      %p286 = scmp.lt.s32.totalorder %s285, 15
      %s287 = scalar_select %p286, %s285, 15
      %s288 = smul.addr %s287, 4
      %s289 = scalar_lea.vmem %s4, %s288
      %s290 = sadd.s32 %s22, %s23
      %s291 = smul.u32 8, %s290
      %p292 = scmp.lt.s32.totalorder %s22, 1
      %s293 = scalar_select %p292, %s22, 1
      %s294 = smul.addr %s293, 8
      %s295 = scalar_lea.vmem %s5, %s294
      %p296 = scmp.lt.s32.totalorder %s22, 1
      %s297 = scalar_select %p296, %s22, 1
      %s298 = smul.addr %s297, 8
      %s299 = scalar_lea.vmem %s6, %s298
      %p301 = scmp.eq.s32.totalorder %s23, 0
      // Predicated region
      $region37: #{bottleneck_forward.6} parent=35 // pred_check
        %p302 = pneg %p301
      $region38: #{bottleneck_forward.6} parent=35 // pred_check_branch
        %304 = sbr.rel (%p302) target = $region40
      $region39: #{bottleneck_forward.6} parent=35 // pred_region
        %305 = vst [vmem:[%s295] sm:$0xff] 0.0
        %306 = vst [vmem:[%s299] sm:$0xff] 0.0
      $region40: #{bottleneck_forward.6} parent=35 // pred_fallthru
        _
      %v307 = vld [vmem:[%s281] sm:$0xf]
      %v308 = vld [vmem:[%s281 + $0x4] sm:$0xf]
      %v309 = vld [vmem:[%s281 + $0x8] sm:$0xf]
      %v310 = vld [vmem:[%s281 + $0xc] sm:$0xf]
      %v311 = vld [vmem:[%s281 + $0x10] sm:$0xf]
      %v312 = vld [vmem:[%s281 + $0x14] sm:$0xf]
      %v313 = vld [vmem:[%s281 + $0x18] sm:$0xf]
      %v314 = vld [vmem:[%s281 + $0x1c] sm:$0xf]
      %v315 = vld [vmem:[%s1] sm:$0x1]
      %v316 = vunpack.c.l.bf16 %v307
      %v317 = vunpack.c.l.bf16 %v308
      %v318 = vunpack.c.l.bf16 %v309
      %v319 = vunpack.c.l.bf16 %v310
      %v320 = vunpack.c.l.bf16 %v311
      %v321 = vunpack.c.l.bf16 %v312
      %v322 = vunpack.c.l.bf16 %v313
      %v323 = vunpack.c.l.bf16 %v314
      %v325 = vlaneseq
      %v326 = vshrl.u32 %v325, 7
      %v327 = vsub.s32 0, %v326
      %v328 = vrot.slane %v315, %v327
      %v330 = vmul.f32 %v316, %v328
      %v331 = vmul.f32 %v317, %v328
      %v332 = vmul.f32 %v318, %v328
      %v333 = vmul.f32 %v319, %v328
      %v334 = vmul.f32 %v320, %v328
      %v335 = vmul.f32 %v321, %v328
      %v336 = vmul.f32 %v322, %v328
      %v337 = vmul.f32 %v323, %v328
      %v338 = vld [vmem:[%s2] sm:$0x1]
      %v340 = vlaneseq
      %v341 = vshrl.u32 %v340, 7
      %v342 = vsub.s32 0, %v341
      %v343 = vrot.slane %v338, %v342
      %v345 = vadd.f32 %v330, %v343
      %v346 = vadd.f32 %v331, %v343
      %v347 = vadd.f32 %v332, %v343
      %v348 = vadd.f32 %v333, %v343
      %v349 = vadd.f32 %v334, %v343
      %v350 = vadd.f32 %v335, %v343
      %v351 = vadd.f32 %v336, %v343
      %v352 = vadd.f32 %v337, %v343
      %v353 = vmax.f32 %v345, 0.0
      %v354 = vmax.f32 %v346, 0.0
      %v355 = vmax.f32 %v347, 0.0
      %v356 = vmax.f32 %v348, 0.0
      %v357 = vmax.f32 %v349, 0.0
      %v358 = vmax.f32 %v350, 0.0
      %v359 = vmax.f32 %v351, 0.0
      %v360 = vmax.f32 %v352, 0.0
      %v361 = vpack.c.bf16 %v354, %v353
      %v362 = vpack.c.bf16 %v356, %v355
      %v363 = vpack.c.bf16 %v358, %v357
      %v364 = vpack.c.bf16 %v360, %v359
      %v365 = vld [vmem:[%s3] sm:$0xf]
      %v366 = vld [vmem:[%s3 + $0x4] sm:$0xf]
      %v367 = vld [vmem:[%s3 + $0x8] sm:$0xf]
      %v368 = vld [vmem:[%s3 + $0xc] sm:$0xf]
      %v369 = vld [vmem:[%s3 + $0x10] sm:$0xf]
      %v370 = vld [vmem:[%s3 + $0x14] sm:$0xf]
      %v371 = vld [vmem:[%s3 + $0x18] sm:$0xf]
      %v372 = vld [vmem:[%s3 + $0x1c] sm:$0xf]
      %v373 = vld [vmem:[%s3 + $0x20] sm:$0xf]
      %v374 = vld [vmem:[%s3 + $0x24] sm:$0xf]
      %v375 = vld [vmem:[%s3 + $0x28] sm:$0xf]
      %v376 = vld [vmem:[%s3 + $0x2c] sm:$0xf]
      %v377 = vld [vmem:[%s3 + $0x30] sm:$0xf]
      %v378 = vld [vmem:[%s3 + $0x34] sm:$0xf]
      %v379 = vld [vmem:[%s3 + $0x38] sm:$0xf]
      %v380 = vld [vmem:[%s3 + $0x3c] sm:$0xf]
      %v397 = vunpack.c.l.b16 %v365
      %v398 = vunpack.c.l.b16 %v366
      %v399 = vunpack.c.l.b16 %v367
      %v400 = vunpack.c.l.b16 %v368
      %v401 = vunpack.c.l.b16 %v369
      %v402 = vunpack.c.l.b16 %v370
      %v403 = vunpack.c.l.b16 %v371
      %v404 = vunpack.c.l.b16 %v372
      %v405 = vunpack.c.l.b16 %v373
      %v406 = vunpack.c.l.b16 %v374
      %v407 = vunpack.c.l.b16 %v375
      %v408 = vunpack.c.l.b16 %v376
      %v409 = vunpack.c.l.b16 %v377
      %v410 = vunpack.c.l.b16 %v378
      %v411 = vunpack.c.l.b16 %v379
      %v412 = vunpack.c.l.b16 %v380
      %v413 = vpack.c.b16 %v398, %v397
      %v414 = vpack.c.b16 %v400, %v399
      %v415 = vpack.c.b16 %v402, %v401
      %v416 = vpack.c.b16 %v404, %v403
      %v417 = vpack.c.b16 %v406, %v405
      %v418 = vpack.c.b16 %v408, %v407
      %v419 = vpack.c.b16 %v410, %v409
      %v420 = vpack.c.b16 %v412, %v411
      %429 = vmatprep.subr.bf16.mxu0 0
      %430 = vmatpush1.bf16.msra.mxu0 %v420
      %431 = vmatprep.subr.bf16.mxu0 0
      %432 = vmatpush1.bf16.msra.mxu0 %v419
      %433 = vmatprep.subr.bf16.mxu0 0
      %434 = vmatpush1.bf16.msra.mxu0 %v418
      %435 = vmatprep.subr.bf16.mxu0 0
      %436 = vmatpush1.bf16.msra.mxu0 %v417
      %437 = vmatprep.subr.bf16.mxu0 0
      %438 = vmatpush1.bf16.msra.mxu0 %v416
      %439 = vmatprep.subr.bf16.mxu0 0
      %440 = vmatpush1.bf16.msra.mxu0 %v415
      %441 = vmatprep.subr.bf16.mxu0 0
      %442 = vmatpush1.bf16.msra.mxu0 %v414
      %443 = vmatprep.subr.bf16.mxu0 0
      %444 = vmatpush1.bf16.msra.mxu0 %v413
      %445 = vmatprep.subr.bf16.mxu0 0
      %446 = vmatpush2.bf16.msra.mxu0 0
      %447 = vmatprep.subr.bf16.mxu0 0
      %448 = vmatpush2.bf16.msra.mxu0 0
      %449 = vmatprep.subr.bf16.mxu0 0
      %450 = vmatpush2.bf16.msra.mxu0 0
      %451 = vmatprep.subr.bf16.mxu0 0
      %452 = vmatpush2.bf16.msra.mxu0 0
      %453 = vmatprep.subr.bf16.mxu0 0
      %454 = vmatpush2.bf16.msra.mxu0 0
      %455 = vmatprep.subr.bf16.mxu0 0
      %456 = vmatpush2.bf16.msra.mxu0 0
      %457 = vmatprep.subr.bf16.mxu0 0
      %458 = vmatpush2.bf16.msra.mxu0 0
      %459 = vmatprep.subr.bf16.mxu0 0
      %460 = vmatpush2.bf16.msra.mxu0 0
      %461 = vmatprep.mubr.bf16.mxu0 0
      %462 = vmatmul.mubr.bf16.gmra.mxu0 %v361
      %v463 = vpop.f32.mrf.mxu0
      %v464 = vadd.f32 0.0, %v463
      %v465 = vpop.f32.mrf.mxu0
      %v466 = vpop.f32.mrf.mxu0
      %v467 = vadd.f32 0.0, %v466
      %v468 = vpop.f32.mrf.mxu0
      %469 = vmatprep.mubr.bf16.mxu0 0
      %470 = vmatmul.mubr.bf16.gmra.mxu0 %v362
      %v471 = vpop.f32.mrf.mxu0
      %v472 = vadd.f32 0.0, %v471
      %v473 = vpop.f32.mrf.mxu0
      %v474 = vpop.f32.mrf.mxu0
      %v475 = vadd.f32 0.0, %v474
      %v476 = vpop.f32.mrf.mxu0
      %477 = vmatprep.mubr.bf16.mxu0 0
      %478 = vmatmul.mubr.bf16.gmra.mxu0 %v363
      %v479 = vpop.f32.mrf.mxu0
      %v480 = vadd.f32 0.0, %v479
      %v481 = vpop.f32.mrf.mxu0
      %v482 = vpop.f32.mrf.mxu0
      %v483 = vadd.f32 0.0, %v482
      %v484 = vpop.f32.mrf.mxu0
      %485 = vmatprep.mubr.bf16.mxu0 0
      %486 = vmatmul.mubr.bf16.gmra.mxu0 %v364
      %v487 = vpop.f32.mrf.mxu0
      %v488 = vadd.f32 0.0, %v487
      %v489 = vpop.f32.mrf.mxu0
      %v490 = vpop.f32.mrf.mxu0
      %v491 = vadd.f32 0.0, %v490
      %v492 = vpop.f32.mrf.mxu0
      %493 = vdwg.mxu0
      %v494 = vpack.c.bf16 %v467, %v464
      %v495 = vpack.c.bf16 %v475, %v472
      %v496 = vpack.c.bf16 %v483, %v480
      %v497 = vpack.c.bf16 %v491, %v488
      %v502 = vunpack.c.l.b16 %v494
      %v503 = vunpack.c.h.b16 %v494
      %v504 = vunpack.c.l.b16 %v495
      %v505 = vunpack.c.h.b16 %v495
      %v506 = vunpack.c.l.b16 %v496
      %v507 = vunpack.c.h.b16 %v496
      %v508 = vunpack.c.l.b16 %v497
      %v509 = vunpack.c.h.b16 %v497
      %v510 = vpack.c.b16 %v502, %v502
      %v511 = vpack.c.b16 %v503, %v503
      %v512 = vpack.c.b16 %v504, %v504
      %v513 = vpack.c.b16 %v505, %v505
      %v514 = vpack.c.b16 %v506, %v506
      %v515 = vpack.c.b16 %v507, %v507
      %v516 = vpack.c.b16 %v508, %v508
      %v517 = vpack.c.b16 %v509, %v509
      %526 = vst [vmem:[%s289] sm:$0xf] %v510
      %527 = vst [vmem:[%s289 + $0x4] sm:$0xf] %v511
      %528 = vst [vmem:[%s289 + $0x8] sm:$0xf] %v512
      %529 = vst [vmem:[%s289 + $0xc] sm:$0xf] %v513
      %530 = vst [vmem:[%s289 + $0x10] sm:$0xf] %v514
      %531 = vst [vmem:[%s289 + $0x14] sm:$0xf] %v515
      %532 = vst [vmem:[%s289 + $0x18] sm:$0xf] %v516
      %533 = vst [vmem:[%s289 + $0x1c] sm:$0xf] %v517
      %v534 = vld [vmem:[%s295] sm:$0x1]
      %v535 = vadd.f32 %v464, %v467
      %v536 = vadd.f32 %v535, %v472
      %v537 = vadd.f32 %v536, %v475
      %v538 = vadd.f32 %v537, %v480
      %v539 = vadd.f32 %v538, %v483
      %v540 = vadd.f32 %v539, %v488
      %v541 = vadd.f32 %v540, %v491
      %v542 = vrot.slane %v541, 4
      %v543 = vadd.f32 %v541, %v542
      %v544 = vrot.slane %v543, 2
      %v545 = vadd.f32 %v543, %v544
      %v546 = vrot.slane %v545, 1
      %v547 = vadd.f32 %v545, %v546
      %v548 = vadd.f32 %v534, %v547
      %549 = vst [vmem:[%s295] sm:$0x1] %v548
      %v550 = vld [vmem:[%s299] sm:$0x1]
      %v551 = vmul.f32 %v464, %v464
      %v552 = vmul.f32 %v467, %v467
      %v553 = vmul.f32 %v472, %v472
      %v554 = vmul.f32 %v475, %v475
      %v555 = vmul.f32 %v480, %v480
      %v556 = vmul.f32 %v483, %v483
      %v557 = vmul.f32 %v488, %v488
      %v558 = vmul.f32 %v491, %v491
      %v559 = vadd.f32 %v551, %v552
      %v560 = vadd.f32 %v559, %v553
      %v561 = vadd.f32 %v560, %v554
      %v562 = vadd.f32 %v561, %v555
      %v563 = vadd.f32 %v562, %v556
      %v564 = vadd.f32 %v563, %v557
      %v565 = vadd.f32 %v564, %v558
      %v566 = vrot.slane %v565, 4
      %v567 = vadd.f32 %v565, %v566
      %v568 = vrot.slane %v567, 2
      %v569 = vadd.f32 %v567, %v568
      %v570 = vrot.slane %v569, 1
      %v571 = vadd.f32 %v569, %v570
      %v572 = vadd.f32 %v550, %v571
      %573 = vst [vmem:[%s299] sm:$0x1] %v572
      %s574 = sadd.s32 %s22, %s23
      %s575 = smul.u32 8, %s574
      %p576 = scmp.lt.s32.totalorder %s575, 15
      %s577 = scalar_select %p576, %s575, 15
      %s578 = smul.addr %s577, 4
      %s579 = scalar_lea.vmem %s4, %s578
      %p580 = scmp.lt.s32.totalorder %s22, 1
      %s581 = scalar_select %p580, %s22, 1
      %s582 = smul.addr %s581, 8
      %s583 = scalar_lea.vmem %s5, %s582
      %p584 = scmp.lt.s32.totalorder %s22, 1
      %s585 = scalar_select %p584, %s22, 1
      %s586 = smul.addr %s585, 8
      %s587 = scalar_lea.vmem %s6, %s586
      // Predicated region
      $region41: #{bottleneck_forward.6} parent=35 // pred_check
        %p588 = pneg %p141
      $region42: #{bottleneck_forward.6} parent=35 // pred_check_branch
        %590 = sbr.rel (%p588) target = $region44
      $region43: #{bottleneck_forward.6} parent=35 // pred_region
        %s591 = sadd.s32 %s22, %s23
        %s592 = smul.u32 8, %s591
      $region44: #{bottleneck_forward.6} parent=35 // pred_fallthru
        _
      // Predicated region
      $region45: #{bottleneck_forward.6} parent=35 // pred_check
        %p593 = pneg %p167
      $region46: #{bottleneck_forward.6} parent=35 // pred_check_branch
        %595 = sbr.rel (%p593) target = $region48
      $region47: #{bottleneck_forward.6} parent=35 // pred_region
        _
      $region48: #{bottleneck_forward.6} parent=35 // pred_fallthru
        _
      // Predicated region
      $region49: #{bottleneck_forward.6} parent=35 // pred_check
        %p596 = pneg %p193
      $region50: #{bottleneck_forward.6} parent=35 // pred_check_branch
        %598 = sbr.rel (%p596) target = $region52
      $region51: #{bottleneck_forward.6} parent=35 // pred_region
        _
      $region52: #{bottleneck_forward.6} parent=35 // pred_fallthru
        _
    $region36: #{bottleneck_forward.6} parent=5 // pred_fallthru
      _
    %p599 = scmp.le.s32.totalorder 2, %s13
    // Predicated region
    $region53: #{bottleneck_forward.6} parent=5 // pred_check
      %p600 = pneg %p599
    $region54: #{bottleneck_forward.6} parent=5 // pred_check_branch
      %602 = sbr.rel (%p600) target = $region56
    $region55: #{bottleneck_forward.6} parent=5 // pred_region
      %s603 = ssub.s32 %s13, 2
      // Predicated region
      $region57: #{bottleneck_forward.6} parent=55 // pred_check
        %p604 = pneg %p147
      $region58: #{bottleneck_forward.6} parent=55 // pred_check_branch
        %606 = sbr.rel (%p604) target = $region60
      $region59: #{bottleneck_forward.6} parent=55 // pred_region
        %s607 = sadd.s32 %s24, %s25
        %s608 = smul.u32 8, %s607
        %p609 = scmp.lt.s32.totalorder %s608, 15
        %s610 = scalar_select %p609, %s608, 15
        %s611 = smul.addr %s610, 4
        %s612 = scalar_lea.vmem %s4, %s611
      $region60: #{bottleneck_forward.6} parent=55 // pred_fallthru
        _
      // Predicated region
      $region61: #{bottleneck_forward.6} parent=55 // pred_check
        %p613 = pneg %p173
      $region62: #{bottleneck_forward.6} parent=55 // pred_check_branch
        %615 = sbr.rel (%p613) target = $region64
      $region63: #{bottleneck_forward.6} parent=55 // pred_region
        %p616 = scmp.lt.s32.totalorder %s24, 1
        %s617 = scalar_select %p616, %s24, 1
        %s618 = smul.addr %s617, 8
        %s619 = scalar_lea.vmem %s5, %s618
      $region64: #{bottleneck_forward.6} parent=55 // pred_fallthru
        _
      // Predicated region
      $region65: #{bottleneck_forward.6} parent=55 // pred_check
        %p620 = pneg %p199
      $region66: #{bottleneck_forward.6} parent=55 // pred_check_branch
        %622 = sbr.rel (%p620) target = $region68
      $region67: #{bottleneck_forward.6} parent=55 // pred_region
        %p623 = scmp.lt.s32.totalorder %s24, 1
        %s624 = scalar_select %p623, %s24, 1
        %s625 = smul.addr %s624, 8
        %s626 = scalar_lea.vmem %s6, %s625
      $region68: #{bottleneck_forward.6} parent=55 // pred_fallthru
        _
    $region56: #{bottleneck_forward.6} parent=5 // pred_fallthru
      _
  $region6: #{bottleneck_forward.6} parent=0 // loop_footer
    %s17 = sadd.s32 1, %s13
  $region7: #{bottleneck_forward.6} parent=0 // loop_footer_branch
    %12 = sbr.rel target = $region3
  $region8: #{bottleneck_forward.6} parent=0 // loop_exit
    _

// kernel: bottleneck_forward.5
$region0: #{bottleneck_forward.5}
  #allocation0 [shape = 'u32[]', space=smem, size = 0x4, offset = 0x4, fixed_abs, tag = 'smem constant byte address 0x4 - core index']
  #allocation1 [shape = 'u32[144,128]{1,0:T(1,128)}', space=vmem, size = 0x12000, scoped, tag = 'internal scratch']
  #allocation2 [shape = 'bf16[12,16,128]{2,1,0:T(8,128)(2,1)}', space=vmem, size = 0xc000, scoped, tag = 'scratch operand']
  %s0 = inlined_call_operand.vmem [shape: bf16[2,64,128], index: 0, kind: input, shape index: {}]
  %s1 = inlined_call_operand.vmem [shape: f32[1,128], index: 1, kind: input, shape index: {}]
  %s2 = inlined_call_operand.vmem [shape: f32[1,128], index: 2, kind: input, shape index: {}]
  %s3 = inlined_call_operand.vmem [shape: bf16[3,384,128], index: 3, kind: input, shape index: {}]
  %s4 = inlined_call_operand.vmem [shape: bf16[2,64,128], index: 4, kind: output, shape index: {0}]
  %s5 = inlined_call_operand.vmem [shape: f32[16,128], index: 5, kind: output, shape index: {1}]
  %s6 = inlined_call_operand.vmem [shape: f32[16,128], index: 6, kind: output, shape index: {2}]
  %7 = xla_tuple %s4, %s5, %s6
  %s8 = sld [smem:[#allocation0]]
  $region69: #{bottleneck_forward.5} parent=0
    _
  %s10 = ssub.s32 1, %s8
  %s11 = scalar_select 0, %s10, %s8
  loop: start=0, step=1, limit=4
  $region2: #{bottleneck_forward.5} parent=0 // loop_pre_header
    _
  $region3: #{bottleneck_forward.5} parent=0 // loop_header
    %s13 = sphi 0, %s17
    %p14 = scmp.ge.s32.totalorder %s13, 4
    %s20 = sphi 0, %s32
    %s21 = sphi 0, %s28
    %s22 = sphi 0, %s20
    %s23 = sphi 0, %s21
    %s24 = sphi 0, %s22
    %s25 = sphi 0, %s23
    %s37 = sphi 0, %s39
    %s40 = sphi 0, %s37
    %s41 = sphi 0, %s40
    %s57 = sphi 0, %s41
    %s61 = sphi 0, %s61
    %s63 = sphi 0, %s61
    %s64 = sphi 0, %s63
    %s78 = sphi 0, %s64
    %s82 = sphi 0, %s82
    %s84 = sphi 0, %s82
    %s85 = sphi 0, %s84
    %s99 = sphi 0, %s85
    %s103 = sphi 0, %s103
    %s105 = sphi 0, %s103
    %s106 = sphi 0, %s105
    %s120 = sphi 0, %s106
    %s128 = sphi 0, %s130
    %s131 = sphi 0, %s128
    %s132 = sphi 0, %s131
    %s148 = sphi 0, %s132
    %s154 = sphi 0, %s156
    %s157 = sphi 0, %s154
    %s158 = sphi 0, %s157
    %s174 = sphi 0, %s158
    %s180 = sphi 0, %s182
    %s183 = sphi 0, %s180
    %s184 = sphi 0, %s183
    %s200 = sphi 0, %s184
  $region4: #{bottleneck_forward.5} parent=0 // loop_header_branch
    %16 = sbr.rel (%p14) target = $region8
  $region5: #{bottleneck_forward.5} parent=0 // loop_body
    %s18 = ssub.s32 %s13, 1
    %s19 = ssub.s32 %s13, 2
    %s26 = sadd.s32 1, %s21
    %p27 = scmp.ge.s32.totalorder %s26, 1
    %s28 = scalar_select %p27, 0, %s26
    %s29 = sadd.s32 1, %s20
    %s30 = scalar_select %p27, %s29, %s20
    %p31 = scmp.ge.s32.totalorder %s30, 2
    %s32 = scalar_select %p31, 0, %s30
    %s33 = sadd.s32 %s20, %s21
    %s34 = sadd.s32 %s32, %s28
    %s35 = ssub.s32 %s33, %s34
    %p36 = scmp.eq.s32.totalorder %s35, 0
    %s38 = sadd.s32 %s37, 1
    %s39 = scalar_select %p36, %s37, %s38
    %p42 = pneg %p36
    %p43 = scmp.eq.s32.totalorder %s13, 1
    %p44 = por %p42, %p43
    %p45 = scmp.ne.s32.totalorder %s37, %s40
    %p46 = scmp.eq.s32.totalorder %s13, 0
    %p47 = por %p45, %p46
    %p48 = scmp.ne.s32.totalorder %s37, %s40
    %p49 = scmp.eq.s32.totalorder %s18, 1
    %p50 = por %p48, %p49
    %p51 = scmp.ne.s32.totalorder %s40, %s41
    %p52 = scmp.eq.s32.totalorder %s18, 0
    %p53 = por %p51, %p52
    %p54 = scmp.ne.s32.totalorder %s40, %s41
    %p55 = scmp.eq.s32.totalorder %s19, 1
    %p56 = por %p54, %p55
    %p58 = scmp.ne.s32.totalorder %s41, %s57
    %p59 = scmp.eq.s32.totalorder %s19, 0
    %p60 = por %p58, %p59
    %s62 = sadd.s32 %s61, 1
    %p65 = scmp.eq.s32.totalorder %s13, 1
    %p66 = scmp.ne.s32.totalorder %s61, %s63
    %p67 = scmp.eq.s32.totalorder %s13, 0
    %p68 = por %p66, %p67
    %p69 = scmp.ne.s32.totalorder %s61, %s63
    %p70 = scmp.eq.s32.totalorder %s18, 1
    %p71 = por %p69, %p70
    %p72 = scmp.ne.s32.totalorder %s63, %s64
    %p73 = scmp.eq.s32.totalorder %s18, 0
    %p74 = por %p72, %p73
    %p75 = scmp.ne.s32.totalorder %s63, %s64
    %p76 = scmp.eq.s32.totalorder %s19, 1
    %p77 = por %p75, %p76
    %p79 = scmp.ne.s32.totalorder %s64, %s78
    %p80 = scmp.eq.s32.totalorder %s19, 0
    %p81 = por %p79, %p80
    %s83 = sadd.s32 %s82, 1
    %p86 = scmp.eq.s32.totalorder %s13, 1
    %p87 = scmp.ne.s32.totalorder %s82, %s84
    %p88 = scmp.eq.s32.totalorder %s13, 0
    %p89 = por %p87, %p88
    %p90 = scmp.ne.s32.totalorder %s82, %s84
    %p91 = scmp.eq.s32.totalorder %s18, 1
    %p92 = por %p90, %p91
    %p93 = scmp.ne.s32.totalorder %s84, %s85
    %p94 = scmp.eq.s32.totalorder %s18, 0
    %p95 = por %p93, %p94
    %p96 = scmp.ne.s32.totalorder %s84, %s85
    %p97 = scmp.eq.s32.totalorder %s19, 1
    %p98 = por %p96, %p97
    %p100 = scmp.ne.s32.totalorder %s85, %s99
    %p101 = scmp.eq.s32.totalorder %s19, 0
    %p102 = por %p100, %p101
    %s104 = sadd.s32 %s103, 1
    %p107 = scmp.eq.s32.totalorder %s13, 1
    %p108 = scmp.ne.s32.totalorder %s103, %s105
    %p109 = scmp.eq.s32.totalorder %s13, 0
    %p110 = por %p108, %p109
    %p111 = scmp.ne.s32.totalorder %s103, %s105
    %p112 = scmp.eq.s32.totalorder %s18, 1
    %p113 = por %p111, %p112
    %p114 = scmp.ne.s32.totalorder %s105, %s106
    %p115 = scmp.eq.s32.totalorder %s18, 0
    %p116 = por %p114, %p115
    %p117 = scmp.ne.s32.totalorder %s105, %s106
    %p118 = scmp.eq.s32.totalorder %s19, 1
    %p119 = por %p117, %p118
    %p121 = scmp.ne.s32.totalorder %s106, %s120
    %p122 = scmp.eq.s32.totalorder %s19, 0
    %p123 = por %p121, %p122
    %s124 = sadd.s32 %s20, %s21
    %s125 = sadd.s32 %s32, %s28
    %s126 = ssub.s32 %s124, %s125
    %p127 = scmp.eq.s32.totalorder %s126, 0
    %s129 = sadd.s32 %s128, 1
    %s130 = scalar_select %p127, %s128, %s129
    %p133 = pneg %p127
    %p134 = scmp.eq.s32.totalorder %s13, 1
    %p135 = por %p133, %p134
    %p136 = scmp.ne.s32.totalorder %s128, %s131
    %p137 = scmp.eq.s32.totalorder %s13, 0
    %p138 = por %p136, %p137
    %p139 = scmp.ne.s32.totalorder %s128, %s131
    %p140 = scmp.eq.s32.totalorder %s18, 1
    %p141 = por %p139, %p140
    %p142 = scmp.ne.s32.totalorder %s131, %s132
    %p143 = scmp.eq.s32.totalorder %s18, 0
    %p144 = por %p142, %p143
    %p145 = scmp.ne.s32.totalorder %s131, %s132
    %p146 = scmp.eq.s32.totalorder %s19, 1
    %p147 = por %p145, %p146
    %p149 = scmp.ne.s32.totalorder %s132, %s148
    %p150 = scmp.eq.s32.totalorder %s19, 0
    %p151 = por %p149, %p150
    %s152 = ssub.s32 %s20, %s32
    %p153 = scmp.eq.s32.totalorder %s152, 0
    %s155 = sadd.s32 %s154, 1
    %s156 = scalar_select %p153, %s154, %s155
    %p159 = pneg %p153
    %p160 = scmp.eq.s32.totalorder %s13, 1
    %p161 = por %p159, %p160
    %p162 = scmp.ne.s32.totalorder %s154, %s157
    %p163 = scmp.eq.s32.totalorder %s13, 0
    %p164 = por %p162, %p163
    %p165 = scmp.ne.s32.totalorder %s154, %s157
    %p166 = scmp.eq.s32.totalorder %s18, 1
    %p167 = por %p165, %p166
    %p168 = scmp.ne.s32.totalorder %s157, %s158
    %p169 = scmp.eq.s32.totalorder %s18, 0
    %p170 = por %p168, %p169
    %p171 = scmp.ne.s32.totalorder %s157, %s158
    %p172 = scmp.eq.s32.totalorder %s19, 1
    %p173 = por %p171, %p172
    %p175 = scmp.ne.s32.totalorder %s158, %s174
    %p176 = scmp.eq.s32.totalorder %s19, 0
    %p177 = por %p175, %p176
    %s178 = ssub.s32 %s20, %s32
    %p179 = scmp.eq.s32.totalorder %s178, 0
    %s181 = sadd.s32 %s180, 1
    %s182 = scalar_select %p179, %s180, %s181
    %p185 = pneg %p179
    %p186 = scmp.eq.s32.totalorder %s13, 1
    %p187 = por %p185, %p186
    %p188 = scmp.ne.s32.totalorder %s180, %s183
    %p189 = scmp.eq.s32.totalorder %s13, 0
    %p190 = por %p188, %p189
    %p191 = scmp.ne.s32.totalorder %s180, %s183
    %p192 = scmp.eq.s32.totalorder %s18, 1
    %p193 = por %p191, %p192
    %p194 = scmp.ne.s32.totalorder %s183, %s184
    %p195 = scmp.eq.s32.totalorder %s18, 0
    %p196 = por %p194, %p195
    %p197 = scmp.ne.s32.totalorder %s183, %s184
    %p198 = scmp.eq.s32.totalorder %s19, 1
    %p199 = por %p197, %p198
    %p201 = scmp.ne.s32.totalorder %s184, %s200
    %p202 = scmp.eq.s32.totalorder %s19, 0
    %p203 = por %p201, %p202
    %p204 = scmp.le.s32.totalorder 1, %s13
    %p205 = scmp.lt.s32.totalorder %s13, 3
    %p206 = pnand %p204, %p205
    %p207 = pneg %p206
    // Predicated region
    $region9: #{bottleneck_forward.5} parent=5 // pred_check
      _
    $region10: #{bottleneck_forward.5} parent=5 // pred_check_branch
      %209 = sbr.rel (%p206) target = $region12
    $region11: #{bottleneck_forward.5} parent=5 // pred_region
      %s210 = ssub.s32 %s13, 1
      // Predicated region
      $region13: #{bottleneck_forward.5} parent=11 // pred_check
        %p211 = pneg %p74
      $region14: #{bottleneck_forward.5} parent=11 // pred_check_branch
        %213 = sbr.rel (%p211) target = $region16
      $region15: #{bottleneck_forward.5} parent=11 // pred_region
        _
      $region16: #{bottleneck_forward.5} parent=11 // pred_fallthru
        _
      // Predicated region
      $region17: #{bottleneck_forward.5} parent=11 // pred_check
        %p214 = pneg %p95
      $region18: #{bottleneck_forward.5} parent=11 // pred_check_branch
        %216 = sbr.rel (%p214) target = $region20
      $region19: #{bottleneck_forward.5} parent=11 // pred_region
        _
      $region20: #{bottleneck_forward.5} parent=11 // pred_fallthru
        _
      // Predicated region
      $region21: #{bottleneck_forward.5} parent=11 // pred_check
        %p217 = pneg %p116
      $region22: #{bottleneck_forward.5} parent=11 // pred_check_branch
        %219 = sbr.rel (%p217) target = $region24
      $region23: #{bottleneck_forward.5} parent=11 // pred_region
        _
      $region24: #{bottleneck_forward.5} parent=11 // pred_fallthru
        _
    $region12: #{bottleneck_forward.5} parent=5 // pred_fallthru
      _
    %p220 = scmp.lt.s32.totalorder %s13, 2
    // Predicated region
    $region25: #{bottleneck_forward.5} parent=5 // pred_check
      %p221 = pneg %p220
    $region26: #{bottleneck_forward.5} parent=5 // pred_check_branch
      %223 = sbr.rel (%p221) target = $region28
    $region27: #{bottleneck_forward.5} parent=5 // pred_region
      // Predicated region
      $region29: #{bottleneck_forward.5} parent=27 // pred_check
        %p224 = pneg %p47
      $region30: #{bottleneck_forward.5} parent=27 // pred_check_branch
        %226 = sbr.rel (%p224) target = $region32
      $region31: #{bottleneck_forward.5} parent=27 // pred_region
        %s227 = sadd.s32 %s20, %s21
        %p228 = scmp.lt.s32.totalorder %s227, 1
        %s229 = scalar_select %p228, %s227, 1
        %s230 = smul.addr %s229, 8
        %s231 = smul.addr %s230, 4
        %s232 = scalar_lea.vmem %s0, %s231
        %s233 = sadd.s32 %s20, %s21
      $region32: #{bottleneck_forward.5} parent=27 // pred_fallthru
        _
    $region28: #{bottleneck_forward.5} parent=5 // pred_fallthru
      _
    %p234 = scmp.le.s32.totalorder 1, %s13
    %p235 = scmp.lt.s32.totalorder %s13, 3
    %p236 = pnand %p234, %p235
    %p237 = pneg %p236
    // Predicated region
    $region33: #{bottleneck_forward.5} parent=5 // pred_check
      _
    $region34: #{bottleneck_forward.5} parent=5 // pred_check_branch
      %239 = sbr.rel (%p236) target = $region36
    $region35: #{bottleneck_forward.5} parent=5 // pred_region
      %s240 = ssub.s32 %s13, 1
      %s241 = sadd.s32 %s22, %s23
      %p242 = scmp.lt.s32.totalorder %s241, 1
      %s243 = scalar_select %p242, %s241, 1
      %s244 = smul.addr %s243, 8
      %s245 = smul.addr %s244, 4
      %s246 = scalar_lea.vmem %s0, %s245
      %p247 = pneg %p53
      %p248 = pneg %p50
      %p249 = pneg %p74
      %p250 = pneg %p71
      %p251 = pneg %p95
      %p252 = pneg %p92
      %p253 = pneg %p116
      %p254 = pneg %p113
      %p255 = pneg %p144
      %p256 = pneg %p141
      %s257 = sadd.s32 %s22, %s23
      %p258 = scmp.lt.s32.totalorder %s257, 1
      %s259 = scalar_select %p258, %s257, 1
      %s260 = smul.addr %s259, 8
      %s261 = smul.addr %s260, 4
      %s262 = scalar_lea.vmem %s4, %s261
      %p263 = pneg %p170
      %p264 = pneg %p167
      %p265 = scmp.lt.s32.totalorder %s22, 1
      %s266 = scalar_select %p265, %s22, 1
      %s267 = smul.addr %s266, 8
      %s268 = scalar_lea.vmem %s5, %s267
      %p269 = pneg %p196
      %p270 = pneg %p193
      %p271 = scmp.lt.s32.totalorder %s22, 1
      %s272 = scalar_select %p271, %s22, 1
      %s273 = smul.addr %s272, 8
      %s274 = scalar_lea.vmem %s6, %s273
      %s275 = sadd.s32 %s22, %s23
      %p276 = scmp.lt.s32.totalorder %s275, 1
      %s277 = scalar_select %p276, %s275, 1
      %s278 = smul.addr %s277, 8
      %s279 = smul.addr %s278, 4
      %s280 = scalar_lea.vmem %s0, %s279
      %s281 = sadd.s32 %s22, %s23
      %s282 = sadd.s32 %s22, %s23
      %p283 = scmp.lt.s32.totalorder %s282, 1
      %s284 = scalar_select %p283, %s282, 1
      %s285 = smul.addr %s284, 8
      %s286 = smul.addr %s285, 4
      %s287 = scalar_lea.vmem %s4, %s286
      %s288 = sadd.s32 %s22, %s23
      %p289 = scmp.lt.s32.totalorder %s22, 1
      %s290 = scalar_select %p289, %s22, 1
      %s291 = smul.addr %s290, 8
      %s292 = scalar_lea.vmem %s5, %s291
      %p293 = scmp.lt.s32.totalorder %s22, 1
      %s294 = scalar_select %p293, %s22, 1
      %s295 = smul.addr %s294, 8
      %s296 = scalar_lea.vmem %s6, %s295
      %p298 = scmp.eq.s32.totalorder %s23, 0
      // Predicated region
      $region37: #{bottleneck_forward.5} parent=35 // pred_check
        %p299 = pneg %p298
      $region38: #{bottleneck_forward.5} parent=35 // pred_check_branch
        %301 = sbr.rel (%p299) target = $region40
      $region39: #{bottleneck_forward.5} parent=35 // pred_region
        %302 = vst [vmem:[%s292] sm:$0xff] 0.0
        %303 = vst [vmem:[%s296] sm:$0xff] 0.0
        %304 = vst [vmem:[#allocation2] sm:$0xf] 0
        %305 = vst [vmem:[#allocation2 + $0x4] sm:$0xf] 0
        %306 = vst [vmem:[#allocation2 + $0x8] sm:$0xf] 0
        %307 = vst [vmem:[#allocation2 + $0xc] sm:$0xf] 0
        %308 = vst [vmem:[#allocation2 + $0x10] sm:$0xf] 0
        %309 = vst [vmem:[#allocation2 + $0x14] sm:$0xf] 0
        %310 = vst [vmem:[#allocation2 + $0x18] sm:$0xf] 0
        %311 = vst [vmem:[#allocation2 + $0x1c] sm:$0xf] 0
        %312 = vst [vmem:[#allocation2 + $0x20] sm:$0xf] 0
        %313 = vst [vmem:[#allocation2 + $0x24] sm:$0xf] 0
        %314 = vst [vmem:[#allocation2 + $0x28] sm:$0xf] 0
        %315 = vst [vmem:[#allocation2 + $0x2c] sm:$0xf] 0
        %316 = vst [vmem:[#allocation2 + $0x30] sm:$0xf] 0
        %317 = vst [vmem:[#allocation2 + $0x34] sm:$0xf] 0
        %318 = vst [vmem:[#allocation2 + $0x38] sm:$0xf] 0
        %319 = vst [vmem:[#allocation2 + $0x3c] sm:$0xf] 0
        %320 = vst [vmem:[#allocation2 + $0x40] sm:$0xf] 0
        %321 = vst [vmem:[#allocation2 + $0x44] sm:$0xf] 0
        %322 = vst [vmem:[#allocation2 + $0x48] sm:$0xf] 0
        %323 = vst [vmem:[#allocation2 + $0x4c] sm:$0xf] 0
        %324 = vst [vmem:[#allocation2 + $0x50] sm:$0xf] 0
        %325 = vst [vmem:[#allocation2 + $0x54] sm:$0xf] 0
        %326 = vst [vmem:[#allocation2 + $0x58] sm:$0xf] 0
        %327 = vst [vmem:[#allocation2 + $0x5c] sm:$0xf] 0
      $region40: #{bottleneck_forward.5} parent=35 // pred_fallthru
        _
      %v328 = vld [vmem:[%s280] sm:$0xf]
      %v329 = vld [vmem:[%s280 + $0x4] sm:$0xf]
      %v330 = vld [vmem:[%s280 + $0x8] sm:$0xf]
      %v331 = vld [vmem:[%s280 + $0xc] sm:$0xf]
      %v332 = vld [vmem:[%s280 + $0x10] sm:$0xf]
      %v333 = vld [vmem:[%s280 + $0x14] sm:$0xf]
      %v334 = vld [vmem:[%s280 + $0x18] sm:$0xf]
      %v335 = vld [vmem:[%s280 + $0x1c] sm:$0xf]
      %v336 = vld [vmem:[%s1] sm:$0x1]
      %v337 = vunpack.c.l.bf16 %v328
      %v338 = vunpack.c.l.bf16 %v329
      %v339 = vunpack.c.l.bf16 %v330
      %v340 = vunpack.c.l.bf16 %v331
      %v341 = vunpack.c.l.bf16 %v332
      %v342 = vunpack.c.l.bf16 %v333
      %v343 = vunpack.c.l.bf16 %v334
      %v344 = vunpack.c.l.bf16 %v335
      %v346 = vlaneseq
      %v347 = vshrl.u32 %v346, 7
      %v348 = vsub.s32 0, %v347
      %v349 = vrot.slane %v336, %v348
      %v351 = vmul.f32 %v337, %v349
      %v352 = vmul.f32 %v338, %v349
      %v353 = vmul.f32 %v339, %v349
      %v354 = vmul.f32 %v340, %v349
      %v355 = vmul.f32 %v341, %v349
      %v356 = vmul.f32 %v342, %v349
      %v357 = vmul.f32 %v343, %v349
      %v358 = vmul.f32 %v344, %v349
      %v359 = vld [vmem:[%s2] sm:$0x1]
      %v361 = vlaneseq
      %v362 = vshrl.u32 %v361, 7
      %v363 = vsub.s32 0, %v362
      %v364 = vrot.slane %v359, %v363
      %v366 = vadd.f32 %v351, %v364
      %v367 = vadd.f32 %v352, %v364
      %v368 = vadd.f32 %v353, %v364
      %v369 = vadd.f32 %v354, %v364
      %v370 = vadd.f32 %v355, %v364
      %v371 = vadd.f32 %v356, %v364
      %v372 = vadd.f32 %v357, %v364
      %v373 = vadd.f32 %v358, %v364
      %v374 = vmax.f32 %v366, 0.0
      %v375 = vmax.f32 %v367, 0.0
      %v376 = vmax.f32 %v368, 0.0
      %v377 = vmax.f32 %v369, 0.0
      %v378 = vmax.f32 %v370, 0.0
      %v379 = vmax.f32 %v371, 0.0
      %v380 = vmax.f32 %v372, 0.0
      %v381 = vmax.f32 %v373, 0.0
      %v382 = vpack.c.bf16 %v375, %v374
      %v383 = vpack.c.bf16 %v377, %v376
      %v384 = vpack.c.bf16 %v379, %v378
      %v385 = vpack.c.bf16 %v381, %v380
      %v390 = vunpack.c.l.b16 %v382
      %v391 = vunpack.c.h.b16 %v382
      %v392 = vunpack.c.l.b16 %v383
      %v393 = vunpack.c.h.b16 %v383
      %v394 = vunpack.c.l.b16 %v384
      %v395 = vunpack.c.h.b16 %v384
      %v396 = vunpack.c.l.b16 %v385
      %v397 = vunpack.c.h.b16 %v385
      %v398 = vpack.c.b16 %v390, %v390
      %v399 = vpack.c.b16 %v391, %v391
      %v400 = vpack.c.b16 %v392, %v392
      %v401 = vpack.c.b16 %v393, %v393
      %v402 = vpack.c.b16 %v394, %v394
      %v403 = vpack.c.b16 %v395, %v395
      %v404 = vpack.c.b16 %v396, %v396
      %v405 = vpack.c.b16 %v397, %v397
      %s414 = scalar_lea.vmem [#allocation2], 16
      %415 = vst [vmem:[%s414] sm:$0xf] %v398
      %416 = vst [vmem:[%s414 + $0x8] sm:$0xf] %v399
      %417 = vst [vmem:[%s414 + $0x10] sm:$0xf] %v400
      %418 = vst [vmem:[%s414 + $0x18] sm:$0xf] %v401
      %419 = vst [vmem:[%s414 + $0x20] sm:$0xf] %v402
      %420 = vst [vmem:[%s414 + $0x28] sm:$0xf] %v403
      %421 = vst [vmem:[%s414 + $0x30] sm:$0xf] %v404
      %422 = vst [vmem:[%s414 + $0x38] sm:$0xf] %v405
      %v423 = vld [vmem:[#allocation2 + $0x4] sm:$0xf]
      %v424 = vld [vmem:[#allocation2 + $0x8] sm:$0xf]
      %v425 = vld [vmem:[#allocation2 + $0xc] sm:$0xf]
      %v426 = vld [vmem:[#allocation2 + $0x10] sm:$0xf]
      %v427 = vld [vmem:[#allocation2 + $0x14] sm:$0xf]
      %v428 = vld [vmem:[#allocation2 + $0x18] sm:$0xf]
      %v429 = vld [vmem:[#allocation2 + $0x1c] sm:$0xf]
      %v430 = vld [vmem:[#allocation2 + $0x20] sm:$0xf]
      %v431 = vld [vmem:[#allocation2 + $0x24] sm:$0xf]
      %v432 = vld [vmem:[#allocation2 + $0x28] sm:$0xf]
      %v433 = vld [vmem:[#allocation2 + $0x2c] sm:$0xf]
      %v434 = vld [vmem:[#allocation2 + $0x30] sm:$0xf]
      %v435 = vld [vmem:[#allocation2 + $0x34] sm:$0xf]
      %v436 = vld [vmem:[#allocation2 + $0x38] sm:$0xf]
      %v437 = vld [vmem:[#allocation2 + $0x3c] sm:$0xf]
      %v438 = vld [vmem:[#allocation2 + $0x40] sm:$0xf]
      %v439 = vld [vmem:[#allocation2 + $0x44] sm:$0xf]
      %v440 = vld [vmem:[#allocation2 + $0x48] sm:$0xf]
      %v441 = vld [vmem:[#allocation2 + $0x4c] sm:$0xf]
      %v442 = vld [vmem:[#allocation2 + $0x50] sm:$0xf]
      %v443 = vld [vmem:[#allocation2 + $0x54] sm:$0xf]
      %v444 = vld [vmem:[#allocation2 + $0x58] sm:$0xf]
      %v466 = vunpack.c.l.b16 %v423
      %v467 = vunpack.c.l.b16 %v424
      %v468 = vunpack.c.l.b16 %v425
      %v469 = vunpack.c.l.b16 %v426
      %v470 = vunpack.c.l.b16 %v427
      %v471 = vunpack.c.l.b16 %v428
      %v472 = vunpack.c.l.b16 %v429
      %v473 = vunpack.c.l.b16 %v430
      %v474 = vunpack.c.l.b16 %v431
      %v475 = vunpack.c.l.b16 %v432
      %v476 = vunpack.c.l.b16 %v433
      %v477 = vunpack.c.l.b16 %v434
      %v478 = vunpack.c.l.b16 %v435
      %v479 = vunpack.c.l.b16 %v436
      %v480 = vunpack.c.l.b16 %v437
      %v481 = vunpack.c.l.b16 %v438
      %v482 = vunpack.c.l.b16 %v439
      %v483 = vunpack.c.l.b16 %v440
      %v484 = vunpack.c.l.b16 %v441
      %v485 = vunpack.c.l.b16 %v442
      %v486 = vunpack.c.l.b16 %v443
      %v487 = vpack.c.b16 %v467, %v466
      %v488 = vpack.c.b16 %v469, %v468
      %v489 = vpack.c.b16 %v471, %v470
      %v490 = vpack.c.b16 %v473, %v472
      %v491 = vpack.c.b16 %v475, %v474
      %v492 = vpack.c.b16 %v477, %v476
      %v493 = vpack.c.b16 %v479, %v478
      %v494 = vpack.c.b16 %v481, %v480
      %v495 = vpack.c.b16 %v483, %v482
      %v496 = vpack.c.b16 %v485, %v484
      %v497 = vpack.c.b16 %v486, %v486
      %v498 = vpack.c.b16 %v468, %v467
      %v499 = vpack.c.b16 %v470, %v469
      %v500 = vpack.c.b16 %v472, %v471
      %v501 = vpack.c.b16 %v474, %v473
      %v502 = vpack.c.b16 %v476, %v475
      %v503 = vpack.c.b16 %v478, %v477
      %v504 = vpack.c.b16 %v480, %v479
      %v505 = vpack.c.b16 %v482, %v481
      %v506 = vpack.c.b16 %v484, %v483
      %v507 = vpack.c.b16 %v486, %v485
      %vm508 = vsmask.f32 3328
      %v510 = vshrl.u32 %v498, 16
      %v512 = vrot.slane %v510, 4
      %v513 = vshll.u32 %v498, 16
      %v515 = vrot.slane %v513, 5
      %v516 = vor.u32 %v512, %v515
      %v518 = vshrl.u32 %v499, 16
      %v520 = vrot.slane %v518, 4
      %v521 = vshll.u32 %v499, 16
      %v523 = vrot.slane %v521, 5
      %v524 = vor.u32 %v520, %v523
      %v525 = vsel %vm508, %v516, %v524
      %v527 = vshrl.u32 %v500, 16
      %v529 = vrot.slane %v527, 4
      %v530 = vshll.u32 %v500, 16
      %v532 = vrot.slane %v530, 5
      %v533 = vor.u32 %v529, %v532
      %v534 = vsel %vm508, %v524, %v533
      %v536 = vshrl.u32 %v501, 16
      %v538 = vrot.slane %v536, 4
      %v539 = vshll.u32 %v501, 16
      %v541 = vrot.slane %v539, 5
      %v542 = vor.u32 %v538, %v541
      %v543 = vsel %vm508, %v533, %v542
      %v545 = vshrl.u32 %v502, 16
      %v547 = vrot.slane %v545, 4
      %v548 = vshll.u32 %v502, 16
      %v550 = vrot.slane %v548, 5
      %v551 = vor.u32 %v547, %v550
      %v552 = vsel %vm508, %v542, %v551
      %v554 = vshrl.u32 %v503, 16
      %v556 = vrot.slane %v554, 4
      %v557 = vshll.u32 %v503, 16
      %v559 = vrot.slane %v557, 5
      %v560 = vor.u32 %v556, %v559
      %v561 = vsel %vm508, %v551, %v560
      %v563 = vshrl.u32 %v504, 16
      %v565 = vrot.slane %v563, 4
      %v566 = vshll.u32 %v504, 16
      %v568 = vrot.slane %v566, 5
      %v569 = vor.u32 %v565, %v568
      %v570 = vsel %vm508, %v560, %v569
      %v572 = vshrl.u32 %v505, 16
      %v574 = vrot.slane %v572, 4
      %v575 = vshll.u32 %v505, 16
      %v577 = vrot.slane %v575, 5
      %v578 = vor.u32 %v574, %v577
      %v579 = vsel %vm508, %v569, %v578
      %v581 = vshrl.u32 %v506, 16
      %v583 = vrot.slane %v581, 4
      %v584 = vshll.u32 %v506, 16
      %v586 = vrot.slane %v584, 5
      %v587 = vor.u32 %v583, %v586
      %v588 = vsel %vm508, %v578, %v587
      %v590 = vshrl.u32 %v507, 16
      %v592 = vrot.slane %v590, 4
      %v593 = vshll.u32 %v507, 16
      %v595 = vrot.slane %v593, 5
      %v596 = vor.u32 %v592, %v595
      %v597 = vsel %vm508, %v587, %v596
      %v599 = vunpack.c.l.b16 %v444
      %v600 = vpack.c.b16 %v599, %v599
      %vm601 = vcmask 1042432
      %v602 = vrot.slane %v498, 5
      %v603 = vrot.slane %v499, 5
      %v604 = vsel %vm601, %v602, %v603
      %v605 = vrot.slane %v500, 5
      %v606 = vsel %vm601, %v603, %v605
      %v607 = vrot.slane %v501, 5
      %v608 = vsel %vm601, %v605, %v607
      %v609 = vrot.slane %v502, 5
      %v610 = vsel %vm601, %v607, %v609
      %v611 = vrot.slane %v503, 5
      %v612 = vsel %vm601, %v609, %v611
      %v613 = vrot.slane %v504, 5
      %v614 = vsel %vm601, %v611, %v613
      %v615 = vrot.slane %v505, 5
      %v616 = vsel %vm601, %v613, %v615
      %v617 = vrot.slane %v506, 5
      %v618 = vsel %vm601, %v615, %v617
      %v619 = vrot.slane %v507, 5
      %v620 = vsel %vm601, %v617, %v619
      %v621 = vrot.slane %v600, 5
      %v622 = vsel %vm601, %v619, %v621
      %v623 = vld [vmem:[%s3] sm:$0xf]
      %v624 = vld [vmem:[%s3 + $0x4] sm:$0xf]
      %v625 = vld [vmem:[%s3 + $0x8] sm:$0xf]
      %v626 = vld [vmem:[%s3 + $0xc] sm:$0xf]
      %v627 = vld [vmem:[%s3 + $0x10] sm:$0xf]
      %v628 = vld [vmem:[%s3 + $0x14] sm:$0xf]
      %v629 = vld [vmem:[%s3 + $0x18] sm:$0xf]
      %v630 = vld [vmem:[%s3 + $0x1c] sm:$0xf]
      %v631 = vld [vmem:[%s3 + $0x20] sm:$0xf]
      %v632 = vld [vmem:[%s3 + $0x24] sm:$0xf]
      %v633 = vld [vmem:[%s3 + $0x28] sm:$0xf]
      %v634 = vld [vmem:[%s3 + $0x2c] sm:$0xf]
      %v635 = vld [vmem:[%s3 + $0x30] sm:$0xf]
      %v636 = vld [vmem:[%s3 + $0x34] sm:$0xf]
      %v637 = vld [vmem:[%s3 + $0x38] sm:$0xf]
      %v638 = vld [vmem:[%s3 + $0x3c] sm:$0xf]
      %v639 = vld [vmem:[%s3 + $0x40] sm:$0xf]
      %v640 = vld [vmem:[%s3 + $0x44] sm:$0xf]
      %v641 = vld [vmem:[%s3 + $0x48] sm:$0xf]
      %v642 = vld [vmem:[%s3 + $0x4c] sm:$0xf]
      %v643 = vld [vmem:[%s3 + $0x50] sm:$0xf]
      %v644 = vld [vmem:[%s3 + $0x54] sm:$0xf]
      %v645 = vld [vmem:[%s3 + $0x58] sm:$0xf]
      %v646 = vld [vmem:[%s3 + $0x5c] sm:$0xf]
      %v647 = vld [vmem:[%s3 + $0x60] sm:$0xf]
      %v648 = vld [vmem:[%s3 + $0x64] sm:$0xf]
      %v649 = vld [vmem:[%s3 + $0x68] sm:$0xf]
      %v650 = vld [vmem:[%s3 + $0x6c] sm:$0xf]
      %v651 = vld [vmem:[%s3 + $0x70] sm:$0xf]
      %v652 = vld [vmem:[%s3 + $0x74] sm:$0xf]
      %v653 = vld [vmem:[%s3 + $0x78] sm:$0xf]
      %v654 = vld [vmem:[%s3 + $0x7c] sm:$0xf]
      %v655 = vld [vmem:[%s3 + $0x80] sm:$0xf]
      %v656 = vld [vmem:[%s3 + $0x84] sm:$0xf]
      %v657 = vld [vmem:[%s3 + $0x88] sm:$0xf]
      %v658 = vld [vmem:[%s3 + $0x8c] sm:$0xf]
      %v659 = vld [vmem:[%s3 + $0x90] sm:$0xf]
      %v660 = vld [vmem:[%s3 + $0x94] sm:$0xf]
      %v661 = vld [vmem:[%s3 + $0x98] sm:$0xf]
      %v662 = vld [vmem:[%s3 + $0x9c] sm:$0xf]
      %v663 = vld [vmem:[%s3 + $0xa0] sm:$0xf]
      %v664 = vld [vmem:[%s3 + $0xa4] sm:$0xf]
      %v665 = vld [vmem:[%s3 + $0xa8] sm:$0xf]
      %v666 = vld [vmem:[%s3 + $0xac] sm:$0xf]
      %v667 = vld [vmem:[%s3 + $0xb0] sm:$0xf]
      %v668 = vld [vmem:[%s3 + $0xb4] sm:$0xf]
      %v669 = vld [vmem:[%s3 + $0xb8] sm:$0xf]
      %v670 = vld [vmem:[%s3 + $0xbc] sm:$0xf]
      %s671 = scalar_lea.vmem %s3, 192
      %v672 = vld [vmem:[%s671] sm:$0xf]
      %v673 = vld [vmem:[%s671 + $0x4] sm:$0xf]
      %v674 = vld [vmem:[%s671 + $0x8] sm:$0xf]
      %v675 = vld [vmem:[%s671 + $0xc] sm:$0xf]
      %v676 = vld [vmem:[%s671 + $0x10] sm:$0xf]
      %v677 = vld [vmem:[%s671 + $0x14] sm:$0xf]
      %v678 = vld [vmem:[%s671 + $0x18] sm:$0xf]
      %v679 = vld [vmem:[%s671 + $0x1c] sm:$0xf]
      %v680 = vld [vmem:[%s671 + $0x20] sm:$0xf]
      %v681 = vld [vmem:[%s671 + $0x24] sm:$0xf]
      %v682 = vld [vmem:[%s671 + $0x28] sm:$0xf]
      %v683 = vld [vmem:[%s671 + $0x2c] sm:$0xf]
      %v684 = vld [vmem:[%s671 + $0x30] sm:$0xf]
      %v685 = vld [vmem:[%s671 + $0x34] sm:$0xf]
      %v686 = vld [vmem:[%s671 + $0x38] sm:$0xf]
      %v687 = vld [vmem:[%s671 + $0x3c] sm:$0xf]
      %v688 = vld [vmem:[%s671 + $0x40] sm:$0xf]
      %v689 = vld [vmem:[%s671 + $0x44] sm:$0xf]
      %v690 = vld [vmem:[%s671 + $0x48] sm:$0xf]
      %v691 = vld [vmem:[%s671 + $0x4c] sm:$0xf]
      %v692 = vld [vmem:[%s671 + $0x50] sm:$0xf]
      %v693 = vld [vmem:[%s671 + $0x54] sm:$0xf]
      %v694 = vld [vmem:[%s671 + $0x58] sm:$0xf]
      %v695 = vld [vmem:[%s671 + $0x5c] sm:$0xf]
      %v696 = vld [vmem:[%s671 + $0x60] sm:$0xf]
      %v697 = vld [vmem:[%s671 + $0x64] sm:$0xf]
      %v698 = vld [vmem:[%s671 + $0x68] sm:$0xf]
      %v699 = vld [vmem:[%s671 + $0x6c] sm:$0xf]
      %v700 = vld [vmem:[%s671 + $0x70] sm:$0xf]
      %v701 = vld [vmem:[%s671 + $0x74] sm:$0xf]
      %v702 = vld [vmem:[%s671 + $0x78] sm:$0xf]
      %v703 = vld [vmem:[%s671 + $0x7c] sm:$0xf]
      %v704 = vld [vmem:[%s671 + $0x80] sm:$0xf]
      %v705 = vld [vmem:[%s671 + $0x84] sm:$0xf]
      %v706 = vld [vmem:[%s671 + $0x88] sm:$0xf]
      %v707 = vld [vmem:[%s671 + $0x8c] sm:$0xf]
      %v708 = vld [vmem:[%s671 + $0x90] sm:$0xf]
      %v709 = vld [vmem:[%s671 + $0x94] sm:$0xf]
      %v710 = vld [vmem:[%s671 + $0x98] sm:$0xf]
      %v711 = vld [vmem:[%s671 + $0x9c] sm:$0xf]
      %v712 = vld [vmem:[%s671 + $0xa0] sm:$0xf]
      %v713 = vld [vmem:[%s671 + $0xa4] sm:$0xf]
      %v714 = vld [vmem:[%s671 + $0xa8] sm:$0xf]
      %v715 = vld [vmem:[%s671 + $0xac] sm:$0xf]
      %v716 = vld [vmem:[%s671 + $0xb0] sm:$0xf]
      %v717 = vld [vmem:[%s671 + $0xb4] sm:$0xf]
      %v718 = vld [vmem:[%s671 + $0xb8] sm:$0xf]
      %v719 = vld [vmem:[%s671 + $0xbc] sm:$0xf]
      %vm720 = vsmask.f32 4352
      %v722 = vshrl.u32 %v488, 16
      %v724 = vrot.slane %v722, 3
      %v725 = vshll.u32 %v488, 16
      %v727 = vrot.slane %v725, 4
      %v728 = vor.u32 %v724, %v727
      %v730 = vshrl.u32 %v489, 16
      %v732 = vrot.slane %v730, 3
      %v733 = vshll.u32 %v489, 16
      %v735 = vrot.slane %v733, 4
      %v736 = vor.u32 %v732, %v735
      %v737 = vsel %vm720, %v728, %v736
      %v739 = vshrl.u32 %v525, 16
      %v741 = vrot.slane %v739, 3
      %v742 = vshll.u32 %v525, 16
      %v744 = vrot.slane %v742, 4
      %v745 = vor.u32 %v741, %v744
      %v747 = vshrl.u32 %v534, 16
      %v749 = vrot.slane %v747, 3
      %v750 = vshll.u32 %v534, 16
      %v752 = vrot.slane %v750, 4
      %v753 = vor.u32 %v749, %v752
      %v754 = vsel %vm720, %v745, %v753
      %v756 = vshrl.u32 %v604, 16
      %v758 = vrot.slane %v756, 3
      %v759 = vshll.u32 %v604, 16
      %v761 = vrot.slane %v759, 4
      %v762 = vor.u32 %v758, %v761
      %v764 = vshrl.u32 %v606, 16
      %v766 = vrot.slane %v764, 3
      %v767 = vshll.u32 %v606, 16
      %v769 = vrot.slane %v767, 4
      %v770 = vor.u32 %v766, %v769
      %v771 = vsel %vm720, %v762, %v770
      %v773 = vshrl.u32 %v490, 16
      %v775 = vrot.slane %v773, 3
      %v776 = vshll.u32 %v490, 16
      %v778 = vrot.slane %v776, 4
      %v779 = vor.u32 %v775, %v778
      %v780 = vsel %vm720, %v736, %v779
      %v782 = vshrl.u32 %v543, 16
      %v784 = vrot.slane %v782, 3
      %v785 = vshll.u32 %v543, 16
      %v787 = vrot.slane %v785, 4
      %v788 = vor.u32 %v784, %v787
      %v789 = vsel %vm720, %v753, %v788
      %v791 = vshrl.u32 %v608, 16
      %v793 = vrot.slane %v791, 3
      %v794 = vshll.u32 %v608, 16
      %v796 = vrot.slane %v794, 4
      %v797 = vor.u32 %v793, %v796
      %v798 = vsel %vm720, %v770, %v797
      %v800 = vshrl.u32 %v491, 16
      %v802 = vrot.slane %v800, 3
      %v803 = vshll.u32 %v491, 16
      %v805 = vrot.slane %v803, 4
      %v806 = vor.u32 %v802, %v805
      %v807 = vsel %vm720, %v779, %v806
      %v809 = vshrl.u32 %v552, 16
      %v811 = vrot.slane %v809, 3
      %v812 = vshll.u32 %v552, 16
      %v814 = vrot.slane %v812, 4
      %v815 = vor.u32 %v811, %v814
      %v816 = vsel %vm720, %v788, %v815
      %v818 = vshrl.u32 %v610, 16
      %v820 = vrot.slane %v818, 3
      %v821 = vshll.u32 %v610, 16
      %v823 = vrot.slane %v821, 4
      %v824 = vor.u32 %v820, %v823
      %v825 = vsel %vm720, %v797, %v824
      %v827 = vshrl.u32 %v492, 16
      %v829 = vrot.slane %v827, 3
      %v830 = vshll.u32 %v492, 16
      %v832 = vrot.slane %v830, 4
      %v833 = vor.u32 %v829, %v832
      %v834 = vsel %vm720, %v806, %v833
      %v836 = vshrl.u32 %v561, 16
      %v838 = vrot.slane %v836, 3
      %v839 = vshll.u32 %v561, 16
      %v841 = vrot.slane %v839, 4
      %v842 = vor.u32 %v838, %v841
      %v843 = vsel %vm720, %v815, %v842
      %v845 = vshrl.u32 %v612, 16
      %v847 = vrot.slane %v845, 3
      %v848 = vshll.u32 %v612, 16
      %v850 = vrot.slane %v848, 4
      %v851 = vor.u32 %v847, %v850
      %v852 = vsel %vm720, %v824, %v851
      %v854 = vshrl.u32 %v493, 16
      %v856 = vrot.slane %v854, 3
      %v857 = vshll.u32 %v493, 16
      %v859 = vrot.slane %v857, 4
      %v860 = vor.u32 %v856, %v859
      %v861 = vsel %vm720, %v833, %v860
      %v863 = vshrl.u32 %v570, 16
      %v865 = vrot.slane %v863, 3
      %v866 = vshll.u32 %v570, 16
      %v868 = vrot.slane %v866, 4
      %v869 = vor.u32 %v865, %v868
      %v870 = vsel %vm720, %v842, %v869
      %v872 = vshrl.u32 %v614, 16
      %v874 = vrot.slane %v872, 3
      %v875 = vshll.u32 %v614, 16
      %v877 = vrot.slane %v875, 4
      %v878 = vor.u32 %v874, %v877
      %v879 = vsel %vm720, %v851, %v878
      %v881 = vshrl.u32 %v494, 16
      %v883 = vrot.slane %v881, 3
      %v884 = vshll.u32 %v494, 16
      %v886 = vrot.slane %v884, 4
      %v887 = vor.u32 %v883, %v886
      %v888 = vsel %vm720, %v860, %v887
      %v890 = vshrl.u32 %v579, 16
      %v892 = vrot.slane %v890, 3
      %v893 = vshll.u32 %v579, 16
      %v895 = vrot.slane %v893, 4
      %v896 = vor.u32 %v892, %v895
      %v897 = vsel %vm720, %v869, %v896
      %v899 = vshrl.u32 %v616, 16
      %v901 = vrot.slane %v899, 3
      %v902 = vshll.u32 %v616, 16
      %v904 = vrot.slane %v902, 4
      %v905 = vor.u32 %v901, %v904
      %v906 = vsel %vm720, %v878, %v905
      %v908 = vshrl.u32 %v495, 16
      %v910 = vrot.slane %v908, 3
      %v911 = vshll.u32 %v495, 16
      %v913 = vrot.slane %v911, 4
      %v914 = vor.u32 %v910, %v913
      %v915 = vsel %vm720, %v887, %v914
      %v917 = vshrl.u32 %v588, 16
      %v919 = vrot.slane %v917, 3
      %v920 = vshll.u32 %v588, 16
      %v922 = vrot.slane %v920, 4
      %v923 = vor.u32 %v919, %v922
      %v924 = vsel %vm720, %v896, %v923
      %v926 = vshrl.u32 %v618, 16
      %v928 = vrot.slane %v926, 3
      %v929 = vshll.u32 %v618, 16
      %v931 = vrot.slane %v929, 4
      %v932 = vor.u32 %v928, %v931
      %v933 = vsel %vm720, %v905, %v932
      %v935 = vshrl.u32 %v496, 16
      %v937 = vrot.slane %v935, 3
      %v938 = vshll.u32 %v496, 16
      %v940 = vrot.slane %v938, 4
      %v941 = vor.u32 %v937, %v940
      %v942 = vsel %vm720, %v914, %v941
      %v944 = vshrl.u32 %v597, 16
      %v946 = vrot.slane %v944, 3
      %v947 = vshll.u32 %v597, 16
      %v949 = vrot.slane %v947, 4
      %v950 = vor.u32 %v946, %v949
      %v951 = vsel %vm720, %v923, %v950
      %v953 = vshrl.u32 %v620, 16
      %v955 = vrot.slane %v953, 3
      %v956 = vshll.u32 %v620, 16
      %v958 = vrot.slane %v956, 4
      %v959 = vor.u32 %v955, %v958
      %v960 = vsel %vm720, %v932, %v959
      %v1033 = vunpack.c.l.b16 %v672
      %v1034 = vunpack.c.l.b16 %v673
      %v1035 = vunpack.c.l.b16 %v674
      %v1036 = vunpack.c.l.b16 %v675
      %v1037 = vunpack.c.l.b16 %v676
      %v1038 = vunpack.c.l.b16 %v677
      %v1039 = vunpack.c.l.b16 %v678
      %v1040 = vunpack.c.l.b16 %v679
      %v1041 = vunpack.c.l.b16 %v680
      %v1042 = vunpack.c.l.b16 %v681
      %v1043 = vunpack.c.l.b16 %v682
      %v1044 = vunpack.c.l.b16 %v683
      %v1045 = vunpack.c.l.b16 %v684
      %v1046 = vunpack.c.l.b16 %v685
      %v1047 = vunpack.c.l.b16 %v686
      %v1048 = vunpack.c.l.b16 %v687
      %v1049 = vunpack.c.l.b16 %v688
      %v1050 = vunpack.c.l.b16 %v689
      %v1051 = vunpack.c.l.b16 %v690
      %v1052 = vunpack.c.l.b16 %v691
      %v1053 = vunpack.c.l.b16 %v692
      %v1054 = vunpack.c.l.b16 %v693
      %v1055 = vunpack.c.l.b16 %v694
      %v1056 = vunpack.c.l.b16 %v695
      %v1057 = vunpack.c.l.b16 %v696
      %v1058 = vunpack.c.l.b16 %v697
      %v1059 = vunpack.c.l.b16 %v698
      %v1060 = vunpack.c.l.b16 %v699
      %v1061 = vunpack.c.l.b16 %v700
      %v1062 = vunpack.c.l.b16 %v701
      %v1063 = vunpack.c.l.b16 %v702
      %v1064 = vunpack.c.l.b16 %v703
      %v1065 = vunpack.c.l.b16 %v704
      %v1066 = vunpack.c.l.b16 %v705
      %v1067 = vunpack.c.l.b16 %v706
      %v1068 = vunpack.c.l.b16 %v707
      %v1069 = vunpack.c.l.b16 %v708
      %v1070 = vunpack.c.l.b16 %v709
      %v1071 = vunpack.c.l.b16 %v710
      %v1072 = vunpack.c.l.b16 %v711
      %v1073 = vunpack.c.l.b16 %v712
      %v1074 = vunpack.c.l.b16 %v713
      %v1075 = vunpack.c.l.b16 %v714
      %v1076 = vunpack.c.l.b16 %v715
      %v1077 = vunpack.c.l.b16 %v716
      %v1078 = vunpack.c.l.b16 %v717
      %v1079 = vunpack.c.l.b16 %v718
      %v1080 = vunpack.c.l.b16 %v719
      %v1081 = vpack.c.b16 %v1034, %v1033
      %v1082 = vpack.c.b16 %v1036, %v1035
      %v1083 = vpack.c.b16 %v1038, %v1037
      %v1084 = vpack.c.b16 %v1040, %v1039
      %v1085 = vpack.c.b16 %v1042, %v1041
      %v1086 = vpack.c.b16 %v1044, %v1043
      %v1087 = vpack.c.b16 %v1046, %v1045
      %v1088 = vpack.c.b16 %v1048, %v1047
      %v1089 = vpack.c.b16 %v1050, %v1049
      %v1090 = vpack.c.b16 %v1052, %v1051
      %v1091 = vpack.c.b16 %v1054, %v1053
      %v1092 = vpack.c.b16 %v1056, %v1055
      %v1093 = vpack.c.b16 %v1058, %v1057
      %v1094 = vpack.c.b16 %v1060, %v1059
      %v1095 = vpack.c.b16 %v1062, %v1061
      %v1096 = vpack.c.b16 %v1064, %v1063
      %v1097 = vpack.c.b16 %v1066, %v1065
      %v1098 = vpack.c.b16 %v1068, %v1067
      %v1099 = vpack.c.b16 %v1070, %v1069
      %v1100 = vpack.c.b16 %v1072, %v1071
      %v1101 = vpack.c.b16 %v1074, %v1073
      %v1102 = vpack.c.b16 %v1076, %v1075
      %v1103 = vpack.c.b16 %v1078, %v1077
      %v1104 = vpack.c.b16 %v1080, %v1079
      %1129 = vmatprep.subr.bf16.mxu0 0
      %1130 = vmatpush1.bf16.msra.mxu0 %v1088
      %1131 = vmatprep.subr.bf16.mxu0 0
      %1132 = vmatpush1.bf16.msra.mxu0 %v1087
      %1133 = vmatprep.subr.bf16.mxu0 0
      %1134 = vmatpush1.bf16.msra.mxu0 %v1086
      %1135 = vmatprep.subr.bf16.mxu0 0
      %1136 = vmatpush1.bf16.msra.mxu0 %v1085
      %1137 = vmatprep.subr.bf16.mxu0 0
      %1138 = vmatpush1.bf16.msra.mxu0 %v1084
      %1139 = vmatprep.subr.bf16.mxu0 0
      %1140 = vmatpush1.bf16.msra.mxu0 %v1083
      %1141 = vmatprep.subr.bf16.mxu0 0
      %1142 = vmatpush1.bf16.msra.mxu0 %v1082
      %1143 = vmatprep.subr.bf16.mxu0 0
      %1144 = vmatpush1.bf16.msra.mxu0 %v1081
      %1145 = vmatprep.subr.bf16.mxu0 0
      %1146 = vmatpush2.bf16.msra.mxu0 %v1096
      %1147 = vmatprep.subr.bf16.mxu0 0
      %1148 = vmatpush2.bf16.msra.mxu0 %v1095
      %1149 = vmatprep.subr.bf16.mxu0 0
      %1150 = vmatpush2.bf16.msra.mxu0 %v1094
      %1151 = vmatprep.subr.bf16.mxu0 0
      %1152 = vmatpush2.bf16.msra.mxu0 %v1093
      %1153 = vmatprep.subr.bf16.mxu0 0
      %1154 = vmatpush2.bf16.msra.mxu0 %v1092
      %1155 = vmatprep.subr.bf16.mxu0 0
      %1156 = vmatpush2.bf16.msra.mxu0 %v1091
      %1157 = vmatprep.subr.bf16.mxu0 0
      %1158 = vmatpush2.bf16.msra.mxu0 %v1090
      %1159 = vmatprep.subr.bf16.mxu0 0
      %1160 = vmatpush2.bf16.msra.mxu0 %v1089
      %1161 = vmatprep.mubr.bf16.mxu0 %v754
      %1162 = vmatmul.mubr.bf16.gmra.mxu0 %v737
      %v1163 = vpop.f32.mrf.mxu0
      %v1164 = vadd.f32 0.0, %v1163
      %v1165 = vpop.f32.mrf.mxu0
      %v1166 = vpop.f32.mrf.mxu0
      %v1167 = vpop.f32.mrf.mxu0
      %1168 = vmatprep.mubr.bf16.mxu0 %v789
      %1169 = vmatmul.mubr.bf16.gmra.mxu0 %v780
      %v1170 = vpop.f32.mrf.mxu0
      %v1171 = vadd.f32 0.0, %v1170
      %v1172 = vpop.f32.mrf.mxu0
      %v1173 = vpop.f32.mrf.mxu0
      %v1174 = vpop.f32.mrf.mxu0
      %1175 = vmatprep.mubr.bf16.mxu0 %v816
      %1176 = vmatmul.mubr.bf16.gmra.mxu0 %v807
      %v1177 = vpop.f32.mrf.mxu0
      %v1178 = vadd.f32 0.0, %v1177
      %v1179 = vpop.f32.mrf.mxu0
      %v1180 = vpop.f32.mrf.mxu0
      %v1181 = vpop.f32.mrf.mxu0
      %1182 = vmatprep.mubr.bf16.mxu0 %v843
      %1183 = vmatmul.mubr.bf16.gmra.mxu0 %v834
      %v1184 = vpop.f32.mrf.mxu0
      %v1185 = vadd.f32 0.0, %v1184
      %v1186 = vpop.f32.mrf.mxu0
      %v1187 = vpop.f32.mrf.mxu0
      %v1188 = vpop.f32.mrf.mxu0
      %1189 = vmatprep.mubr.bf16.mxu0 %v870
      %1190 = vmatmul.mubr.bf16.gmra.mxu0 %v861
      %v1191 = vpop.f32.mrf.mxu0
      %v1192 = vadd.f32 0.0, %v1191
      %v1193 = vpop.f32.mrf.mxu0
      %v1194 = vpop.f32.mrf.mxu0
      %v1195 = vpop.f32.mrf.mxu0
      %1196 = vmatprep.mubr.bf16.mxu0 %v897
      %1197 = vmatmul.mubr.bf16.gmra.mxu0 %v888
      %v1198 = vpop.f32.mrf.mxu0
      %v1199 = vadd.f32 0.0, %v1198
      %v1200 = vpop.f32.mrf.mxu0
      %v1201 = vpop.f32.mrf.mxu0
      %v1202 = vpop.f32.mrf.mxu0
      %1203 = vmatprep.mubr.bf16.mxu0 %v924
      %1204 = vmatmul.mubr.bf16.gmra.mxu0 %v915
      %v1205 = vpop.f32.mrf.mxu0
      %v1206 = vadd.f32 0.0, %v1205
      %v1207 = vpop.f32.mrf.mxu0
      %v1208 = vpop.f32.mrf.mxu0
      %v1209 = vpop.f32.mrf.mxu0
      %1210 = vmatprep.mubr.bf16.mxu0 %v951
      %1211 = vmatmul.mubr.bf16.gmra.mxu0 %v942
      %v1212 = vpop.f32.mrf.mxu0
      %v1213 = vadd.f32 0.0, %v1212
      %v1214 = vpop.f32.mrf.mxu0
      %v1215 = vpop.f32.mrf.mxu0
      %v1216 = vpop.f32.mrf.mxu0
      %1217 = vdwg.mxu0
      %1218 = vmatprep.subr.bf16.mxu0 0
      %1219 = vmatpush1.bf16.msra.mxu0 %v1104
      %1220 = vmatprep.subr.bf16.mxu0 0
      %1221 = vmatpush1.bf16.msra.mxu0 %v1103
      %1222 = vmatprep.subr.bf16.mxu0 0
      %1223 = vmatpush1.bf16.msra.mxu0 %v1102
      %1224 = vmatprep.subr.bf16.mxu0 0
      %1225 = vmatpush1.bf16.msra.mxu0 %v1101
      %1226 = vmatprep.subr.bf16.mxu0 0
      %1227 = vmatpush1.bf16.msra.mxu0 %v1100
      %1228 = vmatprep.subr.bf16.mxu0 0
      %1229 = vmatpush1.bf16.msra.mxu0 %v1099
      %1230 = vmatprep.subr.bf16.mxu0 0
      %1231 = vmatpush1.bf16.msra.mxu0 %v1098
      %1232 = vmatprep.subr.bf16.mxu0 0
      %1233 = vmatpush1.bf16.msra.mxu0 %v1097
      %1234 = vmatprep.subr.bf16.mxu0 0
      %1235 = vmatpush2.bf16.msra.mxu0 0
      %1236 = vmatprep.subr.bf16.mxu0 0
      %1237 = vmatpush2.bf16.msra.mxu0 0
      %1238 = vmatprep.subr.bf16.mxu0 0
      %1239 = vmatpush2.bf16.msra.mxu0 0
      %1240 = vmatprep.subr.bf16.mxu0 0
      %1241 = vmatpush2.bf16.msra.mxu0 0
      %1242 = vmatprep.subr.bf16.mxu0 0
      %1243 = vmatpush2.bf16.msra.mxu0 0
      %1244 = vmatprep.subr.bf16.mxu0 0
      %1245 = vmatpush2.bf16.msra.mxu0 0
      %1246 = vmatprep.subr.bf16.mxu0 0
      %1247 = vmatpush2.bf16.msra.mxu0 0
      %1248 = vmatprep.subr.bf16.mxu0 0
      %1249 = vmatpush2.bf16.msra.mxu0 0
      %1250 = vmatprep.mubr.bf16.mxu0 0
      %1251 = vmatmul.mubr.bf16.gmra.mxu0 %v771
      %v1252 = vpop.f32.mrf.mxu0
      %v1253 = vadd.f32 %v1164, %v1252
      %v1254 = vpop.f32.mrf.mxu0
      %v1255 = vpop.f32.mrf.mxu0
      %v1256 = vpop.f32.mrf.mxu0
      %1257 = vmatprep.mubr.bf16.mxu0 0
      %1258 = vmatmul.mubr.bf16.gmra.mxu0 %v798
      %v1259 = vpop.f32.mrf.mxu0
      %v1260 = vadd.f32 %v1171, %v1259
      %v1261 = vpop.f32.mrf.mxu0
      %v1262 = vpop.f32.mrf.mxu0
      %v1263 = vpop.f32.mrf.mxu0
      %1264 = vmatprep.mubr.bf16.mxu0 0
      %1265 = vmatmul.mubr.bf16.gmra.mxu0 %v825
      %v1266 = vpop.f32.mrf.mxu0
      %v1267 = vadd.f32 %v1178, %v1266
      %v1268 = vpop.f32.mrf.mxu0
      %v1269 = vpop.f32.mrf.mxu0
      %v1270 = vpop.f32.mrf.mxu0
      %1271 = vmatprep.mubr.bf16.mxu0 0
      %1272 = vmatmul.mubr.bf16.gmra.mxu0 %v852
      %v1273 = vpop.f32.mrf.mxu0
      %v1274 = vadd.f32 %v1185, %v1273
      %v1275 = vpop.f32.mrf.mxu0
      %v1276 = vpop.f32.mrf.mxu0
      %v1277 = vpop.f32.mrf.mxu0
      %1278 = vmatprep.mubr.bf16.mxu0 0
      %1279 = vmatmul.mubr.bf16.gmra.mxu0 %v879
      %v1280 = vpop.f32.mrf.mxu0
      %v1281 = vadd.f32 %v1192, %v1280
      %v1282 = vpop.f32.mrf.mxu0
      %v1283 = vpop.f32.mrf.mxu0
      %v1284 = vpop.f32.mrf.mxu0
      %1285 = vmatprep.mubr.bf16.mxu0 0
      %1286 = vmatmul.mubr.bf16.gmra.mxu0 %v906
      %v1287 = vpop.f32.mrf.mxu0
      %v1288 = vadd.f32 %v1199, %v1287
      %v1289 = vpop.f32.mrf.mxu0
      %v1290 = vpop.f32.mrf.mxu0
      %v1291 = vpop.f32.mrf.mxu0
      %1292 = vmatprep.mubr.bf16.mxu0 0
      %1293 = vmatmul.mubr.bf16.gmra.mxu0 %v933
      %v1294 = vpop.f32.mrf.mxu0
      %v1295 = vadd.f32 %v1206, %v1294
      %v1296 = vpop.f32.mrf.mxu0
      %v1297 = vpop.f32.mrf.mxu0
      %v1298 = vpop.f32.mrf.mxu0
      %1299 = vmatprep.mubr.bf16.mxu0 0
      %1300 = vmatmul.mubr.bf16.gmra.mxu0 %v960
      %v1301 = vpop.f32.mrf.mxu0
      %v1302 = vadd.f32 %v1213, %v1301
      %v1303 = vpop.f32.mrf.mxu0
      %v1304 = vpop.f32.mrf.mxu0
      %v1305 = vpop.f32.mrf.mxu0
      %1306 = vdwg.mxu0
      %v1308 = vshrl.u32 %v487, 16
      %v1310 = vrot.slane %v1308, 3
      %v1311 = vshll.u32 %v487, 16
      %v1313 = vrot.slane %v1311, 4
      %v1314 = vor.u32 %v1310, %v1313
      %v1315 = vsel %vm720, %v1314, %v728
      %v1317 = vshrl.u32 %v516, 16
      %v1319 = vrot.slane %v1317, 3
      %v1320 = vshll.u32 %v516, 16
      %v1322 = vrot.slane %v1320, 4
      %v1323 = vor.u32 %v1319, %v1322
      %v1324 = vsel %vm720, %v1323, %v745
      %v1326 = vshrl.u32 %v602, 16
      %v1328 = vrot.slane %v1326, 3
      %v1329 = vshll.u32 %v602, 16
      %v1331 = vrot.slane %v1329, 4
      %v1332 = vor.u32 %v1328, %v1331
      %v1333 = vsel %vm720, %v1332, %v762
      %v1385 = vunpack.c.l.b16 %v623
      %v1386 = vunpack.c.l.b16 %v624
      %v1387 = vunpack.c.l.b16 %v625
      %v1388 = vunpack.c.l.b16 %v626
      %v1389 = vunpack.c.l.b16 %v627
      %v1390 = vunpack.c.l.b16 %v628
      %v1391 = vunpack.c.l.b16 %v629
      %v1392 = vunpack.c.l.b16 %v630
      %v1393 = vunpack.c.l.b16 %v631
      %v1394 = vunpack.c.l.b16 %v632
      %v1395 = vunpack.c.l.b16 %v633
      %v1396 = vunpack.c.l.b16 %v634
      %v1397 = vunpack.c.l.b16 %v635
      %v1398 = vunpack.c.l.b16 %v636
      %v1399 = vunpack.c.l.b16 %v637
      %v1400 = vunpack.c.l.b16 %v638
      %v1401 = vunpack.c.l.b16 %v639
      %v1402 = vunpack.c.l.b16 %v640
      %v1403 = vunpack.c.l.b16 %v641
      %v1404 = vunpack.c.l.b16 %v642
      %v1405 = vunpack.c.l.b16 %v643
      %v1406 = vunpack.c.l.b16 %v644
      %v1407 = vunpack.c.l.b16 %v645
      %v1408 = vunpack.c.l.b16 %v646
      %v1409 = vunpack.c.l.b16 %v647
      %v1410 = vunpack.c.l.b16 %v648
      %v1411 = vunpack.c.l.b16 %v649
      %v1412 = vunpack.c.l.b16 %v650
      %v1413 = vunpack.c.l.b16 %v651
      %v1414 = vunpack.c.l.b16 %v652
      %v1415 = vunpack.c.l.b16 %v653
      %v1416 = vunpack.c.l.b16 %v654
      %v1417 = vunpack.c.l.b16 %v655
      %v1418 = vunpack.c.l.b16 %v656
      %v1419 = vunpack.c.l.b16 %v657
      %v1420 = vunpack.c.l.b16 %v658
      %v1421 = vunpack.c.l.b16 %v659
      %v1422 = vunpack.c.l.b16 %v660
      %v1423 = vunpack.c.l.b16 %v661
      %v1424 = vunpack.c.l.b16 %v662
      %v1425 = vunpack.c.l.b16 %v663
      %v1426 = vunpack.c.l.b16 %v664
      %v1427 = vunpack.c.l.b16 %v665
      %v1428 = vunpack.c.l.b16 %v666
      %v1429 = vunpack.c.l.b16 %v667
      %v1430 = vunpack.c.l.b16 %v668
      %v1431 = vunpack.c.l.b16 %v669
      %v1432 = vunpack.c.l.b16 %v670
      %v1433 = vpack.c.b16 %v1386, %v1385
      %v1434 = vpack.c.b16 %v1388, %v1387
      %v1435 = vpack.c.b16 %v1390, %v1389
      %v1436 = vpack.c.b16 %v1392, %v1391
      %v1437 = vpack.c.b16 %v1394, %v1393
      %v1438 = vpack.c.b16 %v1396, %v1395
      %v1439 = vpack.c.b16 %v1398, %v1397
      %v1440 = vpack.c.b16 %v1400, %v1399
      %v1441 = vpack.c.b16 %v1402, %v1401
      %v1442 = vpack.c.b16 %v1404, %v1403
      %v1443 = vpack.c.b16 %v1406, %v1405
      %v1444 = vpack.c.b16 %v1408, %v1407
      %v1445 = vpack.c.b16 %v1410, %v1409
      %v1446 = vpack.c.b16 %v1412, %v1411
      %v1447 = vpack.c.b16 %v1414, %v1413
      %v1448 = vpack.c.b16 %v1416, %v1415
      %v1449 = vpack.c.b16 %v1418, %v1417
      %v1450 = vpack.c.b16 %v1420, %v1419
      %v1451 = vpack.c.b16 %v1422, %v1421
      %v1452 = vpack.c.b16 %v1424, %v1423
      %v1453 = vpack.c.b16 %v1426, %v1425
      %v1454 = vpack.c.b16 %v1428, %v1427
      %v1455 = vpack.c.b16 %v1430, %v1429
      %v1456 = vpack.c.b16 %v1432, %v1431
      %1481 = vmatprep.subr.bf16.mxu0 0
      %1482 = vmatpush1.bf16.msra.mxu0 %v1440
      %1483 = vmatprep.subr.bf16.mxu0 0
      %1484 = vmatpush1.bf16.msra.mxu0 %v1439
      %1485 = vmatprep.subr.bf16.mxu0 0
      %1486 = vmatpush1.bf16.msra.mxu0 %v1438
      %1487 = vmatprep.subr.bf16.mxu0 0
      %1488 = vmatpush1.bf16.msra.mxu0 %v1437
      %1489 = vmatprep.subr.bf16.mxu0 0
      %1490 = vmatpush1.bf16.msra.mxu0 %v1436
      %1491 = vmatprep.subr.bf16.mxu0 0
      %1492 = vmatpush1.bf16.msra.mxu0 %v1435
      %1493 = vmatprep.subr.bf16.mxu0 0
      %1494 = vmatpush1.bf16.msra.mxu0 %v1434
      %1495 = vmatprep.subr.bf16.mxu0 0
      %1496 = vmatpush1.bf16.msra.mxu0 %v1433
      %1497 = vmatprep.subr.bf16.mxu0 0
      %1498 = vmatpush2.bf16.msra.mxu0 %v1448
      %1499 = vmatprep.subr.bf16.mxu0 0
      %1500 = vmatpush2.bf16.msra.mxu0 %v1447
      %1501 = vmatprep.subr.bf16.mxu0 0
      %1502 = vmatpush2.bf16.msra.mxu0 %v1446
      %1503 = vmatprep.subr.bf16.mxu0 0
      %1504 = vmatpush2.bf16.msra.mxu0 %v1445
      %1505 = vmatprep.subr.bf16.mxu0 0
      %1506 = vmatpush2.bf16.msra.mxu0 %v1444
      %1507 = vmatprep.subr.bf16.mxu0 0
      %1508 = vmatpush2.bf16.msra.mxu0 %v1443
      %1509 = vmatprep.subr.bf16.mxu0 0
      %1510 = vmatpush2.bf16.msra.mxu0 %v1442
      %1511 = vmatprep.subr.bf16.mxu0 0
      %1512 = vmatpush2.bf16.msra.mxu0 %v1441
      %1513 = vmatprep.mubr.bf16.mxu0 %v1324
      %1514 = vmatmul.mubr.bf16.gmra.mxu0 %v1315
      %v1515 = vpop.f32.mrf.mxu0
      %v1516 = vadd.f32 %v1253, %v1515
      %v1517 = vpop.f32.mrf.mxu0
      %v1518 = vpop.f32.mrf.mxu0
      %v1519 = vpop.f32.mrf.mxu0
      %1520 = vmatprep.mubr.bf16.mxu0 %v754
      %1521 = vmatmul.mubr.bf16.gmra.mxu0 %v737
      %v1522 = vpop.f32.mrf.mxu0
      %v1523 = vadd.f32 %v1260, %v1522
      %v1524 = vpop.f32.mrf.mxu0
      %v1525 = vpop.f32.mrf.mxu0
      %v1526 = vpop.f32.mrf.mxu0
      %1527 = vmatprep.mubr.bf16.mxu0 %v789
      %1528 = vmatmul.mubr.bf16.gmra.mxu0 %v780
      %v1529 = vpop.f32.mrf.mxu0
      %v1530 = vadd.f32 %v1267, %v1529
      %v1531 = vpop.f32.mrf.mxu0
      %v1532 = vpop.f32.mrf.mxu0
      %v1533 = vpop.f32.mrf.mxu0
      %1534 = vmatprep.mubr.bf16.mxu0 %v816
      %1535 = vmatmul.mubr.bf16.gmra.mxu0 %v807
      %v1536 = vpop.f32.mrf.mxu0
      %v1537 = vadd.f32 %v1274, %v1536
      %v1538 = vpop.f32.mrf.mxu0
      %v1539 = vpop.f32.mrf.mxu0
      %v1540 = vpop.f32.mrf.mxu0
      %1541 = vmatprep.mubr.bf16.mxu0 %v843
      %1542 = vmatmul.mubr.bf16.gmra.mxu0 %v834
      %v1543 = vpop.f32.mrf.mxu0
      %v1544 = vadd.f32 %v1281, %v1543
      %v1545 = vpop.f32.mrf.mxu0
      %v1546 = vpop.f32.mrf.mxu0
      %v1547 = vpop.f32.mrf.mxu0
      %1548 = vmatprep.mubr.bf16.mxu0 %v870
      %1549 = vmatmul.mubr.bf16.gmra.mxu0 %v861
      %v1550 = vpop.f32.mrf.mxu0
      %v1551 = vadd.f32 %v1288, %v1550
      %v1552 = vpop.f32.mrf.mxu0
      %v1553 = vpop.f32.mrf.mxu0
      %v1554 = vpop.f32.mrf.mxu0
      %1555 = vmatprep.mubr.bf16.mxu0 %v897
      %1556 = vmatmul.mubr.bf16.gmra.mxu0 %v888
      %v1557 = vpop.f32.mrf.mxu0
      %v1558 = vadd.f32 %v1295, %v1557
      %v1559 = vpop.f32.mrf.mxu0
      %v1560 = vpop.f32.mrf.mxu0
      %v1561 = vpop.f32.mrf.mxu0
      %1562 = vmatprep.mubr.bf16.mxu0 %v924
      %1563 = vmatmul.mubr.bf16.gmra.mxu0 %v915
      %v1564 = vpop.f32.mrf.mxu0
      %v1565 = vadd.f32 %v1302, %v1564
      %v1566 = vpop.f32.mrf.mxu0
      %v1567 = vpop.f32.mrf.mxu0
      %v1568 = vpop.f32.mrf.mxu0
      %1569 = vdwg.mxu0
      %1570 = vmatprep.subr.bf16.mxu0 0
      %1571 = vmatpush1.bf16.msra.mxu0 %v1456
      %1572 = vmatprep.subr.bf16.mxu0 0
      %1573 = vmatpush1.bf16.msra.mxu0 %v1455
      %1574 = vmatprep.subr.bf16.mxu0 0
      %1575 = vmatpush1.bf16.msra.mxu0 %v1454
      %1576 = vmatprep.subr.bf16.mxu0 0
      %1577 = vmatpush1.bf16.msra.mxu0 %v1453
      %1578 = vmatprep.subr.bf16.mxu0 0
      %1579 = vmatpush1.bf16.msra.mxu0 %v1452
      %1580 = vmatprep.subr.bf16.mxu0 0
      %1581 = vmatpush1.bf16.msra.mxu0 %v1451
      %1582 = vmatprep.subr.bf16.mxu0 0
      %1583 = vmatpush1.bf16.msra.mxu0 %v1450
      %1584 = vmatprep.subr.bf16.mxu0 0
      %1585 = vmatpush1.bf16.msra.mxu0 %v1449
      %1586 = vmatprep.subr.bf16.mxu0 0
      %1587 = vmatpush2.bf16.msra.mxu0 0
      %1588 = vmatprep.subr.bf16.mxu0 0
      %1589 = vmatpush2.bf16.msra.mxu0 0
      %1590 = vmatprep.subr.bf16.mxu0 0
      %1591 = vmatpush2.bf16.msra.mxu0 0
      %1592 = vmatprep.subr.bf16.mxu0 0
      %1593 = vmatpush2.bf16.msra.mxu0 0
      %1594 = vmatprep.subr.bf16.mxu0 0
      %1595 = vmatpush2.bf16.msra.mxu0 0
      %1596 = vmatprep.subr.bf16.mxu0 0
      %1597 = vmatpush2.bf16.msra.mxu0 0
      %1598 = vmatprep.subr.bf16.mxu0 0
      %1599 = vmatpush2.bf16.msra.mxu0 0
      %1600 = vmatprep.subr.bf16.mxu0 0
      %1601 = vmatpush2.bf16.msra.mxu0 0
      %1602 = vmatprep.mubr.bf16.mxu0 0
      %1603 = vmatmul.mubr.bf16.gmra.mxu0 %v1333
      %v1604 = vpop.f32.mrf.mxu0
      %v1605 = vadd.f32 %v1516, %v1604
      %v1606 = vpop.f32.mrf.mxu0
      %v1607 = vpop.f32.mrf.mxu0
      %v1608 = vpop.f32.mrf.mxu0
      %1609 = vmatprep.mubr.bf16.mxu0 0
      %1610 = vmatmul.mubr.bf16.gmra.mxu0 %v771
      %v1611 = vpop.f32.mrf.mxu0
      %v1612 = vadd.f32 %v1523, %v1611
      %v1613 = vpop.f32.mrf.mxu0
      %v1614 = vpop.f32.mrf.mxu0
      %v1615 = vpop.f32.mrf.mxu0
      %1616 = vmatprep.mubr.bf16.mxu0 0
      %1617 = vmatmul.mubr.bf16.gmra.mxu0 %v798
      %v1618 = vpop.f32.mrf.mxu0
      %v1619 = vadd.f32 %v1530, %v1618
      %v1620 = vpop.f32.mrf.mxu0
      %v1621 = vpop.f32.mrf.mxu0
      %v1622 = vpop.f32.mrf.mxu0
      %1623 = vmatprep.mubr.bf16.mxu0 0
      %1624 = vmatmul.mubr.bf16.gmra.mxu0 %v825
      %v1625 = vpop.f32.mrf.mxu0
      %v1626 = vadd.f32 %v1537, %v1625
      %v1627 = vpop.f32.mrf.mxu0
      %v1628 = vpop.f32.mrf.mxu0
      %v1629 = vpop.f32.mrf.mxu0
      %1630 = vmatprep.mubr.bf16.mxu0 0
      %1631 = vmatmul.mubr.bf16.gmra.mxu0 %v852
      %v1632 = vpop.f32.mrf.mxu0
      %v1633 = vadd.f32 %v1544, %v1632
      %v1634 = vpop.f32.mrf.mxu0
      %v1635 = vpop.f32.mrf.mxu0
      %v1636 = vpop.f32.mrf.mxu0
      %1637 = vmatprep.mubr.bf16.mxu0 0
      %1638 = vmatmul.mubr.bf16.gmra.mxu0 %v879
      %v1639 = vpop.f32.mrf.mxu0
      %v1640 = vadd.f32 %v1551, %v1639
      %v1641 = vpop.f32.mrf.mxu0
      %v1642 = vpop.f32.mrf.mxu0
      %v1643 = vpop.f32.mrf.mxu0
      %1644 = vmatprep.mubr.bf16.mxu0 0
      %1645 = vmatmul.mubr.bf16.gmra.mxu0 %v906
      %v1646 = vpop.f32.mrf.mxu0
      %v1647 = vadd.f32 %v1558, %v1646
      %v1648 = vpop.f32.mrf.mxu0
      %v1649 = vpop.f32.mrf.mxu0
      %v1650 = vpop.f32.mrf.mxu0
      %1651 = vmatprep.mubr.bf16.mxu0 0
      %1652 = vmatmul.mubr.bf16.gmra.mxu0 %v933
      %v1653 = vpop.f32.mrf.mxu0
      %v1654 = vadd.f32 %v1565, %v1653
      %v1655 = vpop.f32.mrf.mxu0
      %v1656 = vpop.f32.mrf.mxu0
      %v1657 = vpop.f32.mrf.mxu0
      %1658 = vdwg.mxu0
      %s1659 = scalar_lea.vmem %s3, 384
      %v1660 = vld [vmem:[%s1659] sm:$0xf]
      %v1661 = vld [vmem:[%s1659 + $0x4] sm:$0xf]
      %v1662 = vld [vmem:[%s1659 + $0x8] sm:$0xf]
      %v1663 = vld [vmem:[%s1659 + $0xc] sm:$0xf]
      %v1664 = vld [vmem:[%s1659 + $0x10] sm:$0xf]
      %v1665 = vld [vmem:[%s1659 + $0x14] sm:$0xf]
      %v1666 = vld [vmem:[%s1659 + $0x18] sm:$0xf]
      %v1667 = vld [vmem:[%s1659 + $0x1c] sm:$0xf]
      %v1668 = vld [vmem:[%s1659 + $0x20] sm:$0xf]
      %v1669 = vld [vmem:[%s1659 + $0x24] sm:$0xf]
      %v1670 = vld [vmem:[%s1659 + $0x28] sm:$0xf]
      %v1671 = vld [vmem:[%s1659 + $0x2c] sm:$0xf]
      %v1672 = vld [vmem:[%s1659 + $0x30] sm:$0xf]
      %v1673 = vld [vmem:[%s1659 + $0x34] sm:$0xf]
      %v1674 = vld [vmem:[%s1659 + $0x38] sm:$0xf]
      %v1675 = vld [vmem:[%s1659 + $0x3c] sm:$0xf]
      %v1676 = vld [vmem:[%s1659 + $0x40] sm:$0xf]
      %v1677 = vld [vmem:[%s1659 + $0x44] sm:$0xf]
      %v1678 = vld [vmem:[%s1659 + $0x48] sm:$0xf]
      %v1679 = vld [vmem:[%s1659 + $0x4c] sm:$0xf]
      %v1680 = vld [vmem:[%s1659 + $0x50] sm:$0xf]
      %v1681 = vld [vmem:[%s1659 + $0x54] sm:$0xf]
      %v1682 = vld [vmem:[%s1659 + $0x58] sm:$0xf]
      %v1683 = vld [vmem:[%s1659 + $0x5c] sm:$0xf]
      %v1684 = vld [vmem:[%s1659 + $0x60] sm:$0xf]
      %v1685 = vld [vmem:[%s1659 + $0x64] sm:$0xf]
      %v1686 = vld [vmem:[%s1659 + $0x68] sm:$0xf]
      %v1687 = vld [vmem:[%s1659 + $0x6c] sm:$0xf]
      %v1688 = vld [vmem:[%s1659 + $0x70] sm:$0xf]
      %v1689 = vld [vmem:[%s1659 + $0x74] sm:$0xf]
      %v1690 = vld [vmem:[%s1659 + $0x78] sm:$0xf]
      %v1691 = vld [vmem:[%s1659 + $0x7c] sm:$0xf]
      %v1692 = vld [vmem:[%s1659 + $0x80] sm:$0xf]
      %v1693 = vld [vmem:[%s1659 + $0x84] sm:$0xf]
      %v1694 = vld [vmem:[%s1659 + $0x88] sm:$0xf]
      %v1695 = vld [vmem:[%s1659 + $0x8c] sm:$0xf]
      %v1696 = vld [vmem:[%s1659 + $0x90] sm:$0xf]
      %v1697 = vld [vmem:[%s1659 + $0x94] sm:$0xf]
      %v1698 = vld [vmem:[%s1659 + $0x98] sm:$0xf]
      %v1699 = vld [vmem:[%s1659 + $0x9c] sm:$0xf]
      %v1700 = vld [vmem:[%s1659 + $0xa0] sm:$0xf]
      %v1701 = vld [vmem:[%s1659 + $0xa4] sm:$0xf]
      %v1702 = vld [vmem:[%s1659 + $0xa8] sm:$0xf]
      %v1703 = vld [vmem:[%s1659 + $0xac] sm:$0xf]
      %v1704 = vld [vmem:[%s1659 + $0xb0] sm:$0xf]
      %v1705 = vld [vmem:[%s1659 + $0xb4] sm:$0xf]
      %v1706 = vld [vmem:[%s1659 + $0xb8] sm:$0xf]
      %v1707 = vld [vmem:[%s1659 + $0xbc] sm:$0xf]
      %v1709 = vshrl.u32 %v497, 16
      %v1711 = vrot.slane %v1709, 3
      %v1712 = vshll.u32 %v497, 16
      %v1714 = vrot.slane %v1712, 4
      %v1715 = vor.u32 %v1711, %v1714
      %v1716 = vsel %vm720, %v941, %v1715
      %v1718 = vshrl.u32 %v596, 16
      %v1720 = vrot.slane %v1718, 3
      %v1721 = vshll.u32 %v596, 16
      %v1723 = vrot.slane %v1721, 4
      %v1724 = vor.u32 %v1720, %v1723
      %v1725 = vsel %vm720, %v950, %v1724
      %v1727 = vshrl.u32 %v622, 16
      %v1729 = vrot.slane %v1727, 3
      %v1730 = vshll.u32 %v622, 16
      %v1732 = vrot.slane %v1730, 4
      %v1733 = vor.u32 %v1729, %v1732
      %v1734 = vsel %vm720, %v959, %v1733
      %v1786 = vunpack.c.l.b16 %v1660
      %v1787 = vunpack.c.l.b16 %v1661
      %v1788 = vunpack.c.l.b16 %v1662
      %v1789 = vunpack.c.l.b16 %v1663
      %v1790 = vunpack.c.l.b16 %v1664
      %v1791 = vunpack.c.l.b16 %v1665
      %v1792 = vunpack.c.l.b16 %v1666
      %v1793 = vunpack.c.l.b16 %v1667
      %v1794 = vunpack.c.l.b16 %v1668
      %v1795 = vunpack.c.l.b16 %v1669
      %v1796 = vunpack.c.l.b16 %v1670
      %v1797 = vunpack.c.l.b16 %v1671
      %v1798 = vunpack.c.l.b16 %v1672
      %v1799 = vunpack.c.l.b16 %v1673
      %v1800 = vunpack.c.l.b16 %v1674
      %v1801 = vunpack.c.l.b16 %v1675
      %v1802 = vunpack.c.l.b16 %v1676
      %v1803 = vunpack.c.l.b16 %v1677
      %v1804 = vunpack.c.l.b16 %v1678
      %v1805 = vunpack.c.l.b16 %v1679
      %v1806 = vunpack.c.l.b16 %v1680
      %v1807 = vunpack.c.l.b16 %v1681
      %v1808 = vunpack.c.l.b16 %v1682
      %v1809 = vunpack.c.l.b16 %v1683
      %v1810 = vunpack.c.l.b16 %v1684
      %v1811 = vunpack.c.l.b16 %v1685
      %v1812 = vunpack.c.l.b16 %v1686
      %v1813 = vunpack.c.l.b16 %v1687
      %v1814 = vunpack.c.l.b16 %v1688
      %v1815 = vunpack.c.l.b16 %v1689
      %v1816 = vunpack.c.l.b16 %v1690
      %v1817 = vunpack.c.l.b16 %v1691
      %v1818 = vunpack.c.l.b16 %v1692
      %v1819 = vunpack.c.l.b16 %v1693
      %v1820 = vunpack.c.l.b16 %v1694
      %v1821 = vunpack.c.l.b16 %v1695
      %v1822 = vunpack.c.l.b16 %v1696
      %v1823 = vunpack.c.l.b16 %v1697
      %v1824 = vunpack.c.l.b16 %v1698
      %v1825 = vunpack.c.l.b16 %v1699
      %v1826 = vunpack.c.l.b16 %v1700
      %v1827 = vunpack.c.l.b16 %v1701
      %v1828 = vunpack.c.l.b16 %v1702
      %v1829 = vunpack.c.l.b16 %v1703
      %v1830 = vunpack.c.l.b16 %v1704
      %v1831 = vunpack.c.l.b16 %v1705
      %v1832 = vunpack.c.l.b16 %v1706
      %v1833 = vunpack.c.l.b16 %v1707
      %v1834 = vpack.c.b16 %v1787, %v1786
      %v1835 = vpack.c.b16 %v1789, %v1788
      %v1836 = vpack.c.b16 %v1791, %v1790
      %v1837 = vpack.c.b16 %v1793, %v1792
      %v1838 = vpack.c.b16 %v1795, %v1794
      %v1839 = vpack.c.b16 %v1797, %v1796
      %v1840 = vpack.c.b16 %v1799, %v1798
      %v1841 = vpack.c.b16 %v1801, %v1800
      %v1842 = vpack.c.b16 %v1803, %v1802
      %v1843 = vpack.c.b16 %v1805, %v1804
      %v1844 = vpack.c.b16 %v1807, %v1806
      %v1845 = vpack.c.b16 %v1809, %v1808
      %v1846 = vpack.c.b16 %v1811, %v1810
      %v1847 = vpack.c.b16 %v1813, %v1812
      %v1848 = vpack.c.b16 %v1815, %v1814
      %v1849 = vpack.c.b16 %v1817, %v1816
      %v1850 = vpack.c.b16 %v1819, %v1818
      %v1851 = vpack.c.b16 %v1821, %v1820
      %v1852 = vpack.c.b16 %v1823, %v1822
      %v1853 = vpack.c.b16 %v1825, %v1824
      %v1854 = vpack.c.b16 %v1827, %v1826
      %v1855 = vpack.c.b16 %v1829, %v1828
      %v1856 = vpack.c.b16 %v1831, %v1830
      %v1857 = vpack.c.b16 %v1833, %v1832
      %1882 = vmatprep.subr.bf16.mxu0 0
      %1883 = vmatpush1.bf16.msra.mxu0 %v1841
      %1884 = vmatprep.subr.bf16.mxu0 0
      %1885 = vmatpush1.bf16.msra.mxu0 %v1840
      %1886 = vmatprep.subr.bf16.mxu0 0
      %1887 = vmatpush1.bf16.msra.mxu0 %v1839
      %1888 = vmatprep.subr.bf16.mxu0 0
      %1889 = vmatpush1.bf16.msra.mxu0 %v1838
      %1890 = vmatprep.subr.bf16.mxu0 0
      %1891 = vmatpush1.bf16.msra.mxu0 %v1837
      %1892 = vmatprep.subr.bf16.mxu0 0
      %1893 = vmatpush1.bf16.msra.mxu0 %v1836
      %1894 = vmatprep.subr.bf16.mxu0 0
      %1895 = vmatpush1.bf16.msra.mxu0 %v1835
      %1896 = vmatprep.subr.bf16.mxu0 0
      %1897 = vmatpush1.bf16.msra.mxu0 %v1834
      %1898 = vmatprep.subr.bf16.mxu0 0
      %1899 = vmatpush2.bf16.msra.mxu0 %v1849
      %1900 = vmatprep.subr.bf16.mxu0 0
      %1901 = vmatpush2.bf16.msra.mxu0 %v1848
      %1902 = vmatprep.subr.bf16.mxu0 0
      %1903 = vmatpush2.bf16.msra.mxu0 %v1847
      %1904 = vmatprep.subr.bf16.mxu0 0
      %1905 = vmatpush2.bf16.msra.mxu0 %v1846
      %1906 = vmatprep.subr.bf16.mxu0 0
      %1907 = vmatpush2.bf16.msra.mxu0 %v1845
      %1908 = vmatprep.subr.bf16.mxu0 0
      %1909 = vmatpush2.bf16.msra.mxu0 %v1844
      %1910 = vmatprep.subr.bf16.mxu0 0
      %1911 = vmatpush2.bf16.msra.mxu0 %v1843
      %1912 = vmatprep.subr.bf16.mxu0 0
      %1913 = vmatpush2.bf16.msra.mxu0 %v1842
      %1914 = vmatprep.mubr.bf16.mxu0 %v789
      %1915 = vmatmul.mubr.bf16.gmra.mxu0 %v780
      %v1916 = vpop.f32.mrf.mxu0
      %v1917 = vadd.f32 0.0, %v1916
      %v1918 = vpop.f32.mrf.mxu0
      %v1919 = vpop.f32.mrf.mxu0
      %v1920 = vpop.f32.mrf.mxu0
      %1921 = vmatprep.mubr.bf16.mxu0 %v816
      %1922 = vmatmul.mubr.bf16.gmra.mxu0 %v807
      %v1923 = vpop.f32.mrf.mxu0
      %v1924 = vadd.f32 0.0, %v1923
      %v1925 = vpop.f32.mrf.mxu0
      %v1926 = vpop.f32.mrf.mxu0
      %v1927 = vpop.f32.mrf.mxu0
      %1928 = vmatprep.mubr.bf16.mxu0 %v843
      %1929 = vmatmul.mubr.bf16.gmra.mxu0 %v834
      %v1930 = vpop.f32.mrf.mxu0
      %v1931 = vadd.f32 0.0, %v1930
      %v1932 = vpop.f32.mrf.mxu0
      %v1933 = vpop.f32.mrf.mxu0
      %v1934 = vpop.f32.mrf.mxu0
      %1935 = vmatprep.mubr.bf16.mxu0 %v870
      %1936 = vmatmul.mubr.bf16.gmra.mxu0 %v861
      %v1937 = vpop.f32.mrf.mxu0
      %v1938 = vadd.f32 0.0, %v1937
      %v1939 = vpop.f32.mrf.mxu0
      %v1940 = vpop.f32.mrf.mxu0
      %v1941 = vpop.f32.mrf.mxu0
      %1942 = vmatprep.mubr.bf16.mxu0 %v897
      %1943 = vmatmul.mubr.bf16.gmra.mxu0 %v888
      %v1944 = vpop.f32.mrf.mxu0
      %v1945 = vadd.f32 0.0, %v1944
      %v1946 = vpop.f32.mrf.mxu0
      %v1947 = vpop.f32.mrf.mxu0
      %v1948 = vpop.f32.mrf.mxu0
      %1949 = vmatprep.mubr.bf16.mxu0 %v924
      %1950 = vmatmul.mubr.bf16.gmra.mxu0 %v915
      %v1951 = vpop.f32.mrf.mxu0
      %v1952 = vadd.f32 0.0, %v1951
      %v1953 = vpop.f32.mrf.mxu0
      %v1954 = vpop.f32.mrf.mxu0
      %v1955 = vpop.f32.mrf.mxu0
      %1956 = vmatprep.mubr.bf16.mxu0 %v951
      %1957 = vmatmul.mubr.bf16.gmra.mxu0 %v942
      %v1958 = vpop.f32.mrf.mxu0
      %v1959 = vadd.f32 0.0, %v1958
      %v1960 = vpop.f32.mrf.mxu0
      %v1961 = vpop.f32.mrf.mxu0
      %v1962 = vpop.f32.mrf.mxu0
      %1963 = vmatprep.mubr.bf16.mxu0 %v1725
      %1964 = vmatmul.mubr.bf16.gmra.mxu0 %v1716
      %v1965 = vpop.f32.mrf.mxu0
      %v1966 = vadd.f32 0.0, %v1965
      %v1967 = vpop.f32.mrf.mxu0
      %v1968 = vpop.f32.mrf.mxu0
      %v1969 = vpop.f32.mrf.mxu0
      %1970 = vdwg.mxu0
      %1971 = vmatprep.subr.bf16.mxu0 0
      %1972 = vmatpush1.bf16.msra.mxu0 %v1857
      %1973 = vmatprep.subr.bf16.mxu0 0
      %1974 = vmatpush1.bf16.msra.mxu0 %v1856
      %1975 = vmatprep.subr.bf16.mxu0 0
      %1976 = vmatpush1.bf16.msra.mxu0 %v1855
      %1977 = vmatprep.subr.bf16.mxu0 0
      %1978 = vmatpush1.bf16.msra.mxu0 %v1854
      %1979 = vmatprep.subr.bf16.mxu0 0
      %1980 = vmatpush1.bf16.msra.mxu0 %v1853
      %1981 = vmatprep.subr.bf16.mxu0 0
      %1982 = vmatpush1.bf16.msra.mxu0 %v1852
      %1983 = vmatprep.subr.bf16.mxu0 0
      %1984 = vmatpush1.bf16.msra.mxu0 %v1851
      %1985 = vmatprep.subr.bf16.mxu0 0
      %1986 = vmatpush1.bf16.msra.mxu0 %v1850
      %1987 = vmatprep.subr.bf16.mxu0 0
      %1988 = vmatpush2.bf16.msra.mxu0 0
      %1989 = vmatprep.subr.bf16.mxu0 0
      %1990 = vmatpush2.bf16.msra.mxu0 0
      %1991 = vmatprep.subr.bf16.mxu0 0
      %1992 = vmatpush2.bf16.msra.mxu0 0
      %1993 = vmatprep.subr.bf16.mxu0 0
      %1994 = vmatpush2.bf16.msra.mxu0 0
      %1995 = vmatprep.subr.bf16.mxu0 0
      %1996 = vmatpush2.bf16.msra.mxu0 0
      %1997 = vmatprep.subr.bf16.mxu0 0
      %1998 = vmatpush2.bf16.msra.mxu0 0
      %1999 = vmatprep.subr.bf16.mxu0 0
      %2000 = vmatpush2.bf16.msra.mxu0 0
      %2001 = vmatprep.subr.bf16.mxu0 0
      %2002 = vmatpush2.bf16.msra.mxu0 0
      %2003 = vmatprep.mubr.bf16.mxu0 0
      %2004 = vmatmul.mubr.bf16.gmra.mxu0 %v798
      %v2005 = vpop.f32.mrf.mxu0
      %v2006 = vadd.f32 %v1917, %v2005
      %v2007 = vpop.f32.mrf.mxu0
      %v2008 = vpop.f32.mrf.mxu0
      %v2009 = vpop.f32.mrf.mxu0
      %2010 = vmatprep.mubr.bf16.mxu0 0
      %2011 = vmatmul.mubr.bf16.gmra.mxu0 %v825
      %v2012 = vpop.f32.mrf.mxu0
      %v2013 = vadd.f32 %v1924, %v2012
      %v2014 = vpop.f32.mrf.mxu0
      %v2015 = vpop.f32.mrf.mxu0
      %v2016 = vpop.f32.mrf.mxu0
      %2017 = vmatprep.mubr.bf16.mxu0 0
      %2018 = vmatmul.mubr.bf16.gmra.mxu0 %v852
      %v2019 = vpop.f32.mrf.mxu0
      %v2020 = vadd.f32 %v1931, %v2019
      %v2021 = vpop.f32.mrf.mxu0
      %v2022 = vpop.f32.mrf.mxu0
      %v2023 = vpop.f32.mrf.mxu0
      %2024 = vmatprep.mubr.bf16.mxu0 0
      %2025 = vmatmul.mubr.bf16.gmra.mxu0 %v879
      %v2026 = vpop.f32.mrf.mxu0
      %v2027 = vadd.f32 %v1938, %v2026
      %v2028 = vpop.f32.mrf.mxu0
      %v2029 = vpop.f32.mrf.mxu0
      %v2030 = vpop.f32.mrf.mxu0
      %2031 = vmatprep.mubr.bf16.mxu0 0
      %2032 = vmatmul.mubr.bf16.gmra.mxu0 %v906
      %v2033 = vpop.f32.mrf.mxu0
      %v2034 = vadd.f32 %v1945, %v2033
      %v2035 = vpop.f32.mrf.mxu0
      %v2036 = vpop.f32.mrf.mxu0
      %v2037 = vpop.f32.mrf.mxu0
      %2038 = vmatprep.mubr.bf16.mxu0 0
      %2039 = vmatmul.mubr.bf16.gmra.mxu0 %v933
      %v2040 = vpop.f32.mrf.mxu0
      %v2041 = vadd.f32 %v1952, %v2040
      %v2042 = vpop.f32.mrf.mxu0
      %v2043 = vpop.f32.mrf.mxu0
      %v2044 = vpop.f32.mrf.mxu0
      %2045 = vmatprep.mubr.bf16.mxu0 0
      %2046 = vmatmul.mubr.bf16.gmra.mxu0 %v960
      %v2047 = vpop.f32.mrf.mxu0
      %v2048 = vadd.f32 %v1959, %v2047
      %v2049 = vpop.f32.mrf.mxu0
      %v2050 = vpop.f32.mrf.mxu0
      %v2051 = vpop.f32.mrf.mxu0
      %2052 = vmatprep.mubr.bf16.mxu0 0
      %2053 = vmatmul.mubr.bf16.gmra.mxu0 %v1734
      %v2054 = vpop.f32.mrf.mxu0
      %v2055 = vadd.f32 %v1966, %v2054
      %v2056 = vpop.f32.mrf.mxu0
      %v2057 = vpop.f32.mrf.mxu0
      %v2058 = vpop.f32.mrf.mxu0
      %2059 = vdwg.mxu0
      %v2060 = vadd.f32 %v1605, %v2006
      %v2061 = vadd.f32 %v1612, %v2013
      %v2062 = vadd.f32 %v1619, %v2020
      %v2063 = vadd.f32 %v1626, %v2027
      %v2064 = vadd.f32 %v1633, %v2034
      %v2065 = vadd.f32 %v1640, %v2041
      %v2066 = vadd.f32 %v1647, %v2048
      %v2067 = vadd.f32 %v1654, %v2055
      %v2068 = vpack.c.bf16 %v2061, %v2060
      %v2069 = vpack.c.bf16 %v2063, %v2062
      %v2070 = vpack.c.bf16 %v2065, %v2064
      %v2071 = vpack.c.bf16 %v2067, %v2066
      %v2076 = vunpack.c.l.b16 %v2068
      %v2077 = vunpack.c.h.b16 %v2068
      %v2078 = vunpack.c.l.b16 %v2069
      %v2079 = vunpack.c.h.b16 %v2069
      %v2080 = vunpack.c.l.b16 %v2070
      %v2081 = vunpack.c.h.b16 %v2070
      %v2082 = vunpack.c.l.b16 %v2071
      %v2083 = vunpack.c.h.b16 %v2071
      %v2084 = vpack.c.b16 %v2076, %v2076
      %v2085 = vpack.c.b16 %v2077, %v2077
      %v2086 = vpack.c.b16 %v2078, %v2078
      %v2087 = vpack.c.b16 %v2079, %v2079
      %v2088 = vpack.c.b16 %v2080, %v2080
      %v2089 = vpack.c.b16 %v2081, %v2081
      %v2090 = vpack.c.b16 %v2082, %v2082
      %v2091 = vpack.c.b16 %v2083, %v2083
      %2100 = vst [vmem:[%s287] sm:$0xf] %v2084
      %2101 = vst [vmem:[%s287 + $0x4] sm:$0xf] %v2085
      %2102 = vst [vmem:[%s287 + $0x8] sm:$0xf] %v2086
      %2103 = vst [vmem:[%s287 + $0xc] sm:$0xf] %v2087
      %2104 = vst [vmem:[%s287 + $0x10] sm:$0xf] %v2088
      %2105 = vst [vmem:[%s287 + $0x14] sm:$0xf] %v2089
      %2106 = vst [vmem:[%s287 + $0x18] sm:$0xf] %v2090
      %2107 = vst [vmem:[%s287 + $0x1c] sm:$0xf] %v2091
      %v2108 = vld [vmem:[%s292] sm:$0x1]
      %v2109 = vadd.f32 %v2060, %v2061
      %v2110 = vadd.f32 %v2109, %v2062
      %v2111 = vadd.f32 %v2110, %v2063
      %v2112 = vadd.f32 %v2111, %v2064
      %v2113 = vadd.f32 %v2112, %v2065
      %v2114 = vadd.f32 %v2113, %v2066
      %v2115 = vadd.f32 %v2114, %v2067
      %v2116 = vrot.slane %v2115, 4
      %v2117 = vadd.f32 %v2115, %v2116
      %v2118 = vrot.slane %v2117, 2
      %v2119 = vadd.f32 %v2117, %v2118
      %v2120 = vrot.slane %v2119, 1
      %v2121 = vadd.f32 %v2119, %v2120
      %v2122 = vadd.f32 %v2108, %v2121
      %2123 = vst [vmem:[%s292] sm:$0x1] %v2122
      %v2124 = vld [vmem:[%s296] sm:$0x1]
      %v2125 = vmul.f32 %v2060, %v2060
      %v2126 = vmul.f32 %v2061, %v2061
      %v2127 = vmul.f32 %v2062, %v2062
      %v2128 = vmul.f32 %v2063, %v2063
      %v2129 = vmul.f32 %v2064, %v2064
      %v2130 = vmul.f32 %v2065, %v2065
      %v2131 = vmul.f32 %v2066, %v2066
      %v2132 = vmul.f32 %v2067, %v2067
      %v2133 = vadd.f32 %v2125, %v2126
      %v2134 = vadd.f32 %v2133, %v2127
      %v2135 = vadd.f32 %v2134, %v2128
      %v2136 = vadd.f32 %v2135, %v2129
      %v2137 = vadd.f32 %v2136, %v2130
      %v2138 = vadd.f32 %v2137, %v2131
      %v2139 = vadd.f32 %v2138, %v2132
      %v2140 = vrot.slane %v2139, 4
      %v2141 = vadd.f32 %v2139, %v2140
      %v2142 = vrot.slane %v2141, 2
      %v2143 = vadd.f32 %v2141, %v2142
      %v2144 = vrot.slane %v2143, 1
      %v2145 = vadd.f32 %v2143, %v2144
      %v2146 = vadd.f32 %v2124, %v2145
      %2147 = vst [vmem:[%s296] sm:$0x1] %v2146
      %s2148 = sadd.s32 %s22, %s23
      %p2149 = scmp.lt.s32.totalorder %s2148, 1
      %s2150 = scalar_select %p2149, %s2148, 1
      %s2151 = smul.addr %s2150, 8
      %s2152 = smul.addr %s2151, 4
      %s2153 = scalar_lea.vmem %s4, %s2152
      %p2154 = scmp.lt.s32.totalorder %s22, 1
      %s2155 = scalar_select %p2154, %s22, 1
      %s2156 = smul.addr %s2155, 8
      %s2157 = scalar_lea.vmem %s5, %s2156
      %p2158 = scmp.lt.s32.totalorder %s22, 1
      %s2159 = scalar_select %p2158, %s22, 1
      %s2160 = smul.addr %s2159, 8
      %s2161 = scalar_lea.vmem %s6, %s2160
      // Predicated region
      $region41: #{bottleneck_forward.5} parent=35 // pred_check
        %p2162 = pneg %p141
      $region42: #{bottleneck_forward.5} parent=35 // pred_check_branch
        %2164 = sbr.rel (%p2162) target = $region44
      $region43: #{bottleneck_forward.5} parent=35 // pred_region
        %s2165 = sadd.s32 %s22, %s23
      $region44: #{bottleneck_forward.5} parent=35 // pred_fallthru
        _
      // Predicated region
      $region45: #{bottleneck_forward.5} parent=35 // pred_check
        %p2166 = pneg %p167
      $region46: #{bottleneck_forward.5} parent=35 // pred_check_branch
        %2168 = sbr.rel (%p2166) target = $region48
      $region47: #{bottleneck_forward.5} parent=35 // pred_region
        _
      $region48: #{bottleneck_forward.5} parent=35 // pred_fallthru
        _
      // Predicated region
      $region49: #{bottleneck_forward.5} parent=35 // pred_check
        %p2169 = pneg %p193
      $region50: #{bottleneck_forward.5} parent=35 // pred_check_branch
        %2171 = sbr.rel (%p2169) target = $region52
      $region51: #{bottleneck_forward.5} parent=35 // pred_region
        _
      $region52: #{bottleneck_forward.5} parent=35 // pred_fallthru
        _
    $region36: #{bottleneck_forward.5} parent=5 // pred_fallthru
      _
    %p2172 = scmp.le.s32.totalorder 2, %s13
    // Predicated region
    $region53: #{bottleneck_forward.5} parent=5 // pred_check
      %p2173 = pneg %p2172
    $region54: #{bottleneck_forward.5} parent=5 // pred_check_branch
      %2175 = sbr.rel (%p2173) target = $region56
    $region55: #{bottleneck_forward.5} parent=5 // pred_region
      %s2176 = ssub.s32 %s13, 2
      // Predicated region
      $region57: #{bottleneck_forward.5} parent=55 // pred_check
        %p2177 = pneg %p147
      $region58: #{bottleneck_forward.5} parent=55 // pred_check_branch
        %2179 = sbr.rel (%p2177) target = $region60
      $region59: #{bottleneck_forward.5} parent=55 // pred_region
        %s2180 = sadd.s32 %s24, %s25
        %p2181 = scmp.lt.s32.totalorder %s2180, 1
        %s2182 = scalar_select %p2181, %s2180, 1
        %s2183 = smul.addr %s2182, 8
        %s2184 = smul.addr %s2183, 4
        %s2185 = scalar_lea.vmem %s4, %s2184
      $region60: #{bottleneck_forward.5} parent=55 // pred_fallthru
        _
      // Predicated region
      $region61: #{bottleneck_forward.5} parent=55 // pred_check
        %p2186 = pneg %p173
      $region62: #{bottleneck_forward.5} parent=55 // pred_check_branch
        %2188 = sbr.rel (%p2186) target = $region64
      $region63: #{bottleneck_forward.5} parent=55 // pred_region
        %p2189 = scmp.lt.s32.totalorder %s24, 1
        %s2190 = scalar_select %p2189, %s24, 1
        %s2191 = smul.addr %s2190, 8
        %s2192 = scalar_lea.vmem %s5, %s2191
      $region64: #{bottleneck_forward.5} parent=55 // pred_fallthru
        _
      // Predicated region
      $region65: #{bottleneck_forward.5} parent=55 // pred_check
        %p2193 = pneg %p199
      $region66: #{bottleneck_forward.5} parent=55 // pred_check_branch
        %2195 = sbr.rel (%p2193) target = $region68
      $region67: #{bottleneck_forward.5} parent=55 // pred_region
        %p2196 = scmp.lt.s32.totalorder %s24, 1
        %s2197 = scalar_select %p2196, %s24, 1
        %s2198 = smul.addr %s2197, 8
        %s2199 = scalar_lea.vmem %s6, %s2198
      $region68: #{bottleneck_forward.5} parent=55 // pred_fallthru
        _
    $region56: #{bottleneck_forward.5} parent=5 // pred_fallthru
      _
  $region6: #{bottleneck_forward.5} parent=0 // loop_footer
    %s17 = sadd.s32 1, %s13
  $region7: #{bottleneck_forward.5} parent=0 // loop_footer_branch
    %12 = sbr.rel target = $region3
  $region8: #{bottleneck_forward.5} parent=0 // loop_exit
    _

</llo_original>
